<compile_context>
chip_gen: v7x
topology: tpu7x:2x2x1
jax: 0.10.0
libtpu: 0.0.40
codegen_flags: <defaults>
</compile_context>

<pallas_src>
import jax
import jax.numpy as jnp
import numpy as np
from jax import lax
from jax.experimental import pallas as pl
from jax.experimental.pallas import tpu as pltpu

LRELU_SLOPE = 0.2
BN_EPS = 1e-5


# ---------------- fused Pallas kernel (entire forward) ----------------

def _fused_valuecnn_kernel(p1e_ref, w1col_ref, w2f_ref, shift_ref,
                           fw1p_ref, fb1_ref, fvw_ref, fvb_ref,
                           o_ref, y2_scr):
    # p1e_ref : (K*K, P2*B, K*K*C)  conv1 patches, expanded per conv2 kernel pos
    # w1col   : (K*K*C, F1)         conv1 weights (columns)
    # w2f     : (K*K, F1, F2)       conv2 weights with BN scale folded in
    # shift   : (1, F2)             folded BN shift
    # fw1p    : (P2, F2, HID)       fc_h1 weights with NCHW flatten folded in
    # fb1     : (1, HID);  fvw: (1, HID);  fvb: (1, 1);  o_ref: (B, 1)
    n_kpos = p1e_ref.shape[0]
    n_rows = p1e_ref.shape[1]
    n_pos, f2, hid = fw1p_ref.shape
    b = o_ref.shape[0]

    w1col = w1col_ref[...]

    # conv1 (+LeakyReLU) and conv2 accumulation over the 16 kernel positions.
    # Rows that correspond to conv2 zero-padding are all-zero patches, so they
    # contribute exactly zero (conv1 has no bias, LeakyReLU(0) == 0).
    acc2 = jnp.zeros((n_rows, f2), jnp.float32)
    for kpos in range(n_kpos):
        y1 = jnp.dot(p1e_ref[kpos], w1col, preferred_element_type=jnp.float32)
        y1 = jnp.where(y1 > 0, y1, LRELU_SLOPE * y1)           # LeakyReLU(0.2)
        acc2 = acc2 + jnp.dot(y1, w2f_ref[kpos],
                              preferred_element_type=jnp.float32)

    y2 = acc2 + shift_ref[...]                                  # folded BatchNorm
    y2 = jnp.where(y2 > 0, y2, LRELU_SLOPE * y2)                # LeakyReLU(0.2)
    sig = 1.0 / (1.0 + jnp.exp(-y2))                            # exp -> EUP
    y2_scr[...] = y2 * sig                                      # SiLU

    # fc_h1 with the NCHW flatten folded into per-position weight slabs.
    hacc = jnp.zeros((b, hid), jnp.float32)
    for p in range(n_pos):
        blk = y2_scr[pl.ds(p * b, b), :]                        # (B, F2) at pos p
        hacc = hacc + jnp.dot(blk, fw1p_ref[p],
                              preferred_element_type=jnp.float32)
    h = hacc + fb1_ref[...]
    s = 1.0 / (1.0 + jnp.exp(-h))
    h = s * (1.0 + h * (1.0 - s))                               # dSiLU

    # fc_v (output width 1): VPU multiply + lane reduction.
    v = jnp.sum(h * fvw_ref[...], axis=-1, keepdims=True) + fvb_ref[...]
    o_ref[...] = v


# ---------------- JAX wrapper (trace-time folding + input prep) ----------------

def _im2col_nhwc(x, k, s, p):
    B, H, W, C = x.shape
    xp = jnp.pad(x, ((0, 0), (p, p), (p, p), (0, 0)))
    Ho = (H - k + 2 * p) // s + 1
    Wo = (W - k + 2 * p) // s + 1
    cols = []
    for kh in range(k):
        for kw in range(k):
            cols.append(xp[:, kh:kh + s * Ho:s, kw:kw + s * Wo:s, :])
    patches = jnp.stack(cols, axis=3)                 # (B, Ho, Wo, k*k, C)
    return patches.reshape(B, Ho, Wo, k * k * C), Ho, Wo


@jax.jit
def value_cnn_forward(x_nhwc, params):
    (w1, w2, bn_gamma, bn_beta, bn_mean, bn_var, fw1, fb1, fvw, fvb) = params
    B = x_nhwc.shape[0]
    C = x_nhwc.shape[3]
    K, S, P = 4, 2, 1
    F1 = w1.shape[0]      # 8
    F2 = w2.shape[0]      # 16
    HID = fw1.shape[0]    # hidden_dim

    # conv1 im2col (input-side layout prep only; all compute happens in-kernel).
    p1, H1, W1 = _im2col_nhwc(x_nhwc, K, S, P)                  # (B, H1, W1, K*K*C)
    H2 = (H1 - K + 2 * P) // S + 1
    W2o = (W1 - K + 2 * P) // S + 1
    n_pos = H2 * W2o

    # Expand conv1 patches per conv2 kernel position:
    #   p1e[kh*K+kw, (h2*W2+w2)*B + b, :] = conv1 patch at (S*h2+kh-P, S*w2+kw-P)
    # (zeros where that position falls in conv2's zero padding).
    p1pad = jnp.pad(p1, ((0, 0), (P, P), (P, P), (0, 0)))
    blocks = []
    for kh in range(K):
        for kw in range(K):
            blk = p1pad[:, kh:kh + S * H2:S, kw:kw + S * W2o:S, :]   # (B,H2,W2,KKC)
            blk = jnp.transpose(blk, (1, 2, 0, 3)).reshape(n_pos * B, K * K * C)
            blocks.append(blk)
    p1e = jnp.stack(blocks, axis=0)                              # (K*K, P2*B, K*K*C)

    # conv1 weights as columns: (kh, kw, cin) x cout.
    w1col = jnp.transpose(w1, (2, 3, 1, 0)).reshape(K * K * C, F1)

    # Fold inference-mode BatchNorm into conv2 weights + shift.
    scale = bn_gamma / jnp.sqrt(bn_var + BN_EPS)
    shift = (bn_beta - bn_mean * scale).reshape(1, F2)
    w2f = jnp.transpose(w2, (2, 3, 1, 0)).reshape(K * K, F1, F2) * scale[None, None, :]

    # Fold PyTorch's NCHW flatten (x.reshape(B, -1)) into fc_h1's columns:
    #   fw1p[p, c, d] = fw1[d, c*(H2*W2) + p]
    fw1p = jnp.transpose(fw1.reshape(HID, F2, n_pos), (2, 1, 0))  # (P2, F2, HID)

    return pl.pallas_call(
        _fused_valuecnn_kernel,
        out_shape=jax.ShapeDtypeStruct((B, 1), jnp.float32),
        in_specs=[pl.BlockSpec(memory_space=pltpu.MemorySpace.VMEM)] * 8,
        out_specs=pl.BlockSpec(memory_space=pltpu.MemorySpace.VMEM),
        scratch_shapes=[pltpu.VMEM((n_pos * B, F2), jnp.float32)],
    )(p1e, w1col, w2f, shift, fw1p,
      fb1.reshape(1, HID), fvw.reshape(1, HID), fvb.reshape(1, 1))


# ---------------- pure-JAX reference for verification ----------------

@jax.jit
def ref_forward(x_nhwc, params):
    (w1, w2, g, bta, rm, rv, fw1, fb1, fvw, fvb) = params
    hi = jax.lax.Precision.HIGHEST
    w1h = jnp.transpose(w1, (2, 3, 1, 0))   # OIHW -> HWIO
    w2h = jnp.transpose(w2, (2, 3, 1, 0))
    dn = ('NHWC', 'HWIO', 'NHWC')
    y = lax.conv_general_dilated(x_nhwc, w1h, (2, 2), ((1, 1), (1, 1)),
                                 dimension_numbers=dn, precision=hi)
    y = jnp.where(y > 0, y, LRELU_SLOPE * y)
    y = lax.conv_general_dilated(y, w2h, (2, 2), ((1, 1), (1, 1)),
                                 dimension_numbers=dn, precision=hi)
    y = (y - rm) / jnp.sqrt(rv + BN_EPS) * g + bta
    y = jnp.where(y > 0, y, LRELU_SLOPE * y)
    y = y * jax.nn.sigmoid(y)                                    # SiLU
    y = jnp.transpose(y, (0, 3, 1, 2)).reshape(y.shape[0], -1)   # NCHW flatten
    h = jnp.dot(y, fw1.T, precision=hi) + fb1
    s = jax.nn.sigmoid(h)
    h = s * (1.0 + h * (1.0 - s))                                # dSiLU
    return jnp.dot(h, fvw.T, precision=hi) + fvb                 # fc_v -> (B, 1)


if __name__ == "__main__":
    # state_space.shape == (16, 16, 4)  ->  X_dim = 16, X_channel = 4
    B, H, W, C = 2, 16, 16, 4
    hidden_dim = 32
    F1, F2, K = 8, 16, 4
    conv1_size = (H - K + 2) // 2 + 1           # 8
    conv2_size = (conv1_size - K + 2) // 2 + 1  # 4
    in_layer_dim = F2 * conv2_size * conv2_size # 256

    key = jax.random.PRNGKey(0)
    keys = jax.random.split(key, 11)
    x = jax.random.normal(keys[0], (B, H, W, C), jnp.float32)

    # deterministic synthetic parameters (PyTorch shape conventions)
    w1 = 0.1 * jax.random.normal(keys[1], (F1, C, K, K), jnp.float32)    # conv1 OIHW
    w2 = 0.1 * jax.random.normal(keys[2], (F2, F1, K, K), jnp.float32)   # conv2 OIHW
    bn_gamma = 1.0 + 0.1 * jax.random.normal(keys[3], (F2,), jnp.float32)
    bn_beta = 0.1 * jax.random.normal(keys[4], (F2,), jnp.float32)
    bn_mean = 0.1 * jax.random.normal(keys[5], (F2,), jnp.float32)
    bn_var = 1.0 + 0.1 * jax.random.uniform(keys[6], (F2,), jnp.float32)
    fw1 = 0.05 * jax.random.normal(keys[7], (hidden_dim, in_layer_dim), jnp.float32)
    fb1 = 0.05 * jax.random.normal(keys[8], (hidden_dim,), jnp.float32)
    fvw = 0.1 * jax.random.normal(keys[9], (1, hidden_dim), jnp.float32)  # fc_v weight
    fvb = 0.1 * jax.random.normal(keys[10], (1,), jnp.float32)            # fc_v bias

    params = (w1, w2, bn_gamma, bn_beta, bn_mean, bn_var, fw1, fb1, fvw, fvb)

    out = jax.block_until_ready(value_cnn_forward(x, params))
    ref = jax.block_until_ready(ref_forward(x, params))

    assert out.shape == (B, 1)
    # kernel matmuls use default MXU precision (HIGHEST dropped per review),
    # so compare against the high-precision reference with a tolerance that
    # admits bf16-level MXU rounding but still catches structural errors.
    np.testing.assert_allclose(np.asarray(out), np.asarray(ref), rtol=2e-2, atol=5e-3)
    print("KERNEL_OK")
</pallas_src>

<mosaic_0001>
module attributes {stable_mosaic.version = 11 : i64} {
  func.func @_fused_valuecnn_kernel(%arg0: memref<16x32x64xf32, #tpu.memory_space<vmem>>, %arg1: memref<64x8xf32, #tpu.memory_space<vmem>>, %arg2: memref<16x8x16xf32, #tpu.memory_space<vmem>>, %arg3: memref<1x16xf32, #tpu.memory_space<vmem>>, %arg4: memref<16x16x32xf32, #tpu.memory_space<vmem>>, %arg5: memref<1x32xf32, #tpu.memory_space<vmem>>, %arg6: memref<1x32xf32, #tpu.memory_space<vmem>>, %arg7: memref<1x1xf32, #tpu.memory_space<vmem>>, %arg8: memref<2x1xf32, #tpu.memory_space<vmem>>, %arg9: memref<32x16xf32, #tpu.memory_space<vmem>>) attributes {dimension_semantics = [], scalar_prefetch = 0 : i64, scratch_operands = 1 : i64, tpu.core_type = #tpu.core_type<tc>} {
    %c0 = arith.constant 0 : index
    %c0_0 = arith.constant 0 : index
    %0 = vector.load %arg1[%c0, %c0_0] : memref<64x8xf32, #tpu.memory_space<vmem>>, vector<64x8xf32>
    %cst = arith.constant 0.000000e+00 : f32
    %1 = vector.broadcast %cst : f32 to vector<32x16xf32>
    %c0_1 = arith.constant 0 : index
    %c0_2 = arith.constant 0 : index
    %c0_3 = arith.constant 0 : index
    %2 = vector.load %arg0[%c0_1, %c0_2, %c0_3] : memref<16x32x64xf32, #tpu.memory_space<vmem>>, vector<1x32x64xf32>
    %3 = vector.shape_cast %2 : vector<1x32x64xf32> to vector<32x64xf32>
    %cst_4 = arith.constant dense<0.000000e+00> : vector<32x8xf32>
    %4 = tpu.matmul %3, %0, %cst_4 {dimension_numbers = #tpu.dot_dimension_numbers<[1], [0], [0], [1], [0, 0, 1, 1], [], []>} : vector<32x64xf32>, vector<64x8xf32>, vector<32x8xf32> -> vector<32x8xf32>
    %cst_5 = arith.constant 0.000000e+00 : f32
    %5 = vector.broadcast %cst_5 : f32 to vector<32x8xf32>
    %6 = arith.cmpf ogt, %4, %5 : vector<32x8xf32>
    %cst_6 = arith.constant 2.000000e-01 : f32
    %7 = vector.broadcast %cst_6 : f32 to vector<32x8xf32>
    %8 = arith.mulf %7, %4 : vector<32x8xf32>
    %9 = arith.select %6, %4, %8 : vector<32x8xi1>, vector<32x8xf32>
    %c0_7 = arith.constant 0 : index
    %c0_8 = arith.constant 0 : index
    %c0_9 = arith.constant 0 : index
    %10 = vector.load %arg2[%c0_7, %c0_8, %c0_9] : memref<16x8x16xf32, #tpu.memory_space<vmem>>, vector<1x8x16xf32>
    %11 = vector.shape_cast %10 : vector<1x8x16xf32> to vector<8x16xf32>
    %cst_10 = arith.constant dense<0.000000e+00> : vector<32x16xf32>
    %12 = tpu.matmul %9, %11, %cst_10 {dimension_numbers = #tpu.dot_dimension_numbers<[1], [0], [0], [1], [0, 0, 1, 1], [], []>} : vector<32x8xf32>, vector<8x16xf32>, vector<32x16xf32> -> vector<32x16xf32>
    %13 = arith.addf %1, %12 : vector<32x16xf32>
    %c1 = arith.constant 1 : index
    %c0_11 = arith.constant 0 : index
    %c0_12 = arith.constant 0 : index
    %14 = vector.load %arg0[%c1, %c0_11, %c0_12] : memref<16x32x64xf32, #tpu.memory_space<vmem>>, vector<1x32x64xf32>
    %15 = vector.shape_cast %14 : vector<1x32x64xf32> to vector<32x64xf32>
    %cst_13 = arith.constant dense<0.000000e+00> : vector<32x8xf32>
    %16 = tpu.matmul %15, %0, %cst_13 {dimension_numbers = #tpu.dot_dimension_numbers<[1], [0], [0], [1], [0, 0, 1, 1], [], []>} : vector<32x64xf32>, vector<64x8xf32>, vector<32x8xf32> -> vector<32x8xf32>
    %cst_14 = arith.constant 0.000000e+00 : f32
    %17 = vector.broadcast %cst_14 : f32 to vector<32x8xf32>
    %18 = arith.cmpf ogt, %16, %17 : vector<32x8xf32>
    %cst_15 = arith.constant 2.000000e-01 : f32
    %19 = vector.broadcast %cst_15 : f32 to vector<32x8xf32>
    %20 = arith.mulf %19, %16 : vector<32x8xf32>
    %21 = arith.select %18, %16, %20 : vector<32x8xi1>, vector<32x8xf32>
    %c1_16 = arith.constant 1 : index
    %c0_17 = arith.constant 0 : index
    %c0_18 = arith.constant 0 : index
    %22 = vector.load %arg2[%c1_16, %c0_17, %c0_18] : memref<16x8x16xf32, #tpu.memory_space<vmem>>, vector<1x8x16xf32>
    %23 = vector.shape_cast %22 : vector<1x8x16xf32> to vector<8x16xf32>
    %cst_19 = arith.constant dense<0.000000e+00> : vector<32x16xf32>
    %24 = tpu.matmul %21, %23, %cst_19 {dimension_numbers = #tpu.dot_dimension_numbers<[1], [0], [0], [1], [0, 0, 1, 1], [], []>} : vector<32x8xf32>, vector<8x16xf32>, vector<32x16xf32> -> vector<32x16xf32>
    %25 = arith.addf %13, %24 : vector<32x16xf32>
    %c2 = arith.constant 2 : index
    %c0_20 = arith.constant 0 : index
    %c0_21 = arith.constant 0 : index
    %26 = vector.load %arg0[%c2, %c0_20, %c0_21] : memref<16x32x64xf32, #tpu.memory_space<vmem>>, vector<1x32x64xf32>
    %27 = vector.shape_cast %26 : vector<1x32x64xf32> to vector<32x64xf32>
    %cst_22 = arith.constant dense<0.000000e+00> : vector<32x8xf32>
    %28 = tpu.matmul %27, %0, %cst_22 {dimension_numbers = #tpu.dot_dimension_numbers<[1], [0], [0], [1], [0, 0, 1, 1], [], []>} : vector<32x64xf32>, vector<64x8xf32>, vector<32x8xf32> -> vector<32x8xf32>
    %cst_23 = arith.constant 0.000000e+00 : f32
    %29 = vector.broadcast %cst_23 : f32 to vector<32x8xf32>
    %30 = arith.cmpf ogt, %28, %29 : vector<32x8xf32>
    %cst_24 = arith.constant 2.000000e-01 : f32
    %31 = vector.broadcast %cst_24 : f32 to vector<32x8xf32>
    %32 = arith.mulf %31, %28 : vector<32x8xf32>
    %33 = arith.select %30, %28, %32 : vector<32x8xi1>, vector<32x8xf32>
    %c2_25 = arith.constant 2 : index
    %c0_26 = arith.constant 0 : index
    %c0_27 = arith.constant 0 : index
    %34 = vector.load %arg2[%c2_25, %c0_26, %c0_27] : memref<16x8x16xf32, #tpu.memory_space<vmem>>, vector<1x8x16xf32>
    %35 = vector.shape_cast %34 : vector<1x8x16xf32> to vector<8x16xf32>
    %cst_28 = arith.constant dense<0.000000e+00> : vector<32x16xf32>
    %36 = tpu.matmul %33, %35, %cst_28 {dimension_numbers = #tpu.dot_dimension_numbers<[1], [0], [0], [1], [0, 0, 1, 1], [], []>} : vector<32x8xf32>, vector<8x16xf32>, vector<32x16xf32> -> vector<32x16xf32>
    %37 = arith.addf %25, %36 : vector<32x16xf32>
    %c3 = arith.constant 3 : index
    %c0_29 = arith.constant 0 : index
    %c0_30 = arith.constant 0 : index
    %38 = vector.load %arg0[%c3, %c0_29, %c0_30] : memref<16x32x64xf32, #tpu.memory_space<vmem>>, vector<1x32x64xf32>
    %39 = vector.shape_cast %38 : vector<1x32x64xf32> to vector<32x64xf32>
    %cst_31 = arith.constant dense<0.000000e+00> : vector<32x8xf32>
    %40 = tpu.matmul %39, %0, %cst_31 {dimension_numbers = #tpu.dot_dimension_numbers<[1], [0], [0], [1], [0, 0, 1, 1], [], []>} : vector<32x64xf32>, vector<64x8xf32>, vector<32x8xf32> -> vector<32x8xf32>
    %cst_32 = arith.constant 0.000000e+00 : f32
    %41 = vector.broadcast %cst_32 : f32 to vector<32x8xf32>
    %42 = arith.cmpf ogt, %40, %41 : vector<32x8xf32>
    %cst_33 = arith.constant 2.000000e-01 : f32
    %43 = vector.broadcast %cst_33 : f32 to vector<32x8xf32>
    %44 = arith.mulf %43, %40 : vector<32x8xf32>
    %45 = arith.select %42, %40, %44 : vector<32x8xi1>, vector<32x8xf32>
    %c3_34 = arith.constant 3 : index
    %c0_35 = arith.constant 0 : index
    %c0_36 = arith.constant 0 : index
    %46 = vector.load %arg2[%c3_34, %c0_35, %c0_36] : memref<16x8x16xf32, #tpu.memory_space<vmem>>, vector<1x8x16xf32>
    %47 = vector.shape_cast %46 : vector<1x8x16xf32> to vector<8x16xf32>
    %cst_37 = arith.constant dense<0.000000e+00> : vector<32x16xf32>
    %48 = tpu.matmul %45, %47, %cst_37 {dimension_numbers = #tpu.dot_dimension_numbers<[1], [0], [0], [1], [0, 0, 1, 1], [], []>} : vector<32x8xf32>, vector<8x16xf32>, vector<32x16xf32> -> vector<32x16xf32>
    %49 = arith.addf %37, %48 : vector<32x16xf32>
    %c4 = arith.constant 4 : index
    %c0_38 = arith.constant 0 : index
    %c0_39 = arith.constant 0 : index
    %50 = vector.load %arg0[%c4, %c0_38, %c0_39] : memref<16x32x64xf32, #tpu.memory_space<vmem>>, vector<1x32x64xf32>
    %51 = vector.shape_cast %50 : vector<1x32x64xf32> to vector<32x64xf32>
    %cst_40 = arith.constant dense<0.000000e+00> : vector<32x8xf32>
    %52 = tpu.matmul %51, %0, %cst_40 {dimension_numbers = #tpu.dot_dimension_numbers<[1], [0], [0], [1], [0, 0, 1, 1], [], []>} : vector<32x64xf32>, vector<64x8xf32>, vector<32x8xf32> -> vector<32x8xf32>
    %cst_41 = arith.constant 0.000000e+00 : f32
    %53 = vector.broadcast %cst_41 : f32 to vector<32x8xf32>
    %54 = arith.cmpf ogt, %52, %53 : vector<32x8xf32>
    %cst_42 = arith.constant 2.000000e-01 : f32
    %55 = vector.broadcast %cst_42 : f32 to vector<32x8xf32>
    %56 = arith.mulf %55, %52 : vector<32x8xf32>
    %57 = arith.select %54, %52, %56 : vector<32x8xi1>, vector<32x8xf32>
    %c4_43 = arith.constant 4 : index
    %c0_44 = arith.constant 0 : index
    %c0_45 = arith.constant 0 : index
    %58 = vector.load %arg2[%c4_43, %c0_44, %c0_45] : memref<16x8x16xf32, #tpu.memory_space<vmem>>, vector<1x8x16xf32>
    %59 = vector.shape_cast %58 : vector<1x8x16xf32> to vector<8x16xf32>
    %cst_46 = arith.constant dense<0.000000e+00> : vector<32x16xf32>
    %60 = tpu.matmul %57, %59, %cst_46 {dimension_numbers = #tpu.dot_dimension_numbers<[1], [0], [0], [1], [0, 0, 1, 1], [], []>} : vector<32x8xf32>, vector<8x16xf32>, vector<32x16xf32> -> vector<32x16xf32>
    %61 = arith.addf %49, %60 : vector<32x16xf32>
    %c5 = arith.constant 5 : index
    %c0_47 = arith.constant 0 : index
    %c0_48 = arith.constant 0 : index
    %62 = vector.load %arg0[%c5, %c0_47, %c0_48] : memref<16x32x64xf32, #tpu.memory_space<vmem>>, vector<1x32x64xf32>
    %63 = vector.shape_cast %62 : vector<1x32x64xf32> to vector<32x64xf32>
    %cst_49 = arith.constant dense<0.000000e+00> : vector<32x8xf32>
    %64 = tpu.matmul %63, %0, %cst_49 {dimension_numbers = #tpu.dot_dimension_numbers<[1], [0], [0], [1], [0, 0, 1, 1], [], []>} : vector<32x64xf32>, vector<64x8xf32>, vector<32x8xf32> -> vector<32x8xf32>
    %cst_50 = arith.constant 0.000000e+00 : f32
    %65 = vector.broadcast %cst_50 : f32 to vector<32x8xf32>
    %66 = arith.cmpf ogt, %64, %65 : vector<32x8xf32>
    %cst_51 = arith.constant 2.000000e-01 : f32
    %67 = vector.broadcast %cst_51 : f32 to vector<32x8xf32>
    %68 = arith.mulf %67, %64 : vector<32x8xf32>
    %69 = arith.select %66, %64, %68 : vector<32x8xi1>, vector<32x8xf32>
    %c5_52 = arith.constant 5 : index
    %c0_53 = arith.constant 0 : index
    %c0_54 = arith.constant 0 : index
    %70 = vector.load %arg2[%c5_52, %c0_53, %c0_54] : memref<16x8x16xf32, #tpu.memory_space<vmem>>, vector<1x8x16xf32>
    %71 = vector.shape_cast %70 : vector<1x8x16xf32> to vector<8x16xf32>
    %cst_55 = arith.constant dense<0.000000e+00> : vector<32x16xf32>
    %72 = tpu.matmul %69, %71, %cst_55 {dimension_numbers = #tpu.dot_dimension_numbers<[1], [0], [0], [1], [0, 0, 1, 1], [], []>} : vector<32x8xf32>, vector<8x16xf32>, vector<32x16xf32> -> vector<32x16xf32>
    %73 = arith.addf %61, %72 : vector<32x16xf32>
    %c6 = arith.constant 6 : index
    %c0_56 = arith.constant 0 : index
    %c0_57 = arith.constant 0 : index
    %74 = vector.load %arg0[%c6, %c0_56, %c0_57] : memref<16x32x64xf32, #tpu.memory_space<vmem>>, vector<1x32x64xf32>
    %75 = vector.shape_cast %74 : vector<1x32x64xf32> to vector<32x64xf32>
    %cst_58 = arith.constant dense<0.000000e+00> : vector<32x8xf32>
    %76 = tpu.matmul %75, %0, %cst_58 {dimension_numbers = #tpu.dot_dimension_numbers<[1], [0], [0], [1], [0, 0, 1, 1], [], []>} : vector<32x64xf32>, vector<64x8xf32>, vector<32x8xf32> -> vector<32x8xf32>
    %cst_59 = arith.constant 0.000000e+00 : f32
    %77 = vector.broadcast %cst_59 : f32 to vector<32x8xf32>
    %78 = arith.cmpf ogt, %76, %77 : vector<32x8xf32>
    %cst_60 = arith.constant 2.000000e-01 : f32
    %79 = vector.broadcast %cst_60 : f32 to vector<32x8xf32>
    %80 = arith.mulf %79, %76 : vector<32x8xf32>
    %81 = arith.select %78, %76, %80 : vector<32x8xi1>, vector<32x8xf32>
    %c6_61 = arith.constant 6 : index
    %c0_62 = arith.constant 0 : index
    %c0_63 = arith.constant 0 : index
    %82 = vector.load %arg2[%c6_61, %c0_62, %c0_63] : memref<16x8x16xf32, #tpu.memory_space<vmem>>, vector<1x8x16xf32>
    %83 = vector.shape_cast %82 : vector<1x8x16xf32> to vector<8x16xf32>
    %cst_64 = arith.constant dense<0.000000e+00> : vector<32x16xf32>
    %84 = tpu.matmul %81, %83, %cst_64 {dimension_numbers = #tpu.dot_dimension_numbers<[1], [0], [0], [1], [0, 0, 1, 1], [], []>} : vector<32x8xf32>, vector<8x16xf32>, vector<32x16xf32> -> vector<32x16xf32>
    %85 = arith.addf %73, %84 : vector<32x16xf32>
    %c7 = arith.constant 7 : index
    %c0_65 = arith.constant 0 : index
    %c0_66 = arith.constant 0 : index
    %86 = vector.load %arg0[%c7, %c0_65, %c0_66] : memref<16x32x64xf32, #tpu.memory_space<vmem>>, vector<1x32x64xf32>
    %87 = vector.shape_cast %86 : vector<1x32x64xf32> to vector<32x64xf32>
    %cst_67 = arith.constant dense<0.000000e+00> : vector<32x8xf32>
    %88 = tpu.matmul %87, %0, %cst_67 {dimension_numbers = #tpu.dot_dimension_numbers<[1], [0], [0], [1], [0, 0, 1, 1], [], []>} : vector<32x64xf32>, vector<64x8xf32>, vector<32x8xf32> -> vector<32x8xf32>
    %cst_68 = arith.constant 0.000000e+00 : f32
    %89 = vector.broadcast %cst_68 : f32 to vector<32x8xf32>
    %90 = arith.cmpf ogt, %88, %89 : vector<32x8xf32>
    %cst_69 = arith.constant 2.000000e-01 : f32
    %91 = vector.broadcast %cst_69 : f32 to vector<32x8xf32>
    %92 = arith.mulf %91, %88 : vector<32x8xf32>
    %93 = arith.select %90, %88, %92 : vector<32x8xi1>, vector<32x8xf32>
    %c7_70 = arith.constant 7 : index
    %c0_71 = arith.constant 0 : index
    %c0_72 = arith.constant 0 : index
    %94 = vector.load %arg2[%c7_70, %c0_71, %c0_72] : memref<16x8x16xf32, #tpu.memory_space<vmem>>, vector<1x8x16xf32>
    %95 = vector.shape_cast %94 : vector<1x8x16xf32> to vector<8x16xf32>
    %cst_73 = arith.constant dense<0.000000e+00> : vector<32x16xf32>
    %96 = tpu.matmul %93, %95, %cst_73 {dimension_numbers = #tpu.dot_dimension_numbers<[1], [0], [0], [1], [0, 0, 1, 1], [], []>} : vector<32x8xf32>, vector<8x16xf32>, vector<32x16xf32> -> vector<32x16xf32>
    %97 = arith.addf %85, %96 : vector<32x16xf32>
    %c8 = arith.constant 8 : index
    %c0_74 = arith.constant 0 : index
    %c0_75 = arith.constant 0 : index
    %98 = vector.load %arg0[%c8, %c0_74, %c0_75] : memref<16x32x64xf32, #tpu.memory_space<vmem>>, vector<1x32x64xf32>
    %99 = vector.shape_cast %98 : vector<1x32x64xf32> to vector<32x64xf32>
    %cst_76 = arith.constant dense<0.000000e+00> : vector<32x8xf32>
    %100 = tpu.matmul %99, %0, %cst_76 {dimension_numbers = #tpu.dot_dimension_numbers<[1], [0], [0], [1], [0, 0, 1, 1], [], []>} : vector<32x64xf32>, vector<64x8xf32>, vector<32x8xf32> -> vector<32x8xf32>
    %cst_77 = arith.constant 0.000000e+00 : f32
    %101 = vector.broadcast %cst_77 : f32 to vector<32x8xf32>
    %102 = arith.cmpf ogt, %100, %101 : vector<32x8xf32>
    %cst_78 = arith.constant 2.000000e-01 : f32
    %103 = vector.broadcast %cst_78 : f32 to vector<32x8xf32>
    %104 = arith.mulf %103, %100 : vector<32x8xf32>
    %105 = arith.select %102, %100, %104 : vector<32x8xi1>, vector<32x8xf32>
    %c8_79 = arith.constant 8 : index
    %c0_80 = arith.constant 0 : index
    %c0_81 = arith.constant 0 : index
    %106 = vector.load %arg2[%c8_79, %c0_80, %c0_81] : memref<16x8x16xf32, #tpu.memory_space<vmem>>, vector<1x8x16xf32>
    %107 = vector.shape_cast %106 : vector<1x8x16xf32> to vector<8x16xf32>
    %cst_82 = arith.constant dense<0.000000e+00> : vector<32x16xf32>
    %108 = tpu.matmul %105, %107, %cst_82 {dimension_numbers = #tpu.dot_dimension_numbers<[1], [0], [0], [1], [0, 0, 1, 1], [], []>} : vector<32x8xf32>, vector<8x16xf32>, vector<32x16xf32> -> vector<32x16xf32>
    %109 = arith.addf %97, %108 : vector<32x16xf32>
    %c9 = arith.constant 9 : index
    %c0_83 = arith.constant 0 : index
    %c0_84 = arith.constant 0 : index
    %110 = vector.load %arg0[%c9, %c0_83, %c0_84] : memref<16x32x64xf32, #tpu.memory_space<vmem>>, vector<1x32x64xf32>
    %111 = vector.shape_cast %110 : vector<1x32x64xf32> to vector<32x64xf32>
    %cst_85 = arith.constant dense<0.000000e+00> : vector<32x8xf32>
    %112 = tpu.matmul %111, %0, %cst_85 {dimension_numbers = #tpu.dot_dimension_numbers<[1], [0], [0], [1], [0, 0, 1, 1], [], []>} : vector<32x64xf32>, vector<64x8xf32>, vector<32x8xf32> -> vector<32x8xf32>
    %cst_86 = arith.constant 0.000000e+00 : f32
    %113 = vector.broadcast %cst_86 : f32 to vector<32x8xf32>
    %114 = arith.cmpf ogt, %112, %113 : vector<32x8xf32>
    %cst_87 = arith.constant 2.000000e-01 : f32
    %115 = vector.broadcast %cst_87 : f32 to vector<32x8xf32>
    %116 = arith.mulf %115, %112 : vector<32x8xf32>
    %117 = arith.select %114, %112, %116 : vector<32x8xi1>, vector<32x8xf32>
    %c9_88 = arith.constant 9 : index
    %c0_89 = arith.constant 0 : index
    %c0_90 = arith.constant 0 : index
    %118 = vector.load %arg2[%c9_88, %c0_89, %c0_90] : memref<16x8x16xf32, #tpu.memory_space<vmem>>, vector<1x8x16xf32>
    %119 = vector.shape_cast %118 : vector<1x8x16xf32> to vector<8x16xf32>
    %cst_91 = arith.constant dense<0.000000e+00> : vector<32x16xf32>
    %120 = tpu.matmul %117, %119, %cst_91 {dimension_numbers = #tpu.dot_dimension_numbers<[1], [0], [0], [1], [0, 0, 1, 1], [], []>} : vector<32x8xf32>, vector<8x16xf32>, vector<32x16xf32> -> vector<32x16xf32>
    %121 = arith.addf %109, %120 : vector<32x16xf32>
    %c10 = arith.constant 10 : index
    %c0_92 = arith.constant 0 : index
    %c0_93 = arith.constant 0 : index
    %122 = vector.load %arg0[%c10, %c0_92, %c0_93] : memref<16x32x64xf32, #tpu.memory_space<vmem>>, vector<1x32x64xf32>
    %123 = vector.shape_cast %122 : vector<1x32x64xf32> to vector<32x64xf32>
    %cst_94 = arith.constant dense<0.000000e+00> : vector<32x8xf32>
    %124 = tpu.matmul %123, %0, %cst_94 {dimension_numbers = #tpu.dot_dimension_numbers<[1], [0], [0], [1], [0, 0, 1, 1], [], []>} : vector<32x64xf32>, vector<64x8xf32>, vector<32x8xf32> -> vector<32x8xf32>
    %cst_95 = arith.constant 0.000000e+00 : f32
    %125 = vector.broadcast %cst_95 : f32 to vector<32x8xf32>
    %126 = arith.cmpf ogt, %124, %125 : vector<32x8xf32>
    %cst_96 = arith.constant 2.000000e-01 : f32
    %127 = vector.broadcast %cst_96 : f32 to vector<32x8xf32>
    %128 = arith.mulf %127, %124 : vector<32x8xf32>
    %129 = arith.select %126, %124, %128 : vector<32x8xi1>, vector<32x8xf32>
    %c10_97 = arith.constant 10 : index
    %c0_98 = arith.constant 0 : index
    %c0_99 = arith.constant 0 : index
    %130 = vector.load %arg2[%c10_97, %c0_98, %c0_99] : memref<16x8x16xf32, #tpu.memory_space<vmem>>, vector<1x8x16xf32>
    %131 = vector.shape_cast %130 : vector<1x8x16xf32> to vector<8x16xf32>
    %cst_100 = arith.constant dense<0.000000e+00> : vector<32x16xf32>
    %132 = tpu.matmul %129, %131, %cst_100 {dimension_numbers = #tpu.dot_dimension_numbers<[1], [0], [0], [1], [0, 0, 1, 1], [], []>} : vector<32x8xf32>, vector<8x16xf32>, vector<32x16xf32> -> vector<32x16xf32>
    %133 = arith.addf %121, %132 : vector<32x16xf32>
    %c11 = arith.constant 11 : index
    %c0_101 = arith.constant 0 : index
    %c0_102 = arith.constant 0 : index
    %134 = vector.load %arg0[%c11, %c0_101, %c0_102] : memref<16x32x64xf32, #tpu.memory_space<vmem>>, vector<1x32x64xf32>
    %135 = vector.shape_cast %134 : vector<1x32x64xf32> to vector<32x64xf32>
    %cst_103 = arith.constant dense<0.000000e+00> : vector<32x8xf32>
    %136 = tpu.matmul %135, %0, %cst_103 {dimension_numbers = #tpu.dot_dimension_numbers<[1], [0], [0], [1], [0, 0, 1, 1], [], []>} : vector<32x64xf32>, vector<64x8xf32>, vector<32x8xf32> -> vector<32x8xf32>
    %cst_104 = arith.constant 0.000000e+00 : f32
    %137 = vector.broadcast %cst_104 : f32 to vector<32x8xf32>
    %138 = arith.cmpf ogt, %136, %137 : vector<32x8xf32>
    %cst_105 = arith.constant 2.000000e-01 : f32
    %139 = vector.broadcast %cst_105 : f32 to vector<32x8xf32>
    %140 = arith.mulf %139, %136 : vector<32x8xf32>
    %141 = arith.select %138, %136, %140 : vector<32x8xi1>, vector<32x8xf32>
    %c11_106 = arith.constant 11 : index
    %c0_107 = arith.constant 0 : index
    %c0_108 = arith.constant 0 : index
    %142 = vector.load %arg2[%c11_106, %c0_107, %c0_108] : memref<16x8x16xf32, #tpu.memory_space<vmem>>, vector<1x8x16xf32>
    %143 = vector.shape_cast %142 : vector<1x8x16xf32> to vector<8x16xf32>
    %cst_109 = arith.constant dense<0.000000e+00> : vector<32x16xf32>
    %144 = tpu.matmul %141, %143, %cst_109 {dimension_numbers = #tpu.dot_dimension_numbers<[1], [0], [0], [1], [0, 0, 1, 1], [], []>} : vector<32x8xf32>, vector<8x16xf32>, vector<32x16xf32> -> vector<32x16xf32>
    %145 = arith.addf %133, %144 : vector<32x16xf32>
    %c12 = arith.constant 12 : index
    %c0_110 = arith.constant 0 : index
    %c0_111 = arith.constant 0 : index
    %146 = vector.load %arg0[%c12, %c0_110, %c0_111] : memref<16x32x64xf32, #tpu.memory_space<vmem>>, vector<1x32x64xf32>
    %147 = vector.shape_cast %146 : vector<1x32x64xf32> to vector<32x64xf32>
    %cst_112 = arith.constant dense<0.000000e+00> : vector<32x8xf32>
    %148 = tpu.matmul %147, %0, %cst_112 {dimension_numbers = #tpu.dot_dimension_numbers<[1], [0], [0], [1], [0, 0, 1, 1], [], []>} : vector<32x64xf32>, vector<64x8xf32>, vector<32x8xf32> -> vector<32x8xf32>
    %cst_113 = arith.constant 0.000000e+00 : f32
    %149 = vector.broadcast %cst_113 : f32 to vector<32x8xf32>
    %150 = arith.cmpf ogt, %148, %149 : vector<32x8xf32>
    %cst_114 = arith.constant 2.000000e-01 : f32
    %151 = vector.broadcast %cst_114 : f32 to vector<32x8xf32>
    %152 = arith.mulf %151, %148 : vector<32x8xf32>
    %153 = arith.select %150, %148, %152 : vector<32x8xi1>, vector<32x8xf32>
    %c12_115 = arith.constant 12 : index
    %c0_116 = arith.constant 0 : index
    %c0_117 = arith.constant 0 : index
    %154 = vector.load %arg2[%c12_115, %c0_116, %c0_117] : memref<16x8x16xf32, #tpu.memory_space<vmem>>, vector<1x8x16xf32>
    %155 = vector.shape_cast %154 : vector<1x8x16xf32> to vector<8x16xf32>
    %cst_118 = arith.constant dense<0.000000e+00> : vector<32x16xf32>
    %156 = tpu.matmul %153, %155, %cst_118 {dimension_numbers = #tpu.dot_dimension_numbers<[1], [0], [0], [1], [0, 0, 1, 1], [], []>} : vector<32x8xf32>, vector<8x16xf32>, vector<32x16xf32> -> vector<32x16xf32>
    %157 = arith.addf %145, %156 : vector<32x16xf32>
    %c13 = arith.constant 13 : index
    %c0_119 = arith.constant 0 : index
    %c0_120 = arith.constant 0 : index
    %158 = vector.load %arg0[%c13, %c0_119, %c0_120] : memref<16x32x64xf32, #tpu.memory_space<vmem>>, vector<1x32x64xf32>
    %159 = vector.shape_cast %158 : vector<1x32x64xf32> to vector<32x64xf32>
    %cst_121 = arith.constant dense<0.000000e+00> : vector<32x8xf32>
    %160 = tpu.matmul %159, %0, %cst_121 {dimension_numbers = #tpu.dot_dimension_numbers<[1], [0], [0], [1], [0, 0, 1, 1], [], []>} : vector<32x64xf32>, vector<64x8xf32>, vector<32x8xf32> -> vector<32x8xf32>
    %cst_122 = arith.constant 0.000000e+00 : f32
    %161 = vector.broadcast %cst_122 : f32 to vector<32x8xf32>
    %162 = arith.cmpf ogt, %160, %161 : vector<32x8xf32>
    %cst_123 = arith.constant 2.000000e-01 : f32
    %163 = vector.broadcast %cst_123 : f32 to vector<32x8xf32>
    %164 = arith.mulf %163, %160 : vector<32x8xf32>
    %165 = arith.select %162, %160, %164 : vector<32x8xi1>, vector<32x8xf32>
    %c13_124 = arith.constant 13 : index
    %c0_125 = arith.constant 0 : index
    %c0_126 = arith.constant 0 : index
    %166 = vector.load %arg2[%c13_124, %c0_125, %c0_126] : memref<16x8x16xf32, #tpu.memory_space<vmem>>, vector<1x8x16xf32>
    %167 = vector.shape_cast %166 : vector<1x8x16xf32> to vector<8x16xf32>
    %cst_127 = arith.constant dense<0.000000e+00> : vector<32x16xf32>
    %168 = tpu.matmul %165, %167, %cst_127 {dimension_numbers = #tpu.dot_dimension_numbers<[1], [0], [0], [1], [0, 0, 1, 1], [], []>} : vector<32x8xf32>, vector<8x16xf32>, vector<32x16xf32> -> vector<32x16xf32>
    %169 = arith.addf %157, %168 : vector<32x16xf32>
    %c14 = arith.constant 14 : index
    %c0_128 = arith.constant 0 : index
    %c0_129 = arith.constant 0 : index
    %170 = vector.load %arg0[%c14, %c0_128, %c0_129] : memref<16x32x64xf32, #tpu.memory_space<vmem>>, vector<1x32x64xf32>
    %171 = vector.shape_cast %170 : vector<1x32x64xf32> to vector<32x64xf32>
    %cst_130 = arith.constant dense<0.000000e+00> : vector<32x8xf32>
    %172 = tpu.matmul %171, %0, %cst_130 {dimension_numbers = #tpu.dot_dimension_numbers<[1], [0], [0], [1], [0, 0, 1, 1], [], []>} : vector<32x64xf32>, vector<64x8xf32>, vector<32x8xf32> -> vector<32x8xf32>
    %cst_131 = arith.constant 0.000000e+00 : f32
    %173 = vector.broadcast %cst_131 : f32 to vector<32x8xf32>
    %174 = arith.cmpf ogt, %172, %173 : vector<32x8xf32>
    %cst_132 = arith.constant 2.000000e-01 : f32
    %175 = vector.broadcast %cst_132 : f32 to vector<32x8xf32>
    %176 = arith.mulf %175, %172 : vector<32x8xf32>
    %177 = arith.select %174, %172, %176 : vector<32x8xi1>, vector<32x8xf32>
    %c14_133 = arith.constant 14 : index
    %c0_134 = arith.constant 0 : index
    %c0_135 = arith.constant 0 : index
    %178 = vector.load %arg2[%c14_133, %c0_134, %c0_135] : memref<16x8x16xf32, #tpu.memory_space<vmem>>, vector<1x8x16xf32>
    %179 = vector.shape_cast %178 : vector<1x8x16xf32> to vector<8x16xf32>
    %cst_136 = arith.constant dense<0.000000e+00> : vector<32x16xf32>
    %180 = tpu.matmul %177, %179, %cst_136 {dimension_numbers = #tpu.dot_dimension_numbers<[1], [0], [0], [1], [0, 0, 1, 1], [], []>} : vector<32x8xf32>, vector<8x16xf32>, vector<32x16xf32> -> vector<32x16xf32>
    %181 = arith.addf %169, %180 : vector<32x16xf32>
    %c15 = arith.constant 15 : index
    %c0_137 = arith.constant 0 : index
    %c0_138 = arith.constant 0 : index
    %182 = vector.load %arg0[%c15, %c0_137, %c0_138] : memref<16x32x64xf32, #tpu.memory_space<vmem>>, vector<1x32x64xf32>
    %183 = vector.shape_cast %182 : vector<1x32x64xf32> to vector<32x64xf32>
    %cst_139 = arith.constant dense<0.000000e+00> : vector<32x8xf32>
    %184 = tpu.matmul %183, %0, %cst_139 {dimension_numbers = #tpu.dot_dimension_numbers<[1], [0], [0], [1], [0, 0, 1, 1], [], []>} : vector<32x64xf32>, vector<64x8xf32>, vector<32x8xf32> -> vector<32x8xf32>
    %cst_140 = arith.constant 0.000000e+00 : f32
    %185 = vector.broadcast %cst_140 : f32 to vector<32x8xf32>
    %186 = arith.cmpf ogt, %184, %185 : vector<32x8xf32>
    %cst_141 = arith.constant 2.000000e-01 : f32
    %187 = vector.broadcast %cst_141 : f32 to vector<32x8xf32>
    %188 = arith.mulf %187, %184 : vector<32x8xf32>
    %189 = arith.select %186, %184, %188 : vector<32x8xi1>, vector<32x8xf32>
    %c15_142 = arith.constant 15 : index
    %c0_143 = arith.constant 0 : index
    %c0_144 = arith.constant 0 : index
    %190 = vector.load %arg2[%c15_142, %c0_143, %c0_144] : memref<16x8x16xf32, #tpu.memory_space<vmem>>, vector<1x8x16xf32>
    %191 = vector.shape_cast %190 : vector<1x8x16xf32> to vector<8x16xf32>
    %cst_145 = arith.constant dense<0.000000e+00> : vector<32x16xf32>
    %192 = tpu.matmul %189, %191, %cst_145 {dimension_numbers = #tpu.dot_dimension_numbers<[1], [0], [0], [1], [0, 0, 1, 1], [], []>} : vector<32x8xf32>, vector<8x16xf32>, vector<32x16xf32> -> vector<32x16xf32>
    %193 = arith.addf %181, %192 : vector<32x16xf32>
    %c0_146 = arith.constant 0 : index
    %c0_147 = arith.constant 0 : index
    %194 = vector.load %arg3[%c0_146, %c0_147] : memref<1x16xf32, #tpu.memory_space<vmem>>, vector<1x16xf32>
    %195 = vector.broadcast %194 : vector<1x16xf32> to vector<32x16xf32>
    %196 = arith.addf %193, %195 : vector<32x16xf32>
    %cst_148 = arith.constant 0.000000e+00 : f32
    %197 = vector.broadcast %cst_148 : f32 to vector<32x16xf32>
    %198 = arith.cmpf ogt, %196, %197 : vector<32x16xf32>
    %cst_149 = arith.constant 2.000000e-01 : f32
    %199 = vector.broadcast %cst_149 : f32 to vector<32x16xf32>
    %200 = arith.mulf %199, %196 : vector<32x16xf32>
    %201 = arith.select %198, %196, %200 : vector<32x16xi1>, vector<32x16xf32>
    %cst_150 = arith.constant 0.000000e+00 : f32
    %202 = vector.broadcast %cst_150 : f32 to vector<32x16xf32>
    %203 = arith.subf %202, %201 : vector<32x16xf32>
    %204 = math.exp %203 : vector<32x16xf32>
    %cst_151 = arith.constant 1.000000e+00 : f32
    %205 = vector.broadcast %cst_151 : f32 to vector<32x16xf32>
    %206 = arith.addf %205, %204 : vector<32x16xf32>
    %cst_152 = arith.constant 1.000000e+00 : f32
    %207 = vector.broadcast %cst_152 : f32 to vector<32x16xf32>
    %208 = arith.divf %207, %206 : vector<32x16xf32>
    %209 = arith.mulf %201, %208 : vector<32x16xf32>
    %c0_153 = arith.constant 0 : index
    %c0_154 = arith.constant 0 : index
    %210 = vector.load %arg9[%c0_153, %c0_154] : memref<32x16xf32, #tpu.memory_space<vmem>>, vector<32x16xf32>
    tpu.vector_store %arg9[%c0_153, %c0_154], %209 {strides = array<i32>} : memref<32x16xf32, #tpu.memory_space<vmem>>, vector<32x16xf32>,
    %cst_155 = arith.constant 0.000000e+00 : f32
    %211 = vector.broadcast %cst_155 : f32 to vector<2x32xf32>
    %c0_156 = arith.constant 0 : index
    %c0_157 = arith.constant 0 : index
    %212 = vector.load %arg9[%c0_156, %c0_157] : memref<32x16xf32, #tpu.memory_space<vmem>>, vector<2x16xf32>
    %c0_158 = arith.constant 0 : index
    %c0_159 = arith.constant 0 : index
    %c0_160 = arith.constant 0 : index
    %213 = vector.load %arg4[%c0_158, %c0_159, %c0_160] : memref<16x16x32xf32, #tpu.memory_space<vmem>>, vector<1x16x32xf32>
    %214 = vector.shape_cast %213 : vector<1x16x32xf32> to vector<16x32xf32>
    %cst_161 = arith.constant dense<0.000000e+00> : vector<2x32xf32>
    %215 = tpu.matmul %212, %214, %cst_161 {dimension_numbers = #tpu.dot_dimension_numbers<[1], [0], [0], [1], [0, 0, 1, 1], [], []>} : vector<2x16xf32>, vector<16x32xf32>, vector<2x32xf32> -> vector<2x32xf32>
    %216 = arith.addf %211, %215 : vector<2x32xf32>
    %c2_162 = arith.constant 2 : index
    %c0_163 = arith.constant 0 : index
    %217 = vector.load %arg9[%c2_162, %c0_163] : memref<32x16xf32, #tpu.memory_space<vmem>>, vector<2x16xf32>
    %c1_164 = arith.constant 1 : index
    %c0_165 = arith.constant 0 : index
    %c0_166 = arith.constant 0 : index
    %218 = vector.load %arg4[%c1_164, %c0_165, %c0_166] : memref<16x16x32xf32, #tpu.memory_space<vmem>>, vector<1x16x32xf32>
    %219 = vector.shape_cast %218 : vector<1x16x32xf32> to vector<16x32xf32>
    %cst_167 = arith.constant dense<0.000000e+00> : vector<2x32xf32>
    %220 = tpu.matmul %217, %219, %cst_167 {dimension_numbers = #tpu.dot_dimension_numbers<[1], [0], [0], [1], [0, 0, 1, 1], [], []>} : vector<2x16xf32>, vector<16x32xf32>, vector<2x32xf32> -> vector<2x32xf32>
    %221 = arith.addf %216, %220 : vector<2x32xf32>
    %c4_168 = arith.constant 4 : index
    %c0_169 = arith.constant 0 : index
    %222 = vector.load %arg9[%c4_168, %c0_169] : memref<32x16xf32, #tpu.memory_space<vmem>>, vector<2x16xf32>
    %c2_170 = arith.constant 2 : index
    %c0_171 = arith.constant 0 : index
    %c0_172 = arith.constant 0 : index
    %223 = vector.load %arg4[%c2_170, %c0_171, %c0_172] : memref<16x16x32xf32, #tpu.memory_space<vmem>>, vector<1x16x32xf32>
    %224 = vector.shape_cast %223 : vector<1x16x32xf32> to vector<16x32xf32>
    %cst_173 = arith.constant dense<0.000000e+00> : vector<2x32xf32>
    %225 = tpu.matmul %222, %224, %cst_173 {dimension_numbers = #tpu.dot_dimension_numbers<[1], [0], [0], [1], [0, 0, 1, 1], [], []>} : vector<2x16xf32>, vector<16x32xf32>, vector<2x32xf32> -> vector<2x32xf32>
    %226 = arith.addf %221, %225 : vector<2x32xf32>
    %c6_174 = arith.constant 6 : index
    %c0_175 = arith.constant 0 : index
    %227 = vector.load %arg9[%c6_174, %c0_175] : memref<32x16xf32, #tpu.memory_space<vmem>>, vector<2x16xf32>
    %c3_176 = arith.constant 3 : index
    %c0_177 = arith.constant 0 : index
    %c0_178 = arith.constant 0 : index
    %228 = vector.load %arg4[%c3_176, %c0_177, %c0_178] : memref<16x16x32xf32, #tpu.memory_space<vmem>>, vector<1x16x32xf32>
    %229 = vector.shape_cast %228 : vector<1x16x32xf32> to vector<16x32xf32>
    %cst_179 = arith.constant dense<0.000000e+00> : vector<2x32xf32>
    %230 = tpu.matmul %227, %229, %cst_179 {dimension_numbers = #tpu.dot_dimension_numbers<[1], [0], [0], [1], [0, 0, 1, 1], [], []>} : vector<2x16xf32>, vector<16x32xf32>, vector<2x32xf32> -> vector<2x32xf32>
    %231 = arith.addf %226, %230 : vector<2x32xf32>
    %c8_180 = arith.constant 8 : index
    %c0_181 = arith.constant 0 : index
    %232 = vector.load %arg9[%c8_180, %c0_181] : memref<32x16xf32, #tpu.memory_space<vmem>>, vector<2x16xf32>
    %c4_182 = arith.constant 4 : index
    %c0_183 = arith.constant 0 : index
    %c0_184 = arith.constant 0 : index
    %233 = vector.load %arg4[%c4_182, %c0_183, %c0_184] : memref<16x16x32xf32, #tpu.memory_space<vmem>>, vector<1x16x32xf32>
    %234 = vector.shape_cast %233 : vector<1x16x32xf32> to vector<16x32xf32>
    %cst_185 = arith.constant dense<0.000000e+00> : vector<2x32xf32>
    %235 = tpu.matmul %232, %234, %cst_185 {dimension_numbers = #tpu.dot_dimension_numbers<[1], [0], [0], [1], [0, 0, 1, 1], [], []>} : vector<2x16xf32>, vector<16x32xf32>, vector<2x32xf32> -> vector<2x32xf32>
    %236 = arith.addf %231, %235 : vector<2x32xf32>
    %c10_186 = arith.constant 10 : index
    %c0_187 = arith.constant 0 : index
    %237 = vector.load %arg9[%c10_186, %c0_187] : memref<32x16xf32, #tpu.memory_space<vmem>>, vector<2x16xf32>
    %c5_188 = arith.constant 5 : index
    %c0_189 = arith.constant 0 : index
    %c0_190 = arith.constant 0 : index
    %238 = vector.load %arg4[%c5_188, %c0_189, %c0_190] : memref<16x16x32xf32, #tpu.memory_space<vmem>>, vector<1x16x32xf32>
    %239 = vector.shape_cast %238 : vector<1x16x32xf32> to vector<16x32xf32>
    %cst_191 = arith.constant dense<0.000000e+00> : vector<2x32xf32>
    %240 = tpu.matmul %237, %239, %cst_191 {dimension_numbers = #tpu.dot_dimension_numbers<[1], [0], [0], [1], [0, 0, 1, 1], [], []>} : vector<2x16xf32>, vector<16x32xf32>, vector<2x32xf32> -> vector<2x32xf32>
    %241 = arith.addf %236, %240 : vector<2x32xf32>
    %c12_192 = arith.constant 12 : index
    %c0_193 = arith.constant 0 : index
    %242 = vector.load %arg9[%c12_192, %c0_193] : memref<32x16xf32, #tpu.memory_space<vmem>>, vector<2x16xf32>
    %c6_194 = arith.constant 6 : index
    %c0_195 = arith.constant 0 : index
    %c0_196 = arith.constant 0 : index
    %243 = vector.load %arg4[%c6_194, %c0_195, %c0_196] : memref<16x16x32xf32, #tpu.memory_space<vmem>>, vector<1x16x32xf32>
    %244 = vector.shape_cast %243 : vector<1x16x32xf32> to vector<16x32xf32>
    %cst_197 = arith.constant dense<0.000000e+00> : vector<2x32xf32>
    %245 = tpu.matmul %242, %244, %cst_197 {dimension_numbers = #tpu.dot_dimension_numbers<[1], [0], [0], [1], [0, 0, 1, 1], [], []>} : vector<2x16xf32>, vector<16x32xf32>, vector<2x32xf32> -> vector<2x32xf32>
    %246 = arith.addf %241, %245 : vector<2x32xf32>
    %c14_198 = arith.constant 14 : index
    %c0_199 = arith.constant 0 : index
    %247 = vector.load %arg9[%c14_198, %c0_199] : memref<32x16xf32, #tpu.memory_space<vmem>>, vector<2x16xf32>
    %c7_200 = arith.constant 7 : index
    %c0_201 = arith.constant 0 : index
    %c0_202 = arith.constant 0 : index
    %248 = vector.load %arg4[%c7_200, %c0_201, %c0_202] : memref<16x16x32xf32, #tpu.memory_space<vmem>>, vector<1x16x32xf32>
    %249 = vector.shape_cast %248 : vector<1x16x32xf32> to vector<16x32xf32>
    %cst_203 = arith.constant dense<0.000000e+00> : vector<2x32xf32>
    %250 = tpu.matmul %247, %249, %cst_203 {dimension_numbers = #tpu.dot_dimension_numbers<[1], [0], [0], [1], [0, 0, 1, 1], [], []>} : vector<2x16xf32>, vector<16x32xf32>, vector<2x32xf32> -> vector<2x32xf32>
    %251 = arith.addf %246, %250 : vector<2x32xf32>
    %c16 = arith.constant 16 : index
    %c0_204 = arith.constant 0 : index
    %252 = vector.load %arg9[%c16, %c0_204] : memref<32x16xf32, #tpu.memory_space<vmem>>, vector<2x16xf32>
    %c8_205 = arith.constant 8 : index
    %c0_206 = arith.constant 0 : index
    %c0_207 = arith.constant 0 : index
    %253 = vector.load %arg4[%c8_205, %c0_206, %c0_207] : memref<16x16x32xf32, #tpu.memory_space<vmem>>, vector<1x16x32xf32>
    %254 = vector.shape_cast %253 : vector<1x16x32xf32> to vector<16x32xf32>
    %cst_208 = arith.constant dense<0.000000e+00> : vector<2x32xf32>
    %255 = tpu.matmul %252, %254, %cst_208 {dimension_numbers = #tpu.dot_dimension_numbers<[1], [0], [0], [1], [0, 0, 1, 1], [], []>} : vector<2x16xf32>, vector<16x32xf32>, vector<2x32xf32> -> vector<2x32xf32>
    %256 = arith.addf %251, %255 : vector<2x32xf32>
    %c18 = arith.constant 18 : index
    %c0_209 = arith.constant 0 : index
    %257 = vector.load %arg9[%c18, %c0_209] : memref<32x16xf32, #tpu.memory_space<vmem>>, vector<2x16xf32>
    %c9_210 = arith.constant 9 : index
    %c0_211 = arith.constant 0 : index
    %c0_212 = arith.constant 0 : index
    %258 = vector.load %arg4[%c9_210, %c0_211, %c0_212] : memref<16x16x32xf32, #tpu.memory_space<vmem>>, vector<1x16x32xf32>
    %259 = vector.shape_cast %258 : vector<1x16x32xf32> to vector<16x32xf32>
    %cst_213 = arith.constant dense<0.000000e+00> : vector<2x32xf32>
    %260 = tpu.matmul %257, %259, %cst_213 {dimension_numbers = #tpu.dot_dimension_numbers<[1], [0], [0], [1], [0, 0, 1, 1], [], []>} : vector<2x16xf32>, vector<16x32xf32>, vector<2x32xf32> -> vector<2x32xf32>
    %261 = arith.addf %256, %260 : vector<2x32xf32>
    %c20 = arith.constant 20 : index
    %c0_214 = arith.constant 0 : index
    %262 = vector.load %arg9[%c20, %c0_214] : memref<32x16xf32, #tpu.memory_space<vmem>>, vector<2x16xf32>
    %c10_215 = arith.constant 10 : index
    %c0_216 = arith.constant 0 : index
    %c0_217 = arith.constant 0 : index
    %263 = vector.load %arg4[%c10_215, %c0_216, %c0_217] : memref<16x16x32xf32, #tpu.memory_space<vmem>>, vector<1x16x32xf32>
    %264 = vector.shape_cast %263 : vector<1x16x32xf32> to vector<16x32xf32>
    %cst_218 = arith.constant dense<0.000000e+00> : vector<2x32xf32>
    %265 = tpu.matmul %262, %264, %cst_218 {dimension_numbers = #tpu.dot_dimension_numbers<[1], [0], [0], [1], [0, 0, 1, 1], [], []>} : vector<2x16xf32>, vector<16x32xf32>, vector<2x32xf32> -> vector<2x32xf32>
    %266 = arith.addf %261, %265 : vector<2x32xf32>
    %c22 = arith.constant 22 : index
    %c0_219 = arith.constant 0 : index
    %267 = vector.load %arg9[%c22, %c0_219] : memref<32x16xf32, #tpu.memory_space<vmem>>, vector<2x16xf32>
    %c11_220 = arith.constant 11 : index
    %c0_221 = arith.constant 0 : index
    %c0_222 = arith.constant 0 : index
    %268 = vector.load %arg4[%c11_220, %c0_221, %c0_222] : memref<16x16x32xf32, #tpu.memory_space<vmem>>, vector<1x16x32xf32>
    %269 = vector.shape_cast %268 : vector<1x16x32xf32> to vector<16x32xf32>
    %cst_223 = arith.constant dense<0.000000e+00> : vector<2x32xf32>
    %270 = tpu.matmul %267, %269, %cst_223 {dimension_numbers = #tpu.dot_dimension_numbers<[1], [0], [0], [1], [0, 0, 1, 1], [], []>} : vector<2x16xf32>, vector<16x32xf32>, vector<2x32xf32> -> vector<2x32xf32>
    %271 = arith.addf %266, %270 : vector<2x32xf32>
    %c24 = arith.constant 24 : index
    %c0_224 = arith.constant 0 : index
    %272 = vector.load %arg9[%c24, %c0_224] : memref<32x16xf32, #tpu.memory_space<vmem>>, vector<2x16xf32>
    %c12_225 = arith.constant 12 : index
    %c0_226 = arith.constant 0 : index
    %c0_227 = arith.constant 0 : index
    %273 = vector.load %arg4[%c12_225, %c0_226, %c0_227] : memref<16x16x32xf32, #tpu.memory_space<vmem>>, vector<1x16x32xf32>
    %274 = vector.shape_cast %273 : vector<1x16x32xf32> to vector<16x32xf32>
    %cst_228 = arith.constant dense<0.000000e+00> : vector<2x32xf32>
    %275 = tpu.matmul %272, %274, %cst_228 {dimension_numbers = #tpu.dot_dimension_numbers<[1], [0], [0], [1], [0, 0, 1, 1], [], []>} : vector<2x16xf32>, vector<16x32xf32>, vector<2x32xf32> -> vector<2x32xf32>
    %276 = arith.addf %271, %275 : vector<2x32xf32>
    %c26 = arith.constant 26 : index
    %c0_229 = arith.constant 0 : index
    %277 = vector.load %arg9[%c26, %c0_229] : memref<32x16xf32, #tpu.memory_space<vmem>>, vector<2x16xf32>
    %c13_230 = arith.constant 13 : index
    %c0_231 = arith.constant 0 : index
    %c0_232 = arith.constant 0 : index
    %278 = vector.load %arg4[%c13_230, %c0_231, %c0_232] : memref<16x16x32xf32, #tpu.memory_space<vmem>>, vector<1x16x32xf32>
    %279 = vector.shape_cast %278 : vector<1x16x32xf32> to vector<16x32xf32>
    %cst_233 = arith.constant dense<0.000000e+00> : vector<2x32xf32>
    %280 = tpu.matmul %277, %279, %cst_233 {dimension_numbers = #tpu.dot_dimension_numbers<[1], [0], [0], [1], [0, 0, 1, 1], [], []>} : vector<2x16xf32>, vector<16x32xf32>, vector<2x32xf32> -> vector<2x32xf32>
    %281 = arith.addf %276, %280 : vector<2x32xf32>
    %c28 = arith.constant 28 : index
    %c0_234 = arith.constant 0 : index
    %282 = vector.load %arg9[%c28, %c0_234] : memref<32x16xf32, #tpu.memory_space<vmem>>, vector<2x16xf32>
    %c14_235 = arith.constant 14 : index
    %c0_236 = arith.constant 0 : index
    %c0_237 = arith.constant 0 : index
    %283 = vector.load %arg4[%c14_235, %c0_236, %c0_237] : memref<16x16x32xf32, #tpu.memory_space<vmem>>, vector<1x16x32xf32>
    %284 = vector.shape_cast %283 : vector<1x16x32xf32> to vector<16x32xf32>
    %cst_238 = arith.constant dense<0.000000e+00> : vector<2x32xf32>
    %285 = tpu.matmul %282, %284, %cst_238 {dimension_numbers = #tpu.dot_dimension_numbers<[1], [0], [0], [1], [0, 0, 1, 1], [], []>} : vector<2x16xf32>, vector<16x32xf32>, vector<2x32xf32> -> vector<2x32xf32>
    %286 = arith.addf %281, %285 : vector<2x32xf32>
    %c30 = arith.constant 30 : index
    %c0_239 = arith.constant 0 : index
    %287 = vector.load %arg9[%c30, %c0_239] : memref<32x16xf32, #tpu.memory_space<vmem>>, vector<2x16xf32>
    %c15_240 = arith.constant 15 : index
    %c0_241 = arith.constant 0 : index
    %c0_242 = arith.constant 0 : index
    %288 = vector.load %arg4[%c15_240, %c0_241, %c0_242] : memref<16x16x32xf32, #tpu.memory_space<vmem>>, vector<1x16x32xf32>
    %289 = vector.shape_cast %288 : vector<1x16x32xf32> to vector<16x32xf32>
    %cst_243 = arith.constant dense<0.000000e+00> : vector<2x32xf32>
    %290 = tpu.matmul %287, %289, %cst_243 {dimension_numbers = #tpu.dot_dimension_numbers<[1], [0], [0], [1], [0, 0, 1, 1], [], []>} : vector<2x16xf32>, vector<16x32xf32>, vector<2x32xf32> -> vector<2x32xf32>
    %291 = arith.addf %286, %290 : vector<2x32xf32>
    %c0_244 = arith.constant 0 : index
    %c0_245 = arith.constant 0 : index
    %292 = vector.load %arg5[%c0_244, %c0_245] : memref<1x32xf32, #tpu.memory_space<vmem>>, vector<1x32xf32>
    %293 = vector.broadcast %292 : vector<1x32xf32> to vector<2x32xf32>
    %294 = arith.addf %291, %293 : vector<2x32xf32>
    %cst_246 = arith.constant 0.000000e+00 : f32
    %295 = vector.broadcast %cst_246 : f32 to vector<2x32xf32>
    %296 = arith.subf %295, %294 : vector<2x32xf32>
    %297 = math.exp %296 : vector<2x32xf32>
    %cst_247 = arith.constant 1.000000e+00 : f32
    %298 = vector.broadcast %cst_247 : f32 to vector<2x32xf32>
    %299 = arith.addf %298, %297 : vector<2x32xf32>
    %cst_248 = arith.constant 1.000000e+00 : f32
    %300 = vector.broadcast %cst_248 : f32 to vector<2x32xf32>
    %301 = arith.divf %300, %299 : vector<2x32xf32>
    %cst_249 = arith.constant 1.000000e+00 : f32
    %302 = vector.broadcast %cst_249 : f32 to vector<2x32xf32>
    %303 = arith.subf %302, %301 : vector<2x32xf32>
    %304 = arith.mulf %294, %303 : vector<2x32xf32>
    %cst_250 = arith.constant 1.000000e+00 : f32
    %305 = vector.broadcast %cst_250 : f32 to vector<2x32xf32>
    %306 = arith.addf %305, %304 : vector<2x32xf32>
    %307 = arith.mulf %301, %306 : vector<2x32xf32>
    %c0_251 = arith.constant 0 : index
    %c0_252 = arith.constant 0 : index
    %308 = vector.load %arg6[%c0_251, %c0_252] : memref<1x32xf32, #tpu.memory_space<vmem>>, vector<1x32xf32>
    %309 = vector.broadcast %308 : vector<1x32xf32> to vector<2x32xf32>
    %310 = arith.mulf %307, %309 : vector<2x32xf32>
    %cst_253 = arith.constant dense<0.000000e+00> : vector<2xf32>
    %311 = vector.multi_reduction <add>, %310, %cst_253 [1] : vector<2x32xf32> to vector<2xf32>
    %312 = vector.shape_cast %311 : vector<2xf32> to vector<2x1xf32>
    %c0_254 = arith.constant 0 : index
    %c0_255 = arith.constant 0 : index
    %313 = vector.load %arg7[%c0_254, %c0_255] : memref<1x1xf32, #tpu.memory_space<vmem>>, vector<1x1xf32>
    %314 = vector.broadcast %313 : vector<1x1xf32> to vector<2x1xf32>
    %315 = arith.addf %312, %314 : vector<2x1xf32>
    %c0_256 = arith.constant 0 : index
    %c0_257 = arith.constant 0 : index
    %316 = vector.load %arg8[%c0_256, %c0_257] : memref<2x1xf32, #tpu.memory_space<vmem>>, vector<2x1xf32>
    tpu.vector_store %arg8[%c0_256, %c0_257], %315 {strides = array<i32>} : memref<2x1xf32, #tpu.memory_space<vmem>>, vector<2x1xf32>,
    return
  }
}

</mosaic_0001>

<llo_original>
// kernel: value_cnn_forward.1
$region0: #{value_cnn_forward.1}
  #allocation0 [shape = 'u32[]', space=smem, size = 0x4, offset = 0x4, fixed_abs, tag = 'smem constant byte address 0x4 - core index']
  #allocation1 [shape = 'u32[144,128]{1,0:T(1,128)}', space=vmem, size = 0x12000, scoped, tag = 'internal scratch']
  #allocation2 [shape = 'f32[32,16]{1,0:T(8,128)}', space=vmem, size = 0x4000, scoped, tag = 'scratch operand']
  #allocation3 [shape = 'f32[1,1]{1,0:T(1,128)S(1)}', space=vmem, size = 0x200, scoped, tag = 'scoped memory for value_cnn_forward.1']
  %s0 = inlined_call_operand.vmem [shape: f32[16,32,64], index: 0, kind: input, shape index: {}]
  %s1 = inlined_call_operand.vmem [shape: f32[64,8], index: 1, kind: input, shape index: {}]
  %s2 = inlined_call_operand.vmem [shape: f32[16,8,16], index: 2, kind: input, shape index: {}]
  %s3 = inlined_call_operand.vmem [shape: f32[1,16], index: 3, kind: input, shape index: {}]
  %s4 = inlined_call_operand.vmem [shape: f32[16,16,32], index: 4, kind: input, shape index: {}]
  %s5 = inlined_call_operand.vmem [shape: f32[1,32], index: 5, kind: input, shape index: {}]
  %s6 = inlined_call_operand.vmem [shape: f32[1,32], index: 6, kind: input, shape index: {}]
  %s7 = inlined_call_operand.<no memory space> [shape: f32[1,1], index: 7, kind: input, shape index: {}]
  %s8 = inlined_call_operand.vmem [shape: f32[2,1], index: 8, kind: output, shape index: {}]
  %s9 = sld [smem:[#allocation0]]
  $region42: #{value_cnn_forward.1} parent=0
    _
  %s11 = ssub.s32 1, %s9
  %s12 = scalar_select 0, %s11, %s9
  %v13 = vstv %s7
  %14 = vst [vmem:[#allocation3] sm:$0x1] %v13
  // Predicated region
  $region2: #{value_cnn_forward.1} parent=0 // pred_check
    _
  $region3: #{value_cnn_forward.1} parent=0 // pred_check_branch
    %16 = sbr.rel (0) target = $region5
  $region4: #{value_cnn_forward.1} parent=0 // pred_region
    _
  $region5: #{value_cnn_forward.1} parent=0 // pred_fallthru
    _
  // Predicated region
  $region6: #{value_cnn_forward.1} parent=0 // pred_check
    _
  $region7: #{value_cnn_forward.1} parent=0 // pred_check_branch
    %18 = sbr.rel (0) target = $region9
  $region8: #{value_cnn_forward.1} parent=0 // pred_region
    _
  $region9: #{value_cnn_forward.1} parent=0 // pred_fallthru
    _
  // Predicated region
  $region10: #{value_cnn_forward.1} parent=0 // pred_check
    _
  $region11: #{value_cnn_forward.1} parent=0 // pred_check_branch
    %20 = sbr.rel (0) target = $region13
  $region12: #{value_cnn_forward.1} parent=0 // pred_region
    _
  $region13: #{value_cnn_forward.1} parent=0 // pred_fallthru
    _
  // Predicated region
  $region14: #{value_cnn_forward.1} parent=0 // pred_check
    _
  $region15: #{value_cnn_forward.1} parent=0 // pred_check_branch
    %22 = sbr.rel (0) target = $region17
  $region16: #{value_cnn_forward.1} parent=0 // pred_region
    _
  $region17: #{value_cnn_forward.1} parent=0 // pred_fallthru
    _
  // Predicated region
  $region18: #{value_cnn_forward.1} parent=0 // pred_check
    _
  $region19: #{value_cnn_forward.1} parent=0 // pred_check_branch
    %24 = sbr.rel (0) target = $region21
  $region20: #{value_cnn_forward.1} parent=0 // pred_region
    _
  $region21: #{value_cnn_forward.1} parent=0 // pred_fallthru
    _
  // Predicated region
  $region22: #{value_cnn_forward.1} parent=0 // pred_check
    _
  $region23: #{value_cnn_forward.1} parent=0 // pred_check_branch
    %26 = sbr.rel (0) target = $region25
  $region24: #{value_cnn_forward.1} parent=0 // pred_region
    _
  $region25: #{value_cnn_forward.1} parent=0 // pred_fallthru
    _
  // Predicated region
  $region26: #{value_cnn_forward.1} parent=0 // pred_check
    _
  $region27: #{value_cnn_forward.1} parent=0 // pred_check_branch
    %28 = sbr.rel (0) target = $region29
  $region28: #{value_cnn_forward.1} parent=0 // pred_region
    _
  $region29: #{value_cnn_forward.1} parent=0 // pred_fallthru
    _
  // Predicated region
  $region30: #{value_cnn_forward.1} parent=0 // pred_check
    _
  $region31: #{value_cnn_forward.1} parent=0 // pred_check_branch
    %30 = sbr.rel (0) target = $region33
  $region32: #{value_cnn_forward.1} parent=0 // pred_region
    _
  $region33: #{value_cnn_forward.1} parent=0 // pred_fallthru
    _
  %v31 = vld [vmem:[%s1] sm:$0xff]
  %v32 = vld [vmem:[%s1 + $0x8] sm:$0xff]
  %v33 = vld [vmem:[%s1 + $0x10] sm:$0xff]
  %v34 = vld [vmem:[%s1 + $0x18] sm:$0xff]
  %v35 = vld [vmem:[%s1 + $0x20] sm:$0xff]
  %v36 = vld [vmem:[%s1 + $0x28] sm:$0xff]
  %v37 = vld [vmem:[%s1 + $0x30] sm:$0xff]
  %v38 = vld [vmem:[%s1 + $0x38] sm:$0xff]
  %v39 = vld [vmem:[%s0] sm:$0xff]
  %v40 = vld [vmem:[%s0 + $0x8] sm:$0xff]
  %v41 = vld [vmem:[%s0 + $0x10] sm:$0xff]
  %v42 = vld [vmem:[%s0 + $0x18] sm:$0xff]
  %vm43 = vcmask 523264
  %v45 = vsel %vm43, %v39, 0
  %v48 = vsel %vm43, %v40, 0
  %v51 = vsel %vm43, %v41, 0
  %v54 = vsel %vm43, %v42, 0
  %56 = vmatprep.subr.mxu0 0.0
  %57 = vmatpush1.msra.mxu0 %v31
  %58 = vmatprep.subr.mxu0 0.0
  %59 = vmatpush1.msra.mxu0 %v32
  %60 = vmatprep.subr.mxu0 0.0
  %61 = vmatpush1.msra.mxu0 %v33
  %62 = vmatprep.subr.mxu0 0.0
  %63 = vmatpush1.msra.mxu0 %v34
  %64 = vmatprep.subr.mxu0 0.0
  %65 = vmatpush1.msra.mxu0 %v35
  %66 = vmatprep.subr.mxu0 0.0
  %67 = vmatpush1.msra.mxu0 %v36
  %68 = vmatprep.subr.mxu0 0.0
  %69 = vmatpush1.msra.mxu0 %v37
  %70 = vmatprep.subr.mxu0 0.0
  %71 = vmatpush1.msra.mxu0 %v38
  %72 = vmatprep.subr.mxu0 0.0
  %73 = vmatpush1.msra.mxu0 0.0
  %74 = vmatprep.subr.mxu0 0.0
  %75 = vmatpush1.msra.mxu0 0.0
  %76 = vmatprep.subr.mxu0 0.0
  %77 = vmatpush1.msra.mxu0 0.0
  %78 = vmatprep.subr.mxu0 0.0
  %79 = vmatpush1.msra.mxu0 0.0
  %80 = vmatprep.subr.mxu0 0.0
  %81 = vmatpush1.msra.mxu0 0.0
  %82 = vmatprep.subr.mxu0 0.0
  %83 = vmatpush1.msra.mxu0 0.0
  %84 = vmatprep.subr.mxu0 0.0
  %85 = vmatpush1.msra.mxu0 0.0
  %86 = vmatprep.subr.mxu0 0.0
  %87 = vmatpush1.msra.mxu0 0.0
  %88 = vmatprep.subr.mxu0 0.0
  %89 = vmatpush1.msra.mxu0 0.0
  %90 = vmatprep.subr.mxu0 0.0
  %91 = vmatpush1.msra.mxu0 0.0
  %92 = vmatprep.subr.mxu0 0.0
  %93 = vmatpush1.msra.mxu0 0.0
  %94 = vmatprep.subr.mxu0 0.0
  %95 = vmatpush1.msra.mxu0 0.0
  %96 = vmatprep.subr.mxu0 0.0
  %97 = vmatpush1.msra.mxu0 0.0
  %98 = vmatprep.subr.mxu0 0.0
  %99 = vmatpush1.msra.mxu0 0.0
  %100 = vmatprep.subr.mxu0 0.0
  %101 = vmatpush1.msra.mxu0 0.0
  %102 = vmatprep.subr.mxu0 0.0
  %103 = vmatpush1.msra.mxu0 0.0
  %104 = vmatprep.subr.mxu0 0.0
  %105 = vmatpush1.msra.mxu0 0.0
  %106 = vmatprep.subr.mxu0 0.0
  %107 = vmatpush1.msra.mxu0 0.0
  %108 = vmatprep.subr.mxu0 0.0
  %109 = vmatpush1.msra.mxu0 0.0
  %110 = vmatprep.subr.mxu0 0.0
  %111 = vmatpush1.msra.mxu0 0.0
  %112 = vmatprep.subr.mxu0 0.0
  %113 = vmatpush1.msra.mxu0 0.0
  %114 = vmatprep.subr.mxu0 0.0
  %115 = vmatpush1.msra.mxu0 0.0
  %116 = vmatprep.subr.mxu0 0.0
  %117 = vmatpush1.msra.mxu0 0.0
  %118 = vmatprep.subr.mxu0 0.0
  %119 = vmatpush1.msra.mxu0 0.0
  %120 = vmatprep.mubr.f32.mxu0 0.0
  %121 = vmatmul.mubr.f32.gmra.mrb[0].mxu0 %v45
  %v122 = vpop.f32.mrb[0].mxu0
  %v123 = vadd.f32 0.0, %v122
  %v124 = vpop.f32.mrb[0].mxu0
  %125 = vmatprep.mubr.f32.mxu0 0.0
  %126 = vmatmul.mubr.f32.gmra.mrb[0].mxu0 %v48
  %v127 = vpop.f32.mrb[0].mxu0
  %v128 = vadd.f32 0.0, %v127
  %v129 = vpop.f32.mrb[0].mxu0
  %130 = vmatprep.mubr.f32.mxu0 0.0
  %131 = vmatmul.mubr.f32.gmra.mrb[0].mxu0 %v51
  %v132 = vpop.f32.mrb[0].mxu0
  %v133 = vadd.f32 0.0, %v132
  %v134 = vpop.f32.mrb[0].mxu0
  %135 = vmatprep.mubr.f32.mxu0 0.0
  %136 = vmatmul.mubr.f32.gmra.mrb[0].mxu0 %v54
  %v137 = vpop.f32.mrb[0].mxu0
  %v138 = vadd.f32 0.0, %v137
  %v139 = vpop.f32.mrb[0].mxu0
  %140 = vdwg.mxu0
  %vm141 = vcmp.gt.f32.partialorder %v123, 0.0
  %vm142 = vcmp.gt.f32.partialorder %v128, 0.0
  %vm143 = vcmp.gt.f32.partialorder %v133, 0.0
  %vm144 = vcmp.gt.f32.partialorder %v138, 0.0
  %v145 = vmul.f32 %v123, 0.2
  %v146 = vmul.f32 %v128, 0.2
  %v147 = vmul.f32 %v133, 0.2
  %v148 = vmul.f32 %v138, 0.2
  %v149 = vsel %vm141, %v123, %v145
  %v150 = vsel %vm142, %v128, %v146
  %v151 = vsel %vm143, %v133, %v147
  %v152 = vsel %vm144, %v138, %v148
  %v153 = vld [vmem:[%s2] sm:$0xff]
  %s154 = scalar_lea.vmem %s0, 32
  %v155 = vld [vmem:[%s154] sm:$0xff]
  %v156 = vld [vmem:[%s154 + $0x8] sm:$0xff]
  %v157 = vld [vmem:[%s154 + $0x10] sm:$0xff]
  %v158 = vld [vmem:[%s154 + $0x18] sm:$0xff]
  %v160 = vsel %vm43, %v155, 0
  %v163 = vsel %vm43, %v156, 0
  %v166 = vsel %vm43, %v157, 0
  %v169 = vsel %vm43, %v158, 0
  %171 = vmatprep.subr.mxu0 0.0
  %172 = vmatpush1.msra.mxu0 %v31
  %173 = vmatprep.subr.mxu0 0.0
  %174 = vmatpush1.msra.mxu0 %v32
  %175 = vmatprep.subr.mxu0 0.0
  %176 = vmatpush1.msra.mxu0 %v33
  %177 = vmatprep.subr.mxu0 0.0
  %178 = vmatpush1.msra.mxu0 %v34
  %179 = vmatprep.subr.mxu0 0.0
  %180 = vmatpush1.msra.mxu0 %v35
  %181 = vmatprep.subr.mxu0 0.0
  %182 = vmatpush1.msra.mxu0 %v36
  %183 = vmatprep.subr.mxu0 0.0
  %184 = vmatpush1.msra.mxu0 %v37
  %185 = vmatprep.subr.mxu0 0.0
  %186 = vmatpush1.msra.mxu0 %v38
  %187 = vmatprep.subr.mxu0 0.0
  %188 = vmatpush1.msra.mxu0 0.0
  %189 = vmatprep.subr.mxu0 0.0
  %190 = vmatpush1.msra.mxu0 0.0
  %191 = vmatprep.subr.mxu0 0.0
  %192 = vmatpush1.msra.mxu0 0.0
  %193 = vmatprep.subr.mxu0 0.0
  %194 = vmatpush1.msra.mxu0 0.0
  %195 = vmatprep.subr.mxu0 0.0
  %196 = vmatpush1.msra.mxu0 0.0
  %197 = vmatprep.subr.mxu0 0.0
  %198 = vmatpush1.msra.mxu0 0.0
  %199 = vmatprep.subr.mxu0 0.0
  %200 = vmatpush1.msra.mxu0 0.0
  %201 = vmatprep.subr.mxu0 0.0
  %202 = vmatpush1.msra.mxu0 0.0
  %203 = vmatprep.subr.mxu0 0.0
  %204 = vmatpush1.msra.mxu0 0.0
  %205 = vmatprep.subr.mxu0 0.0
  %206 = vmatpush1.msra.mxu0 0.0
  %207 = vmatprep.subr.mxu0 0.0
  %208 = vmatpush1.msra.mxu0 0.0
  %209 = vmatprep.subr.mxu0 0.0
  %210 = vmatpush1.msra.mxu0 0.0
  %211 = vmatprep.subr.mxu0 0.0
  %212 = vmatpush1.msra.mxu0 0.0
  %213 = vmatprep.subr.mxu0 0.0
  %214 = vmatpush1.msra.mxu0 0.0
  %215 = vmatprep.subr.mxu0 0.0
  %216 = vmatpush1.msra.mxu0 0.0
  %217 = vmatprep.subr.mxu0 0.0
  %218 = vmatpush1.msra.mxu0 0.0
  %219 = vmatprep.subr.mxu0 0.0
  %220 = vmatpush1.msra.mxu0 0.0
  %221 = vmatprep.subr.mxu0 0.0
  %222 = vmatpush1.msra.mxu0 0.0
  %223 = vmatprep.subr.mxu0 0.0
  %224 = vmatpush1.msra.mxu0 0.0
  %225 = vmatprep.subr.mxu0 0.0
  %226 = vmatpush1.msra.mxu0 0.0
  %227 = vmatprep.subr.mxu0 0.0
  %228 = vmatpush1.msra.mxu0 0.0
  %229 = vmatprep.subr.mxu0 0.0
  %230 = vmatpush1.msra.mxu0 0.0
  %231 = vmatprep.subr.mxu0 0.0
  %232 = vmatpush1.msra.mxu0 0.0
  %233 = vmatprep.subr.mxu0 0.0
  %234 = vmatpush1.msra.mxu0 0.0
  %235 = vmatprep.mubr.f32.mxu0 0.0
  %236 = vmatmul.mubr.f32.gmra.mrb[0].mxu0 %v160
  %v237 = vpop.f32.mrb[0].mxu0
  %v238 = vadd.f32 0.0, %v237
  %v239 = vpop.f32.mrb[0].mxu0
  %240 = vmatprep.mubr.f32.mxu0 0.0
  %241 = vmatmul.mubr.f32.gmra.mrb[0].mxu0 %v163
  %v242 = vpop.f32.mrb[0].mxu0
  %v243 = vadd.f32 0.0, %v242
  %v244 = vpop.f32.mrb[0].mxu0
  %245 = vmatprep.mubr.f32.mxu0 0.0
  %246 = vmatmul.mubr.f32.gmra.mrb[0].mxu0 %v166
  %v247 = vpop.f32.mrb[0].mxu0
  %v248 = vadd.f32 0.0, %v247
  %v249 = vpop.f32.mrb[0].mxu0
  %250 = vmatprep.mubr.f32.mxu0 0.0
  %251 = vmatmul.mubr.f32.gmra.mrb[0].mxu0 %v169
  %v252 = vpop.f32.mrb[0].mxu0
  %v253 = vadd.f32 0.0, %v252
  %v254 = vpop.f32.mrb[0].mxu0
  %255 = vdwg.mxu0
  %vm256 = vcmp.gt.f32.partialorder %v238, 0.0
  %vm257 = vcmp.gt.f32.partialorder %v243, 0.0
  %vm258 = vcmp.gt.f32.partialorder %v248, 0.0
  %vm259 = vcmp.gt.f32.partialorder %v253, 0.0
  %v260 = vmul.f32 %v238, 0.2
  %v261 = vmul.f32 %v243, 0.2
  %v262 = vmul.f32 %v248, 0.2
  %v263 = vmul.f32 %v253, 0.2
  %v264 = vsel %vm256, %v238, %v260
  %v265 = vsel %vm257, %v243, %v261
  %v266 = vsel %vm258, %v248, %v262
  %v267 = vsel %vm259, %v253, %v263
  %s268 = scalar_lea.vmem %s2, 8
  %v269 = vld [vmem:[%s268] sm:$0xff]
  %vm270 = vcmask 64512
  %v272 = vsel %vm270, %v264, 0
  %v275 = vsel %vm270, %v265, 0
  %v278 = vsel %vm270, %v266, 0
  %v281 = vsel %vm270, %v267, 0
  %283 = vmatprep.subr.mxu0 0.0
  %284 = vmatpush1.msra.mxu0 %v269
  %285 = vmatprep.subr.mxu0 0.0
  %286 = vmatpush1.msra.mxu0 0.0
  %287 = vmatprep.subr.mxu0 0.0
  %288 = vmatpush1.msra.mxu0 0.0
  %289 = vmatprep.subr.mxu0 0.0
  %290 = vmatpush1.msra.mxu0 0.0
  %291 = vmatprep.subr.mxu0 0.0
  %292 = vmatpush1.msra.mxu0 0.0
  %293 = vmatprep.subr.mxu0 0.0
  %294 = vmatpush1.msra.mxu0 0.0
  %295 = vmatprep.subr.mxu0 0.0
  %296 = vmatpush1.msra.mxu0 0.0
  %297 = vmatprep.subr.mxu0 0.0
  %298 = vmatpush1.msra.mxu0 0.0
  %299 = vmatprep.subr.mxu0 0.0
  %300 = vmatpush1.msra.mxu0 0.0
  %301 = vmatprep.subr.mxu0 0.0
  %302 = vmatpush1.msra.mxu0 0.0
  %303 = vmatprep.subr.mxu0 0.0
  %304 = vmatpush1.msra.mxu0 0.0
  %305 = vmatprep.subr.mxu0 0.0
  %306 = vmatpush1.msra.mxu0 0.0
  %307 = vmatprep.subr.mxu0 0.0
  %308 = vmatpush1.msra.mxu0 0.0
  %309 = vmatprep.subr.mxu0 0.0
  %310 = vmatpush1.msra.mxu0 0.0
  %311 = vmatprep.subr.mxu0 0.0
  %312 = vmatpush1.msra.mxu0 0.0
  %313 = vmatprep.subr.mxu0 0.0
  %314 = vmatpush1.msra.mxu0 0.0
  %315 = vmatprep.subr.mxu0 0.0
  %316 = vmatpush1.msra.mxu0 0.0
  %317 = vmatprep.subr.mxu0 0.0
  %318 = vmatpush1.msra.mxu0 0.0
  %319 = vmatprep.subr.mxu0 0.0
  %320 = vmatpush1.msra.mxu0 0.0
  %321 = vmatprep.subr.mxu0 0.0
  %322 = vmatpush1.msra.mxu0 0.0
  %323 = vmatprep.subr.mxu0 0.0
  %324 = vmatpush1.msra.mxu0 0.0
  %325 = vmatprep.subr.mxu0 0.0
  %326 = vmatpush1.msra.mxu0 0.0
  %327 = vmatprep.subr.mxu0 0.0
  %328 = vmatpush1.msra.mxu0 0.0
  %329 = vmatprep.subr.mxu0 0.0
  %330 = vmatpush1.msra.mxu0 0.0
  %331 = vmatprep.subr.mxu0 0.0
  %332 = vmatpush1.msra.mxu0 0.0
  %333 = vmatprep.subr.mxu0 0.0
  %334 = vmatpush1.msra.mxu0 0.0
  %335 = vmatprep.subr.mxu0 0.0
  %336 = vmatpush1.msra.mxu0 0.0
  %337 = vmatprep.subr.mxu0 0.0
  %338 = vmatpush1.msra.mxu0 0.0
  %339 = vmatprep.subr.mxu0 0.0
  %340 = vmatpush1.msra.mxu0 0.0
  %341 = vmatprep.subr.mxu0 0.0
  %342 = vmatpush1.msra.mxu0 0.0
  %343 = vmatprep.subr.mxu0 0.0
  %344 = vmatpush1.msra.mxu0 0.0
  %345 = vmatprep.subr.mxu0 0.0
  %346 = vmatpush1.msra.mxu0 0.0
  %347 = vmatprep.mubr.f32.mxu0 0.0
  %348 = vmatmul.mubr.f32.gmra.mrb[0].mxu0 %v272
  %v349 = vpop.f32.mrb[0].mxu0
  %v350 = vadd.f32 0.0, %v349
  %v351 = vpop.f32.mrb[0].mxu0
  %352 = vmatprep.mubr.f32.mxu0 0.0
  %353 = vmatmul.mubr.f32.gmra.mrb[0].mxu0 %v275
  %v354 = vpop.f32.mrb[0].mxu0
  %v355 = vadd.f32 0.0, %v354
  %v356 = vpop.f32.mrb[0].mxu0
  %357 = vmatprep.mubr.f32.mxu0 0.0
  %358 = vmatmul.mubr.f32.gmra.mrb[0].mxu0 %v278
  %v359 = vpop.f32.mrb[0].mxu0
  %v360 = vadd.f32 0.0, %v359
  %v361 = vpop.f32.mrb[0].mxu0
  %362 = vmatprep.mubr.f32.mxu0 0.0
  %363 = vmatmul.mubr.f32.gmra.mrb[0].mxu0 %v281
  %v364 = vpop.f32.mrb[0].mxu0
  %v365 = vadd.f32 0.0, %v364
  %v366 = vpop.f32.mrb[0].mxu0
  %367 = vdwg.mxu0
  %v369 = vsel %vm270, %v149, 0
  %v372 = vsel %vm270, %v150, 0
  %v375 = vsel %vm270, %v151, 0
  %v378 = vsel %vm270, %v152, 0
  %380 = vmatprep.subr.mxu0 0.0
  %381 = vmatpush1.msra.mxu0 %v153
  %382 = vmatprep.subr.mxu0 0.0
  %383 = vmatpush1.msra.mxu0 0.0
  %384 = vmatprep.subr.mxu0 0.0
  %385 = vmatpush1.msra.mxu0 0.0
  %386 = vmatprep.subr.mxu0 0.0
  %387 = vmatpush1.msra.mxu0 0.0
  %388 = vmatprep.subr.mxu0 0.0
  %389 = vmatpush1.msra.mxu0 0.0
  %390 = vmatprep.subr.mxu0 0.0
  %391 = vmatpush1.msra.mxu0 0.0
  %392 = vmatprep.subr.mxu0 0.0
  %393 = vmatpush1.msra.mxu0 0.0
  %394 = vmatprep.subr.mxu0 0.0
  %395 = vmatpush1.msra.mxu0 0.0
  %396 = vmatprep.subr.mxu0 0.0
  %397 = vmatpush1.msra.mxu0 0.0
  %398 = vmatprep.subr.mxu0 0.0
  %399 = vmatpush1.msra.mxu0 0.0
  %400 = vmatprep.subr.mxu0 0.0
  %401 = vmatpush1.msra.mxu0 0.0
  %402 = vmatprep.subr.mxu0 0.0
  %403 = vmatpush1.msra.mxu0 0.0
  %404 = vmatprep.subr.mxu0 0.0
  %405 = vmatpush1.msra.mxu0 0.0
  %406 = vmatprep.subr.mxu0 0.0
  %407 = vmatpush1.msra.mxu0 0.0
  %408 = vmatprep.subr.mxu0 0.0
  %409 = vmatpush1.msra.mxu0 0.0
  %410 = vmatprep.subr.mxu0 0.0
  %411 = vmatpush1.msra.mxu0 0.0
  %412 = vmatprep.subr.mxu0 0.0
  %413 = vmatpush1.msra.mxu0 0.0
  %414 = vmatprep.subr.mxu0 0.0
  %415 = vmatpush1.msra.mxu0 0.0
  %416 = vmatprep.subr.mxu0 0.0
  %417 = vmatpush1.msra.mxu0 0.0
  %418 = vmatprep.subr.mxu0 0.0
  %419 = vmatpush1.msra.mxu0 0.0
  %420 = vmatprep.subr.mxu0 0.0
  %421 = vmatpush1.msra.mxu0 0.0
  %422 = vmatprep.subr.mxu0 0.0
  %423 = vmatpush1.msra.mxu0 0.0
  %424 = vmatprep.subr.mxu0 0.0
  %425 = vmatpush1.msra.mxu0 0.0
  %426 = vmatprep.subr.mxu0 0.0
  %427 = vmatpush1.msra.mxu0 0.0
  %428 = vmatprep.subr.mxu0 0.0
  %429 = vmatpush1.msra.mxu0 0.0
  %430 = vmatprep.subr.mxu0 0.0
  %431 = vmatpush1.msra.mxu0 0.0
  %432 = vmatprep.subr.mxu0 0.0
  %433 = vmatpush1.msra.mxu0 0.0
  %434 = vmatprep.subr.mxu0 0.0
  %435 = vmatpush1.msra.mxu0 0.0
  %436 = vmatprep.subr.mxu0 0.0
  %437 = vmatpush1.msra.mxu0 0.0
  %438 = vmatprep.subr.mxu0 0.0
  %439 = vmatpush1.msra.mxu0 0.0
  %440 = vmatprep.subr.mxu0 0.0
  %441 = vmatpush1.msra.mxu0 0.0
  %442 = vmatprep.subr.mxu0 0.0
  %443 = vmatpush1.msra.mxu0 0.0
  %444 = vmatprep.mubr.f32.mxu0 0.0
  %445 = vmatmul.mubr.f32.gmra.mrb[0].mxu0 %v369
  %v446 = vpop.f32.mrb[0].mxu0
  %v447 = vadd.f32 %v350, %v446
  %v448 = vpop.f32.mrb[0].mxu0
  %449 = vmatprep.mubr.f32.mxu0 0.0
  %450 = vmatmul.mubr.f32.gmra.mrb[0].mxu0 %v372
  %v451 = vpop.f32.mrb[0].mxu0
  %v452 = vadd.f32 %v355, %v451
  %v453 = vpop.f32.mrb[0].mxu0
  %454 = vmatprep.mubr.f32.mxu0 0.0
  %455 = vmatmul.mubr.f32.gmra.mrb[0].mxu0 %v375
  %v456 = vpop.f32.mrb[0].mxu0
  %v457 = vadd.f32 %v360, %v456
  %v458 = vpop.f32.mrb[0].mxu0
  %459 = vmatprep.mubr.f32.mxu0 0.0
  %460 = vmatmul.mubr.f32.gmra.mrb[0].mxu0 %v378
  %v461 = vpop.f32.mrb[0].mxu0
  %v462 = vadd.f32 %v365, %v461
  %v463 = vpop.f32.mrb[0].mxu0
  %464 = vdwg.mxu0
  %s465 = scalar_lea.vmem %s0, 64
  %v466 = vld [vmem:[%s465] sm:$0xff]
  %v467 = vld [vmem:[%s465 + $0x8] sm:$0xff]
  %v468 = vld [vmem:[%s465 + $0x10] sm:$0xff]
  %v469 = vld [vmem:[%s465 + $0x18] sm:$0xff]
  %v471 = vsel %vm43, %v466, 0
  %v474 = vsel %vm43, %v467, 0
  %v477 = vsel %vm43, %v468, 0
  %v480 = vsel %vm43, %v469, 0
  %482 = vmatprep.subr.mxu0 0.0
  %483 = vmatpush1.msra.mxu0 %v31
  %484 = vmatprep.subr.mxu0 0.0
  %485 = vmatpush1.msra.mxu0 %v32
  %486 = vmatprep.subr.mxu0 0.0
  %487 = vmatpush1.msra.mxu0 %v33
  %488 = vmatprep.subr.mxu0 0.0
  %489 = vmatpush1.msra.mxu0 %v34
  %490 = vmatprep.subr.mxu0 0.0
  %491 = vmatpush1.msra.mxu0 %v35
  %492 = vmatprep.subr.mxu0 0.0
  %493 = vmatpush1.msra.mxu0 %v36
  %494 = vmatprep.subr.mxu0 0.0
  %495 = vmatpush1.msra.mxu0 %v37
  %496 = vmatprep.subr.mxu0 0.0
  %497 = vmatpush1.msra.mxu0 %v38
  %498 = vmatprep.subr.mxu0 0.0
  %499 = vmatpush1.msra.mxu0 0.0
  %500 = vmatprep.subr.mxu0 0.0
  %501 = vmatpush1.msra.mxu0 0.0
  %502 = vmatprep.subr.mxu0 0.0
  %503 = vmatpush1.msra.mxu0 0.0
  %504 = vmatprep.subr.mxu0 0.0
  %505 = vmatpush1.msra.mxu0 0.0
  %506 = vmatprep.subr.mxu0 0.0
  %507 = vmatpush1.msra.mxu0 0.0
  %508 = vmatprep.subr.mxu0 0.0
  %509 = vmatpush1.msra.mxu0 0.0
  %510 = vmatprep.subr.mxu0 0.0
  %511 = vmatpush1.msra.mxu0 0.0
  %512 = vmatprep.subr.mxu0 0.0
  %513 = vmatpush1.msra.mxu0 0.0
  %514 = vmatprep.subr.mxu0 0.0
  %515 = vmatpush1.msra.mxu0 0.0
  %516 = vmatprep.subr.mxu0 0.0
  %517 = vmatpush1.msra.mxu0 0.0
  %518 = vmatprep.subr.mxu0 0.0
  %519 = vmatpush1.msra.mxu0 0.0
  %520 = vmatprep.subr.mxu0 0.0
  %521 = vmatpush1.msra.mxu0 0.0
  %522 = vmatprep.subr.mxu0 0.0
  %523 = vmatpush1.msra.mxu0 0.0
  %524 = vmatprep.subr.mxu0 0.0
  %525 = vmatpush1.msra.mxu0 0.0
  %526 = vmatprep.subr.mxu0 0.0
  %527 = vmatpush1.msra.mxu0 0.0
  %528 = vmatprep.subr.mxu0 0.0
  %529 = vmatpush1.msra.mxu0 0.0
  %530 = vmatprep.subr.mxu0 0.0
  %531 = vmatpush1.msra.mxu0 0.0
  %532 = vmatprep.subr.mxu0 0.0
  %533 = vmatpush1.msra.mxu0 0.0
  %534 = vmatprep.subr.mxu0 0.0
  %535 = vmatpush1.msra.mxu0 0.0
  %536 = vmatprep.subr.mxu0 0.0
  %537 = vmatpush1.msra.mxu0 0.0
  %538 = vmatprep.subr.mxu0 0.0
  %539 = vmatpush1.msra.mxu0 0.0
  %540 = vmatprep.subr.mxu0 0.0
  %541 = vmatpush1.msra.mxu0 0.0
  %542 = vmatprep.subr.mxu0 0.0
  %543 = vmatpush1.msra.mxu0 0.0
  %544 = vmatprep.subr.mxu0 0.0
  %545 = vmatpush1.msra.mxu0 0.0
  %546 = vmatprep.mubr.f32.mxu0 0.0
  %547 = vmatmul.mubr.f32.gmra.mrb[0].mxu0 %v471
  %v548 = vpop.f32.mrb[0].mxu0
  %v549 = vadd.f32 0.0, %v548
  %v550 = vpop.f32.mrb[0].mxu0
  %551 = vmatprep.mubr.f32.mxu0 0.0
  %552 = vmatmul.mubr.f32.gmra.mrb[0].mxu0 %v474
  %v553 = vpop.f32.mrb[0].mxu0
  %v554 = vadd.f32 0.0, %v553
  %v555 = vpop.f32.mrb[0].mxu0
  %556 = vmatprep.mubr.f32.mxu0 0.0
  %557 = vmatmul.mubr.f32.gmra.mrb[0].mxu0 %v477
  %v558 = vpop.f32.mrb[0].mxu0
  %v559 = vadd.f32 0.0, %v558
  %v560 = vpop.f32.mrb[0].mxu0
  %561 = vmatprep.mubr.f32.mxu0 0.0
  %562 = vmatmul.mubr.f32.gmra.mrb[0].mxu0 %v480
  %v563 = vpop.f32.mrb[0].mxu0
  %v564 = vadd.f32 0.0, %v563
  %v565 = vpop.f32.mrb[0].mxu0
  %566 = vdwg.mxu0
  %vm567 = vcmp.gt.f32.partialorder %v549, 0.0
  %vm568 = vcmp.gt.f32.partialorder %v554, 0.0
  %vm569 = vcmp.gt.f32.partialorder %v559, 0.0
  %vm570 = vcmp.gt.f32.partialorder %v564, 0.0
  %v571 = vmul.f32 %v549, 0.2
  %v572 = vmul.f32 %v554, 0.2
  %v573 = vmul.f32 %v559, 0.2
  %v574 = vmul.f32 %v564, 0.2
  %v575 = vsel %vm567, %v549, %v571
  %v576 = vsel %vm568, %v554, %v572
  %v577 = vsel %vm569, %v559, %v573
  %v578 = vsel %vm570, %v564, %v574
  %s579 = scalar_lea.vmem %s2, 16
  %v580 = vld [vmem:[%s579] sm:$0xff]
  %v582 = vsel %vm270, %v575, 0
  %v585 = vsel %vm270, %v576, 0
  %v588 = vsel %vm270, %v577, 0
  %v591 = vsel %vm270, %v578, 0
  %593 = vmatprep.subr.mxu0 0.0
  %594 = vmatpush1.msra.mxu0 %v580
  %595 = vmatprep.subr.mxu0 0.0
  %596 = vmatpush1.msra.mxu0 0.0
  %597 = vmatprep.subr.mxu0 0.0
  %598 = vmatpush1.msra.mxu0 0.0
  %599 = vmatprep.subr.mxu0 0.0
  %600 = vmatpush1.msra.mxu0 0.0
  %601 = vmatprep.subr.mxu0 0.0
  %602 = vmatpush1.msra.mxu0 0.0
  %603 = vmatprep.subr.mxu0 0.0
  %604 = vmatpush1.msra.mxu0 0.0
  %605 = vmatprep.subr.mxu0 0.0
  %606 = vmatpush1.msra.mxu0 0.0
  %607 = vmatprep.subr.mxu0 0.0
  %608 = vmatpush1.msra.mxu0 0.0
  %609 = vmatprep.subr.mxu0 0.0
  %610 = vmatpush1.msra.mxu0 0.0
  %611 = vmatprep.subr.mxu0 0.0
  %612 = vmatpush1.msra.mxu0 0.0
  %613 = vmatprep.subr.mxu0 0.0
  %614 = vmatpush1.msra.mxu0 0.0
  %615 = vmatprep.subr.mxu0 0.0
  %616 = vmatpush1.msra.mxu0 0.0
  %617 = vmatprep.subr.mxu0 0.0
  %618 = vmatpush1.msra.mxu0 0.0
  %619 = vmatprep.subr.mxu0 0.0
  %620 = vmatpush1.msra.mxu0 0.0
  %621 = vmatprep.subr.mxu0 0.0
  %622 = vmatpush1.msra.mxu0 0.0
  %623 = vmatprep.subr.mxu0 0.0
  %624 = vmatpush1.msra.mxu0 0.0
  %625 = vmatprep.subr.mxu0 0.0
  %626 = vmatpush1.msra.mxu0 0.0
  %627 = vmatprep.subr.mxu0 0.0
  %628 = vmatpush1.msra.mxu0 0.0
  %629 = vmatprep.subr.mxu0 0.0
  %630 = vmatpush1.msra.mxu0 0.0
  %631 = vmatprep.subr.mxu0 0.0
  %632 = vmatpush1.msra.mxu0 0.0
  %633 = vmatprep.subr.mxu0 0.0
  %634 = vmatpush1.msra.mxu0 0.0
  %635 = vmatprep.subr.mxu0 0.0
  %636 = vmatpush1.msra.mxu0 0.0
  %637 = vmatprep.subr.mxu0 0.0
  %638 = vmatpush1.msra.mxu0 0.0
  %639 = vmatprep.subr.mxu0 0.0
  %640 = vmatpush1.msra.mxu0 0.0
  %641 = vmatprep.subr.mxu0 0.0
  %642 = vmatpush1.msra.mxu0 0.0
  %643 = vmatprep.subr.mxu0 0.0
  %644 = vmatpush1.msra.mxu0 0.0
  %645 = vmatprep.subr.mxu0 0.0
  %646 = vmatpush1.msra.mxu0 0.0
  %647 = vmatprep.subr.mxu0 0.0
  %648 = vmatpush1.msra.mxu0 0.0
  %649 = vmatprep.subr.mxu0 0.0
  %650 = vmatpush1.msra.mxu0 0.0
  %651 = vmatprep.subr.mxu0 0.0
  %652 = vmatpush1.msra.mxu0 0.0
  %653 = vmatprep.subr.mxu0 0.0
  %654 = vmatpush1.msra.mxu0 0.0
  %655 = vmatprep.subr.mxu0 0.0
  %656 = vmatpush1.msra.mxu0 0.0
  %657 = vmatprep.mubr.f32.mxu0 0.0
  %658 = vmatmul.mubr.f32.gmra.mrb[0].mxu0 %v582
  %v659 = vpop.f32.mrb[0].mxu0
  %v660 = vadd.f32 0.0, %v659
  %v661 = vpop.f32.mrb[0].mxu0
  %662 = vmatprep.mubr.f32.mxu0 0.0
  %663 = vmatmul.mubr.f32.gmra.mrb[0].mxu0 %v585
  %v664 = vpop.f32.mrb[0].mxu0
  %v665 = vadd.f32 0.0, %v664
  %v666 = vpop.f32.mrb[0].mxu0
  %667 = vmatprep.mubr.f32.mxu0 0.0
  %668 = vmatmul.mubr.f32.gmra.mrb[0].mxu0 %v588
  %v669 = vpop.f32.mrb[0].mxu0
  %v670 = vadd.f32 0.0, %v669
  %v671 = vpop.f32.mrb[0].mxu0
  %672 = vmatprep.mubr.f32.mxu0 0.0
  %673 = vmatmul.mubr.f32.gmra.mrb[0].mxu0 %v591
  %v674 = vpop.f32.mrb[0].mxu0
  %v675 = vadd.f32 0.0, %v674
  %v676 = vpop.f32.mrb[0].mxu0
  %677 = vdwg.mxu0
  %v678 = vadd.f32 %v447, %v660
  %v679 = vadd.f32 %v452, %v665
  %v680 = vadd.f32 %v457, %v670
  %v681 = vadd.f32 %v462, %v675
  %s682 = scalar_lea.vmem %s0, 96
  %v683 = vld [vmem:[%s682] sm:$0xff]
  %v684 = vld [vmem:[%s682 + $0x8] sm:$0xff]
  %v685 = vld [vmem:[%s682 + $0x10] sm:$0xff]
  %v686 = vld [vmem:[%s682 + $0x18] sm:$0xff]
  %v688 = vsel %vm43, %v683, 0
  %v691 = vsel %vm43, %v684, 0
  %v694 = vsel %vm43, %v685, 0
  %v697 = vsel %vm43, %v686, 0
  %699 = vmatprep.subr.mxu0 0.0
  %700 = vmatpush1.msra.mxu0 %v31
  %701 = vmatprep.subr.mxu0 0.0
  %702 = vmatpush1.msra.mxu0 %v32
  %703 = vmatprep.subr.mxu0 0.0
  %704 = vmatpush1.msra.mxu0 %v33
  %705 = vmatprep.subr.mxu0 0.0
  %706 = vmatpush1.msra.mxu0 %v34
  %707 = vmatprep.subr.mxu0 0.0
  %708 = vmatpush1.msra.mxu0 %v35
  %709 = vmatprep.subr.mxu0 0.0
  %710 = vmatpush1.msra.mxu0 %v36
  %711 = vmatprep.subr.mxu0 0.0
  %712 = vmatpush1.msra.mxu0 %v37
  %713 = vmatprep.subr.mxu0 0.0
  %714 = vmatpush1.msra.mxu0 %v38
  %715 = vmatprep.subr.mxu0 0.0
  %716 = vmatpush1.msra.mxu0 0.0
  %717 = vmatprep.subr.mxu0 0.0
  %718 = vmatpush1.msra.mxu0 0.0
  %719 = vmatprep.subr.mxu0 0.0
  %720 = vmatpush1.msra.mxu0 0.0
  %721 = vmatprep.subr.mxu0 0.0
  %722 = vmatpush1.msra.mxu0 0.0
  %723 = vmatprep.subr.mxu0 0.0
  %724 = vmatpush1.msra.mxu0 0.0
  %725 = vmatprep.subr.mxu0 0.0
  %726 = vmatpush1.msra.mxu0 0.0
  %727 = vmatprep.subr.mxu0 0.0
  %728 = vmatpush1.msra.mxu0 0.0
  %729 = vmatprep.subr.mxu0 0.0
  %730 = vmatpush1.msra.mxu0 0.0
  %731 = vmatprep.subr.mxu0 0.0
  %732 = vmatpush1.msra.mxu0 0.0
  %733 = vmatprep.subr.mxu0 0.0
  %734 = vmatpush1.msra.mxu0 0.0
  %735 = vmatprep.subr.mxu0 0.0
  %736 = vmatpush1.msra.mxu0 0.0
  %737 = vmatprep.subr.mxu0 0.0
  %738 = vmatpush1.msra.mxu0 0.0
  %739 = vmatprep.subr.mxu0 0.0
  %740 = vmatpush1.msra.mxu0 0.0
  %741 = vmatprep.subr.mxu0 0.0
  %742 = vmatpush1.msra.mxu0 0.0
  %743 = vmatprep.subr.mxu0 0.0
  %744 = vmatpush1.msra.mxu0 0.0
  %745 = vmatprep.subr.mxu0 0.0
  %746 = vmatpush1.msra.mxu0 0.0
  %747 = vmatprep.subr.mxu0 0.0
  %748 = vmatpush1.msra.mxu0 0.0
  %749 = vmatprep.subr.mxu0 0.0
  %750 = vmatpush1.msra.mxu0 0.0
  %751 = vmatprep.subr.mxu0 0.0
  %752 = vmatpush1.msra.mxu0 0.0
  %753 = vmatprep.subr.mxu0 0.0
  %754 = vmatpush1.msra.mxu0 0.0
  %755 = vmatprep.subr.mxu0 0.0
  %756 = vmatpush1.msra.mxu0 0.0
  %757 = vmatprep.subr.mxu0 0.0
  %758 = vmatpush1.msra.mxu0 0.0
  %759 = vmatprep.subr.mxu0 0.0
  %760 = vmatpush1.msra.mxu0 0.0
  %761 = vmatprep.subr.mxu0 0.0
  %762 = vmatpush1.msra.mxu0 0.0
  %763 = vmatprep.mubr.f32.mxu0 0.0
  %764 = vmatmul.mubr.f32.gmra.mrb[0].mxu0 %v688
  %v765 = vpop.f32.mrb[0].mxu0
  %v766 = vadd.f32 0.0, %v765
  %v767 = vpop.f32.mrb[0].mxu0
  %768 = vmatprep.mubr.f32.mxu0 0.0
  %769 = vmatmul.mubr.f32.gmra.mrb[0].mxu0 %v691
  %v770 = vpop.f32.mrb[0].mxu0
  %v771 = vadd.f32 0.0, %v770
  %v772 = vpop.f32.mrb[0].mxu0
  %773 = vmatprep.mubr.f32.mxu0 0.0
  %774 = vmatmul.mubr.f32.gmra.mrb[0].mxu0 %v694
  %v775 = vpop.f32.mrb[0].mxu0
  %v776 = vadd.f32 0.0, %v775
  %v777 = vpop.f32.mrb[0].mxu0
  %778 = vmatprep.mubr.f32.mxu0 0.0
  %779 = vmatmul.mubr.f32.gmra.mrb[0].mxu0 %v697
  %v780 = vpop.f32.mrb[0].mxu0
  %v781 = vadd.f32 0.0, %v780
  %v782 = vpop.f32.mrb[0].mxu0
  %783 = vdwg.mxu0
  %vm784 = vcmp.gt.f32.partialorder %v766, 0.0
  %vm785 = vcmp.gt.f32.partialorder %v771, 0.0
  %vm786 = vcmp.gt.f32.partialorder %v776, 0.0
  %vm787 = vcmp.gt.f32.partialorder %v781, 0.0
  %v788 = vmul.f32 %v766, 0.2
  %v789 = vmul.f32 %v771, 0.2
  %v790 = vmul.f32 %v776, 0.2
  %v791 = vmul.f32 %v781, 0.2
  %v792 = vsel %vm784, %v766, %v788
  %v793 = vsel %vm785, %v771, %v789
  %v794 = vsel %vm786, %v776, %v790
  %v795 = vsel %vm787, %v781, %v791
  %s796 = scalar_lea.vmem %s2, 24
  %v797 = vld [vmem:[%s796] sm:$0xff]
  %v799 = vsel %vm270, %v792, 0
  %v802 = vsel %vm270, %v793, 0
  %v805 = vsel %vm270, %v794, 0
  %v808 = vsel %vm270, %v795, 0
  %810 = vmatprep.subr.mxu0 0.0
  %811 = vmatpush1.msra.mxu0 %v797
  %812 = vmatprep.subr.mxu0 0.0
  %813 = vmatpush1.msra.mxu0 0.0
  %814 = vmatprep.subr.mxu0 0.0
  %815 = vmatpush1.msra.mxu0 0.0
  %816 = vmatprep.subr.mxu0 0.0
  %817 = vmatpush1.msra.mxu0 0.0
  %818 = vmatprep.subr.mxu0 0.0
  %819 = vmatpush1.msra.mxu0 0.0
  %820 = vmatprep.subr.mxu0 0.0
  %821 = vmatpush1.msra.mxu0 0.0
  %822 = vmatprep.subr.mxu0 0.0
  %823 = vmatpush1.msra.mxu0 0.0
  %824 = vmatprep.subr.mxu0 0.0
  %825 = vmatpush1.msra.mxu0 0.0
  %826 = vmatprep.subr.mxu0 0.0
  %827 = vmatpush1.msra.mxu0 0.0
  %828 = vmatprep.subr.mxu0 0.0
  %829 = vmatpush1.msra.mxu0 0.0
  %830 = vmatprep.subr.mxu0 0.0
  %831 = vmatpush1.msra.mxu0 0.0
  %832 = vmatprep.subr.mxu0 0.0
  %833 = vmatpush1.msra.mxu0 0.0
  %834 = vmatprep.subr.mxu0 0.0
  %835 = vmatpush1.msra.mxu0 0.0
  %836 = vmatprep.subr.mxu0 0.0
  %837 = vmatpush1.msra.mxu0 0.0
  %838 = vmatprep.subr.mxu0 0.0
  %839 = vmatpush1.msra.mxu0 0.0
  %840 = vmatprep.subr.mxu0 0.0
  %841 = vmatpush1.msra.mxu0 0.0
  %842 = vmatprep.subr.mxu0 0.0
  %843 = vmatpush1.msra.mxu0 0.0
  %844 = vmatprep.subr.mxu0 0.0
  %845 = vmatpush1.msra.mxu0 0.0
  %846 = vmatprep.subr.mxu0 0.0
  %847 = vmatpush1.msra.mxu0 0.0
  %848 = vmatprep.subr.mxu0 0.0
  %849 = vmatpush1.msra.mxu0 0.0
  %850 = vmatprep.subr.mxu0 0.0
  %851 = vmatpush1.msra.mxu0 0.0
  %852 = vmatprep.subr.mxu0 0.0
  %853 = vmatpush1.msra.mxu0 0.0
  %854 = vmatprep.subr.mxu0 0.0
  %855 = vmatpush1.msra.mxu0 0.0
  %856 = vmatprep.subr.mxu0 0.0
  %857 = vmatpush1.msra.mxu0 0.0
  %858 = vmatprep.subr.mxu0 0.0
  %859 = vmatpush1.msra.mxu0 0.0
  %860 = vmatprep.subr.mxu0 0.0
  %861 = vmatpush1.msra.mxu0 0.0
  %862 = vmatprep.subr.mxu0 0.0
  %863 = vmatpush1.msra.mxu0 0.0
  %864 = vmatprep.subr.mxu0 0.0
  %865 = vmatpush1.msra.mxu0 0.0
  %866 = vmatprep.subr.mxu0 0.0
  %867 = vmatpush1.msra.mxu0 0.0
  %868 = vmatprep.subr.mxu0 0.0
  %869 = vmatpush1.msra.mxu0 0.0
  %870 = vmatprep.subr.mxu0 0.0
  %871 = vmatpush1.msra.mxu0 0.0
  %872 = vmatprep.subr.mxu0 0.0
  %873 = vmatpush1.msra.mxu0 0.0
  %874 = vmatprep.mubr.f32.mxu0 0.0
  %875 = vmatmul.mubr.f32.gmra.mrb[0].mxu0 %v799
  %v876 = vpop.f32.mrb[0].mxu0
  %v877 = vadd.f32 0.0, %v876
  %v878 = vpop.f32.mrb[0].mxu0
  %879 = vmatprep.mubr.f32.mxu0 0.0
  %880 = vmatmul.mubr.f32.gmra.mrb[0].mxu0 %v802
  %v881 = vpop.f32.mrb[0].mxu0
  %v882 = vadd.f32 0.0, %v881
  %v883 = vpop.f32.mrb[0].mxu0
  %884 = vmatprep.mubr.f32.mxu0 0.0
  %885 = vmatmul.mubr.f32.gmra.mrb[0].mxu0 %v805
  %v886 = vpop.f32.mrb[0].mxu0
  %v887 = vadd.f32 0.0, %v886
  %v888 = vpop.f32.mrb[0].mxu0
  %889 = vmatprep.mubr.f32.mxu0 0.0
  %890 = vmatmul.mubr.f32.gmra.mrb[0].mxu0 %v808
  %v891 = vpop.f32.mrb[0].mxu0
  %v892 = vadd.f32 0.0, %v891
  %v893 = vpop.f32.mrb[0].mxu0
  %894 = vdwg.mxu0
  %v895 = vadd.f32 %v678, %v877
  %v896 = vadd.f32 %v679, %v882
  %v897 = vadd.f32 %v680, %v887
  %v898 = vadd.f32 %v681, %v892
  %s899 = scalar_lea.vmem %s0, 128
  %v900 = vld [vmem:[%s899] sm:$0xff]
  %v901 = vld [vmem:[%s899 + $0x8] sm:$0xff]
  %v902 = vld [vmem:[%s899 + $0x10] sm:$0xff]
  %v903 = vld [vmem:[%s899 + $0x18] sm:$0xff]
  %v905 = vsel %vm43, %v900, 0
  %v908 = vsel %vm43, %v901, 0
  %v911 = vsel %vm43, %v902, 0
  %v914 = vsel %vm43, %v903, 0
  %916 = vmatprep.subr.mxu0 0.0
  %917 = vmatpush1.msra.mxu0 %v31
  %918 = vmatprep.subr.mxu0 0.0
  %919 = vmatpush1.msra.mxu0 %v32
  %920 = vmatprep.subr.mxu0 0.0
  %921 = vmatpush1.msra.mxu0 %v33
  %922 = vmatprep.subr.mxu0 0.0
  %923 = vmatpush1.msra.mxu0 %v34
  %924 = vmatprep.subr.mxu0 0.0
  %925 = vmatpush1.msra.mxu0 %v35
  %926 = vmatprep.subr.mxu0 0.0
  %927 = vmatpush1.msra.mxu0 %v36
  %928 = vmatprep.subr.mxu0 0.0
  %929 = vmatpush1.msra.mxu0 %v37
  %930 = vmatprep.subr.mxu0 0.0
  %931 = vmatpush1.msra.mxu0 %v38
  %932 = vmatprep.subr.mxu0 0.0
  %933 = vmatpush1.msra.mxu0 0.0
  %934 = vmatprep.subr.mxu0 0.0
  %935 = vmatpush1.msra.mxu0 0.0
  %936 = vmatprep.subr.mxu0 0.0
  %937 = vmatpush1.msra.mxu0 0.0
  %938 = vmatprep.subr.mxu0 0.0
  %939 = vmatpush1.msra.mxu0 0.0
  %940 = vmatprep.subr.mxu0 0.0
  %941 = vmatpush1.msra.mxu0 0.0
  %942 = vmatprep.subr.mxu0 0.0
  %943 = vmatpush1.msra.mxu0 0.0
  %944 = vmatprep.subr.mxu0 0.0
  %945 = vmatpush1.msra.mxu0 0.0
  %946 = vmatprep.subr.mxu0 0.0
  %947 = vmatpush1.msra.mxu0 0.0
  %948 = vmatprep.subr.mxu0 0.0
  %949 = vmatpush1.msra.mxu0 0.0
  %950 = vmatprep.subr.mxu0 0.0
  %951 = vmatpush1.msra.mxu0 0.0
  %952 = vmatprep.subr.mxu0 0.0
  %953 = vmatpush1.msra.mxu0 0.0
  %954 = vmatprep.subr.mxu0 0.0
  %955 = vmatpush1.msra.mxu0 0.0
  %956 = vmatprep.subr.mxu0 0.0
  %957 = vmatpush1.msra.mxu0 0.0
  %958 = vmatprep.subr.mxu0 0.0
  %959 = vmatpush1.msra.mxu0 0.0
  %960 = vmatprep.subr.mxu0 0.0
  %961 = vmatpush1.msra.mxu0 0.0
  %962 = vmatprep.subr.mxu0 0.0
  %963 = vmatpush1.msra.mxu0 0.0
  %964 = vmatprep.subr.mxu0 0.0
  %965 = vmatpush1.msra.mxu0 0.0
  %966 = vmatprep.subr.mxu0 0.0
  %967 = vmatpush1.msra.mxu0 0.0
  %968 = vmatprep.subr.mxu0 0.0
  %969 = vmatpush1.msra.mxu0 0.0
  %970 = vmatprep.subr.mxu0 0.0
  %971 = vmatpush1.msra.mxu0 0.0
  %972 = vmatprep.subr.mxu0 0.0
  %973 = vmatpush1.msra.mxu0 0.0
  %974 = vmatprep.subr.mxu0 0.0
  %975 = vmatpush1.msra.mxu0 0.0
  %976 = vmatprep.subr.mxu0 0.0
  %977 = vmatpush1.msra.mxu0 0.0
  %978 = vmatprep.subr.mxu0 0.0
  %979 = vmatpush1.msra.mxu0 0.0
  %980 = vmatprep.mubr.f32.mxu0 0.0
  %981 = vmatmul.mubr.f32.gmra.mrb[0].mxu0 %v905
  %v982 = vpop.f32.mrb[0].mxu0
  %v983 = vadd.f32 0.0, %v982
  %v984 = vpop.f32.mrb[0].mxu0
  %985 = vmatprep.mubr.f32.mxu0 0.0
  %986 = vmatmul.mubr.f32.gmra.mrb[0].mxu0 %v908
  %v987 = vpop.f32.mrb[0].mxu0
  %v988 = vadd.f32 0.0, %v987
  %v989 = vpop.f32.mrb[0].mxu0
  %990 = vmatprep.mubr.f32.mxu0 0.0
  %991 = vmatmul.mubr.f32.gmra.mrb[0].mxu0 %v911
  %v992 = vpop.f32.mrb[0].mxu0
  %v993 = vadd.f32 0.0, %v992
  %v994 = vpop.f32.mrb[0].mxu0
  %995 = vmatprep.mubr.f32.mxu0 0.0
  %996 = vmatmul.mubr.f32.gmra.mrb[0].mxu0 %v914
  %v997 = vpop.f32.mrb[0].mxu0
  %v998 = vadd.f32 0.0, %v997
  %v999 = vpop.f32.mrb[0].mxu0
  %1000 = vdwg.mxu0
  %vm1001 = vcmp.gt.f32.partialorder %v983, 0.0
  %vm1002 = vcmp.gt.f32.partialorder %v988, 0.0
  %vm1003 = vcmp.gt.f32.partialorder %v993, 0.0
  %vm1004 = vcmp.gt.f32.partialorder %v998, 0.0
  %v1005 = vmul.f32 %v983, 0.2
  %v1006 = vmul.f32 %v988, 0.2
  %v1007 = vmul.f32 %v993, 0.2
  %v1008 = vmul.f32 %v998, 0.2
  %v1009 = vsel %vm1001, %v983, %v1005
  %v1010 = vsel %vm1002, %v988, %v1006
  %v1011 = vsel %vm1003, %v993, %v1007
  %v1012 = vsel %vm1004, %v998, %v1008
  %s1013 = scalar_lea.vmem %s2, 32
  %v1014 = vld [vmem:[%s1013] sm:$0xff]
  %v1016 = vsel %vm270, %v1009, 0
  %v1019 = vsel %vm270, %v1010, 0
  %v1022 = vsel %vm270, %v1011, 0
  %v1025 = vsel %vm270, %v1012, 0
  %1027 = vmatprep.subr.mxu0 0.0
  %1028 = vmatpush1.msra.mxu0 %v1014
  %1029 = vmatprep.subr.mxu0 0.0
  %1030 = vmatpush1.msra.mxu0 0.0
  %1031 = vmatprep.subr.mxu0 0.0
  %1032 = vmatpush1.msra.mxu0 0.0
  %1033 = vmatprep.subr.mxu0 0.0
  %1034 = vmatpush1.msra.mxu0 0.0
  %1035 = vmatprep.subr.mxu0 0.0
  %1036 = vmatpush1.msra.mxu0 0.0
  %1037 = vmatprep.subr.mxu0 0.0
  %1038 = vmatpush1.msra.mxu0 0.0
  %1039 = vmatprep.subr.mxu0 0.0
  %1040 = vmatpush1.msra.mxu0 0.0
  %1041 = vmatprep.subr.mxu0 0.0
  %1042 = vmatpush1.msra.mxu0 0.0
  %1043 = vmatprep.subr.mxu0 0.0
  %1044 = vmatpush1.msra.mxu0 0.0
  %1045 = vmatprep.subr.mxu0 0.0
  %1046 = vmatpush1.msra.mxu0 0.0
  %1047 = vmatprep.subr.mxu0 0.0
  %1048 = vmatpush1.msra.mxu0 0.0
  %1049 = vmatprep.subr.mxu0 0.0
  %1050 = vmatpush1.msra.mxu0 0.0
  %1051 = vmatprep.subr.mxu0 0.0
  %1052 = vmatpush1.msra.mxu0 0.0
  %1053 = vmatprep.subr.mxu0 0.0
  %1054 = vmatpush1.msra.mxu0 0.0
  %1055 = vmatprep.subr.mxu0 0.0
  %1056 = vmatpush1.msra.mxu0 0.0
  %1057 = vmatprep.subr.mxu0 0.0
  %1058 = vmatpush1.msra.mxu0 0.0
  %1059 = vmatprep.subr.mxu0 0.0
  %1060 = vmatpush1.msra.mxu0 0.0
  %1061 = vmatprep.subr.mxu0 0.0
  %1062 = vmatpush1.msra.mxu0 0.0
  %1063 = vmatprep.subr.mxu0 0.0
  %1064 = vmatpush1.msra.mxu0 0.0
  %1065 = vmatprep.subr.mxu0 0.0
  %1066 = vmatpush1.msra.mxu0 0.0
  %1067 = vmatprep.subr.mxu0 0.0
  %1068 = vmatpush1.msra.mxu0 0.0
  %1069 = vmatprep.subr.mxu0 0.0
  %1070 = vmatpush1.msra.mxu0 0.0
  %1071 = vmatprep.subr.mxu0 0.0
  %1072 = vmatpush1.msra.mxu0 0.0
  %1073 = vmatprep.subr.mxu0 0.0
  %1074 = vmatpush1.msra.mxu0 0.0
  %1075 = vmatprep.subr.mxu0 0.0
  %1076 = vmatpush1.msra.mxu0 0.0
  %1077 = vmatprep.subr.mxu0 0.0
  %1078 = vmatpush1.msra.mxu0 0.0
  %1079 = vmatprep.subr.mxu0 0.0
  %1080 = vmatpush1.msra.mxu0 0.0
  %1081 = vmatprep.subr.mxu0 0.0
  %1082 = vmatpush1.msra.mxu0 0.0
  %1083 = vmatprep.subr.mxu0 0.0
  %1084 = vmatpush1.msra.mxu0 0.0
  %1085 = vmatprep.subr.mxu0 0.0
  %1086 = vmatpush1.msra.mxu0 0.0
  %1087 = vmatprep.subr.mxu0 0.0
  %1088 = vmatpush1.msra.mxu0 0.0
  %1089 = vmatprep.subr.mxu0 0.0
  %1090 = vmatpush1.msra.mxu0 0.0
  %1091 = vmatprep.mubr.f32.mxu0 0.0
  %1092 = vmatmul.mubr.f32.gmra.mrb[0].mxu0 %v1016
  %v1093 = vpop.f32.mrb[0].mxu0
  %v1094 = vadd.f32 0.0, %v1093
  %v1095 = vpop.f32.mrb[0].mxu0
  %1096 = vmatprep.mubr.f32.mxu0 0.0
  %1097 = vmatmul.mubr.f32.gmra.mrb[0].mxu0 %v1019
  %v1098 = vpop.f32.mrb[0].mxu0
  %v1099 = vadd.f32 0.0, %v1098
  %v1100 = vpop.f32.mrb[0].mxu0
  %1101 = vmatprep.mubr.f32.mxu0 0.0
  %1102 = vmatmul.mubr.f32.gmra.mrb[0].mxu0 %v1022
  %v1103 = vpop.f32.mrb[0].mxu0
  %v1104 = vadd.f32 0.0, %v1103
  %v1105 = vpop.f32.mrb[0].mxu0
  %1106 = vmatprep.mubr.f32.mxu0 0.0
  %1107 = vmatmul.mubr.f32.gmra.mrb[0].mxu0 %v1025
  %v1108 = vpop.f32.mrb[0].mxu0
  %v1109 = vadd.f32 0.0, %v1108
  %v1110 = vpop.f32.mrb[0].mxu0
  %1111 = vdwg.mxu0
  %v1112 = vadd.f32 %v895, %v1094
  %v1113 = vadd.f32 %v896, %v1099
  %v1114 = vadd.f32 %v897, %v1104
  %v1115 = vadd.f32 %v898, %v1109
  %s1116 = scalar_lea.vmem %s0, 160
  %v1117 = vld [vmem:[%s1116] sm:$0xff]
  %v1118 = vld [vmem:[%s1116 + $0x8] sm:$0xff]
  %v1119 = vld [vmem:[%s1116 + $0x10] sm:$0xff]
  %v1120 = vld [vmem:[%s1116 + $0x18] sm:$0xff]
  %v1122 = vsel %vm43, %v1117, 0
  %v1125 = vsel %vm43, %v1118, 0
  %v1128 = vsel %vm43, %v1119, 0
  %v1131 = vsel %vm43, %v1120, 0
  %1133 = vmatprep.subr.mxu0 0.0
  %1134 = vmatpush1.msra.mxu0 %v31
  %1135 = vmatprep.subr.mxu0 0.0
  %1136 = vmatpush1.msra.mxu0 %v32
  %1137 = vmatprep.subr.mxu0 0.0
  %1138 = vmatpush1.msra.mxu0 %v33
  %1139 = vmatprep.subr.mxu0 0.0
  %1140 = vmatpush1.msra.mxu0 %v34
  %1141 = vmatprep.subr.mxu0 0.0
  %1142 = vmatpush1.msra.mxu0 %v35
  %1143 = vmatprep.subr.mxu0 0.0
  %1144 = vmatpush1.msra.mxu0 %v36
  %1145 = vmatprep.subr.mxu0 0.0
  %1146 = vmatpush1.msra.mxu0 %v37
  %1147 = vmatprep.subr.mxu0 0.0
  %1148 = vmatpush1.msra.mxu0 %v38
  %1149 = vmatprep.subr.mxu0 0.0
  %1150 = vmatpush1.msra.mxu0 0.0
  %1151 = vmatprep.subr.mxu0 0.0
  %1152 = vmatpush1.msra.mxu0 0.0
  %1153 = vmatprep.subr.mxu0 0.0
  %1154 = vmatpush1.msra.mxu0 0.0
  %1155 = vmatprep.subr.mxu0 0.0
  %1156 = vmatpush1.msra.mxu0 0.0
  %1157 = vmatprep.subr.mxu0 0.0
  %1158 = vmatpush1.msra.mxu0 0.0
  %1159 = vmatprep.subr.mxu0 0.0
  %1160 = vmatpush1.msra.mxu0 0.0
  %1161 = vmatprep.subr.mxu0 0.0
  %1162 = vmatpush1.msra.mxu0 0.0
  %1163 = vmatprep.subr.mxu0 0.0
  %1164 = vmatpush1.msra.mxu0 0.0
  %1165 = vmatprep.subr.mxu0 0.0
  %1166 = vmatpush1.msra.mxu0 0.0
  %1167 = vmatprep.subr.mxu0 0.0
  %1168 = vmatpush1.msra.mxu0 0.0
  %1169 = vmatprep.subr.mxu0 0.0
  %1170 = vmatpush1.msra.mxu0 0.0
  %1171 = vmatprep.subr.mxu0 0.0
  %1172 = vmatpush1.msra.mxu0 0.0
  %1173 = vmatprep.subr.mxu0 0.0
  %1174 = vmatpush1.msra.mxu0 0.0
  %1175 = vmatprep.subr.mxu0 0.0
  %1176 = vmatpush1.msra.mxu0 0.0
  %1177 = vmatprep.subr.mxu0 0.0
  %1178 = vmatpush1.msra.mxu0 0.0
  %1179 = vmatprep.subr.mxu0 0.0
  %1180 = vmatpush1.msra.mxu0 0.0
  %1181 = vmatprep.subr.mxu0 0.0
  %1182 = vmatpush1.msra.mxu0 0.0
  %1183 = vmatprep.subr.mxu0 0.0
  %1184 = vmatpush1.msra.mxu0 0.0
  %1185 = vmatprep.subr.mxu0 0.0
  %1186 = vmatpush1.msra.mxu0 0.0
  %1187 = vmatprep.subr.mxu0 0.0
  %1188 = vmatpush1.msra.mxu0 0.0
  %1189 = vmatprep.subr.mxu0 0.0
  %1190 = vmatpush1.msra.mxu0 0.0
  %1191 = vmatprep.subr.mxu0 0.0
  %1192 = vmatpush1.msra.mxu0 0.0
  %1193 = vmatprep.subr.mxu0 0.0
  %1194 = vmatpush1.msra.mxu0 0.0
  %1195 = vmatprep.subr.mxu0 0.0
  %1196 = vmatpush1.msra.mxu0 0.0
  %1197 = vmatprep.mubr.f32.mxu0 0.0
  %1198 = vmatmul.mubr.f32.gmra.mrb[0].mxu0 %v1122
  %v1199 = vpop.f32.mrb[0].mxu0
  %v1200 = vadd.f32 0.0, %v1199
  %v1201 = vpop.f32.mrb[0].mxu0
  %1202 = vmatprep.mubr.f32.mxu0 0.0
  %1203 = vmatmul.mubr.f32.gmra.mrb[0].mxu0 %v1125
  %v1204 = vpop.f32.mrb[0].mxu0
  %v1205 = vadd.f32 0.0, %v1204
  %v1206 = vpop.f32.mrb[0].mxu0
  %1207 = vmatprep.mubr.f32.mxu0 0.0
  %1208 = vmatmul.mubr.f32.gmra.mrb[0].mxu0 %v1128
  %v1209 = vpop.f32.mrb[0].mxu0
  %v1210 = vadd.f32 0.0, %v1209
  %v1211 = vpop.f32.mrb[0].mxu0
  %1212 = vmatprep.mubr.f32.mxu0 0.0
  %1213 = vmatmul.mubr.f32.gmra.mrb[0].mxu0 %v1131
  %v1214 = vpop.f32.mrb[0].mxu0
  %v1215 = vadd.f32 0.0, %v1214
  %v1216 = vpop.f32.mrb[0].mxu0
  %1217 = vdwg.mxu0
  %vm1218 = vcmp.gt.f32.partialorder %v1200, 0.0
  %vm1219 = vcmp.gt.f32.partialorder %v1205, 0.0
  %vm1220 = vcmp.gt.f32.partialorder %v1210, 0.0
  %vm1221 = vcmp.gt.f32.partialorder %v1215, 0.0
  %v1222 = vmul.f32 %v1200, 0.2
  %v1223 = vmul.f32 %v1205, 0.2
  %v1224 = vmul.f32 %v1210, 0.2
  %v1225 = vmul.f32 %v1215, 0.2
  %v1226 = vsel %vm1218, %v1200, %v1222
  %v1227 = vsel %vm1219, %v1205, %v1223
  %v1228 = vsel %vm1220, %v1210, %v1224
  %v1229 = vsel %vm1221, %v1215, %v1225
  %s1230 = scalar_lea.vmem %s2, 40
  %v1231 = vld [vmem:[%s1230] sm:$0xff]
  %v1233 = vsel %vm270, %v1226, 0
  %v1236 = vsel %vm270, %v1227, 0
  %v1239 = vsel %vm270, %v1228, 0
  %v1242 = vsel %vm270, %v1229, 0
  %1244 = vmatprep.subr.mxu0 0.0
  %1245 = vmatpush1.msra.mxu0 %v1231
  %1246 = vmatprep.subr.mxu0 0.0
  %1247 = vmatpush1.msra.mxu0 0.0
  %1248 = vmatprep.subr.mxu0 0.0
  %1249 = vmatpush1.msra.mxu0 0.0
  %1250 = vmatprep.subr.mxu0 0.0
  %1251 = vmatpush1.msra.mxu0 0.0
  %1252 = vmatprep.subr.mxu0 0.0
  %1253 = vmatpush1.msra.mxu0 0.0
  %1254 = vmatprep.subr.mxu0 0.0
  %1255 = vmatpush1.msra.mxu0 0.0
  %1256 = vmatprep.subr.mxu0 0.0
  %1257 = vmatpush1.msra.mxu0 0.0
  %1258 = vmatprep.subr.mxu0 0.0
  %1259 = vmatpush1.msra.mxu0 0.0
  %1260 = vmatprep.subr.mxu0 0.0
  %1261 = vmatpush1.msra.mxu0 0.0
  %1262 = vmatprep.subr.mxu0 0.0
  %1263 = vmatpush1.msra.mxu0 0.0
  %1264 = vmatprep.subr.mxu0 0.0
  %1265 = vmatpush1.msra.mxu0 0.0
  %1266 = vmatprep.subr.mxu0 0.0
  %1267 = vmatpush1.msra.mxu0 0.0
  %1268 = vmatprep.subr.mxu0 0.0
  %1269 = vmatpush1.msra.mxu0 0.0
  %1270 = vmatprep.subr.mxu0 0.0
  %1271 = vmatpush1.msra.mxu0 0.0
  %1272 = vmatprep.subr.mxu0 0.0
  %1273 = vmatpush1.msra.mxu0 0.0
  %1274 = vmatprep.subr.mxu0 0.0
  %1275 = vmatpush1.msra.mxu0 0.0
  %1276 = vmatprep.subr.mxu0 0.0
  %1277 = vmatpush1.msra.mxu0 0.0
  %1278 = vmatprep.subr.mxu0 0.0
  %1279 = vmatpush1.msra.mxu0 0.0
  %1280 = vmatprep.subr.mxu0 0.0
  %1281 = vmatpush1.msra.mxu0 0.0
  %1282 = vmatprep.subr.mxu0 0.0
  %1283 = vmatpush1.msra.mxu0 0.0
  %1284 = vmatprep.subr.mxu0 0.0
  %1285 = vmatpush1.msra.mxu0 0.0
  %1286 = vmatprep.subr.mxu0 0.0
  %1287 = vmatpush1.msra.mxu0 0.0
  %1288 = vmatprep.subr.mxu0 0.0
  %1289 = vmatpush1.msra.mxu0 0.0
  %1290 = vmatprep.subr.mxu0 0.0
  %1291 = vmatpush1.msra.mxu0 0.0
  %1292 = vmatprep.subr.mxu0 0.0
  %1293 = vmatpush1.msra.mxu0 0.0
  %1294 = vmatprep.subr.mxu0 0.0
  %1295 = vmatpush1.msra.mxu0 0.0
  %1296 = vmatprep.subr.mxu0 0.0
  %1297 = vmatpush1.msra.mxu0 0.0
  %1298 = vmatprep.subr.mxu0 0.0
  %1299 = vmatpush1.msra.mxu0 0.0
  %1300 = vmatprep.subr.mxu0 0.0
  %1301 = vmatpush1.msra.mxu0 0.0
  %1302 = vmatprep.subr.mxu0 0.0
  %1303 = vmatpush1.msra.mxu0 0.0
  %1304 = vmatprep.subr.mxu0 0.0
  %1305 = vmatpush1.msra.mxu0 0.0
  %1306 = vmatprep.subr.mxu0 0.0
  %1307 = vmatpush1.msra.mxu0 0.0
  %1308 = vmatprep.mubr.f32.mxu0 0.0
  %1309 = vmatmul.mubr.f32.gmra.mrb[0].mxu0 %v1233
  %v1310 = vpop.f32.mrb[0].mxu0
  %v1311 = vadd.f32 0.0, %v1310
  %v1312 = vpop.f32.mrb[0].mxu0
  %1313 = vmatprep.mubr.f32.mxu0 0.0
  %1314 = vmatmul.mubr.f32.gmra.mrb[0].mxu0 %v1236
  %v1315 = vpop.f32.mrb[0].mxu0
  %v1316 = vadd.f32 0.0, %v1315
  %v1317 = vpop.f32.mrb[0].mxu0
  %1318 = vmatprep.mubr.f32.mxu0 0.0
  %1319 = vmatmul.mubr.f32.gmra.mrb[0].mxu0 %v1239
  %v1320 = vpop.f32.mrb[0].mxu0
  %v1321 = vadd.f32 0.0, %v1320
  %v1322 = vpop.f32.mrb[0].mxu0
  %1323 = vmatprep.mubr.f32.mxu0 0.0
  %1324 = vmatmul.mubr.f32.gmra.mrb[0].mxu0 %v1242
  %v1325 = vpop.f32.mrb[0].mxu0
  %v1326 = vadd.f32 0.0, %v1325
  %v1327 = vpop.f32.mrb[0].mxu0
  %1328 = vdwg.mxu0
  %v1329 = vadd.f32 %v1112, %v1311
  %v1330 = vadd.f32 %v1113, %v1316
  %v1331 = vadd.f32 %v1114, %v1321
  %v1332 = vadd.f32 %v1115, %v1326
  %s1333 = scalar_lea.vmem %s0, 192
  %v1334 = vld [vmem:[%s1333] sm:$0xff]
  %v1335 = vld [vmem:[%s1333 + $0x8] sm:$0xff]
  %v1336 = vld [vmem:[%s1333 + $0x10] sm:$0xff]
  %v1337 = vld [vmem:[%s1333 + $0x18] sm:$0xff]
  %v1339 = vsel %vm43, %v1334, 0
  %v1342 = vsel %vm43, %v1335, 0
  %v1345 = vsel %vm43, %v1336, 0
  %v1348 = vsel %vm43, %v1337, 0
  %1350 = vmatprep.subr.mxu0 0.0
  %1351 = vmatpush1.msra.mxu0 %v31
  %1352 = vmatprep.subr.mxu0 0.0
  %1353 = vmatpush1.msra.mxu0 %v32
  %1354 = vmatprep.subr.mxu0 0.0
  %1355 = vmatpush1.msra.mxu0 %v33
  %1356 = vmatprep.subr.mxu0 0.0
  %1357 = vmatpush1.msra.mxu0 %v34
  %1358 = vmatprep.subr.mxu0 0.0
  %1359 = vmatpush1.msra.mxu0 %v35
  %1360 = vmatprep.subr.mxu0 0.0
  %1361 = vmatpush1.msra.mxu0 %v36
  %1362 = vmatprep.subr.mxu0 0.0
  %1363 = vmatpush1.msra.mxu0 %v37
  %1364 = vmatprep.subr.mxu0 0.0
  %1365 = vmatpush1.msra.mxu0 %v38
  %1366 = vmatprep.subr.mxu0 0.0
  %1367 = vmatpush1.msra.mxu0 0.0
  %1368 = vmatprep.subr.mxu0 0.0
  %1369 = vmatpush1.msra.mxu0 0.0
  %1370 = vmatprep.subr.mxu0 0.0
  %1371 = vmatpush1.msra.mxu0 0.0
  %1372 = vmatprep.subr.mxu0 0.0
  %1373 = vmatpush1.msra.mxu0 0.0
  %1374 = vmatprep.subr.mxu0 0.0
  %1375 = vmatpush1.msra.mxu0 0.0
  %1376 = vmatprep.subr.mxu0 0.0
  %1377 = vmatpush1.msra.mxu0 0.0
  %1378 = vmatprep.subr.mxu0 0.0
  %1379 = vmatpush1.msra.mxu0 0.0
  %1380 = vmatprep.subr.mxu0 0.0
  %1381 = vmatpush1.msra.mxu0 0.0
  %1382 = vmatprep.subr.mxu0 0.0
  %1383 = vmatpush1.msra.mxu0 0.0
  %1384 = vmatprep.subr.mxu0 0.0
  %1385 = vmatpush1.msra.mxu0 0.0
  %1386 = vmatprep.subr.mxu0 0.0
  %1387 = vmatpush1.msra.mxu0 0.0
  %1388 = vmatprep.subr.mxu0 0.0
  %1389 = vmatpush1.msra.mxu0 0.0
  %1390 = vmatprep.subr.mxu0 0.0
  %1391 = vmatpush1.msra.mxu0 0.0
  %1392 = vmatprep.subr.mxu0 0.0
  %1393 = vmatpush1.msra.mxu0 0.0
  %1394 = vmatprep.subr.mxu0 0.0
  %1395 = vmatpush1.msra.mxu0 0.0
  %1396 = vmatprep.subr.mxu0 0.0
  %1397 = vmatpush1.msra.mxu0 0.0
  %1398 = vmatprep.subr.mxu0 0.0
  %1399 = vmatpush1.msra.mxu0 0.0
  %1400 = vmatprep.subr.mxu0 0.0
  %1401 = vmatpush1.msra.mxu0 0.0
  %1402 = vmatprep.subr.mxu0 0.0
  %1403 = vmatpush1.msra.mxu0 0.0
  %1404 = vmatprep.subr.mxu0 0.0
  %1405 = vmatpush1.msra.mxu0 0.0
  %1406 = vmatprep.subr.mxu0 0.0
  %1407 = vmatpush1.msra.mxu0 0.0
  %1408 = vmatprep.subr.mxu0 0.0
  %1409 = vmatpush1.msra.mxu0 0.0
  %1410 = vmatprep.subr.mxu0 0.0
  %1411 = vmatpush1.msra.mxu0 0.0
  %1412 = vmatprep.subr.mxu0 0.0
  %1413 = vmatpush1.msra.mxu0 0.0
  %1414 = vmatprep.mubr.f32.mxu0 0.0
  %1415 = vmatmul.mubr.f32.gmra.mrb[0].mxu0 %v1339
  %v1416 = vpop.f32.mrb[0].mxu0
  %v1417 = vadd.f32 0.0, %v1416
  %v1418 = vpop.f32.mrb[0].mxu0
  %1419 = vmatprep.mubr.f32.mxu0 0.0
  %1420 = vmatmul.mubr.f32.gmra.mrb[0].mxu0 %v1342
  %v1421 = vpop.f32.mrb[0].mxu0
  %v1422 = vadd.f32 0.0, %v1421
  %v1423 = vpop.f32.mrb[0].mxu0
  %1424 = vmatprep.mubr.f32.mxu0 0.0
  %1425 = vmatmul.mubr.f32.gmra.mrb[0].mxu0 %v1345
  %v1426 = vpop.f32.mrb[0].mxu0
  %v1427 = vadd.f32 0.0, %v1426
  %v1428 = vpop.f32.mrb[0].mxu0
  %1429 = vmatprep.mubr.f32.mxu0 0.0
  %1430 = vmatmul.mubr.f32.gmra.mrb[0].mxu0 %v1348
  %v1431 = vpop.f32.mrb[0].mxu0
  %v1432 = vadd.f32 0.0, %v1431
  %v1433 = vpop.f32.mrb[0].mxu0
  %1434 = vdwg.mxu0
  %vm1435 = vcmp.gt.f32.partialorder %v1417, 0.0
  %vm1436 = vcmp.gt.f32.partialorder %v1422, 0.0
  %vm1437 = vcmp.gt.f32.partialorder %v1427, 0.0
  %vm1438 = vcmp.gt.f32.partialorder %v1432, 0.0
  %v1439 = vmul.f32 %v1417, 0.2
  %v1440 = vmul.f32 %v1422, 0.2
  %v1441 = vmul.f32 %v1427, 0.2
  %v1442 = vmul.f32 %v1432, 0.2
  %v1443 = vsel %vm1435, %v1417, %v1439
  %v1444 = vsel %vm1436, %v1422, %v1440
  %v1445 = vsel %vm1437, %v1427, %v1441
  %v1446 = vsel %vm1438, %v1432, %v1442
  %s1447 = scalar_lea.vmem %s2, 48
  %v1448 = vld [vmem:[%s1447] sm:$0xff]
  %v1450 = vsel %vm270, %v1443, 0
  %v1453 = vsel %vm270, %v1444, 0
  %v1456 = vsel %vm270, %v1445, 0
  %v1459 = vsel %vm270, %v1446, 0
  %1461 = vmatprep.subr.mxu0 0.0
  %1462 = vmatpush1.msra.mxu0 %v1448
  %1463 = vmatprep.subr.mxu0 0.0
  %1464 = vmatpush1.msra.mxu0 0.0
  %1465 = vmatprep.subr.mxu0 0.0
  %1466 = vmatpush1.msra.mxu0 0.0
  %1467 = vmatprep.subr.mxu0 0.0
  %1468 = vmatpush1.msra.mxu0 0.0
  %1469 = vmatprep.subr.mxu0 0.0
  %1470 = vmatpush1.msra.mxu0 0.0
  %1471 = vmatprep.subr.mxu0 0.0
  %1472 = vmatpush1.msra.mxu0 0.0
  %1473 = vmatprep.subr.mxu0 0.0
  %1474 = vmatpush1.msra.mxu0 0.0
  %1475 = vmatprep.subr.mxu0 0.0
  %1476 = vmatpush1.msra.mxu0 0.0
  %1477 = vmatprep.subr.mxu0 0.0
  %1478 = vmatpush1.msra.mxu0 0.0
  %1479 = vmatprep.subr.mxu0 0.0
  %1480 = vmatpush1.msra.mxu0 0.0
  %1481 = vmatprep.subr.mxu0 0.0
  %1482 = vmatpush1.msra.mxu0 0.0
  %1483 = vmatprep.subr.mxu0 0.0
  %1484 = vmatpush1.msra.mxu0 0.0
  %1485 = vmatprep.subr.mxu0 0.0
  %1486 = vmatpush1.msra.mxu0 0.0
  %1487 = vmatprep.subr.mxu0 0.0
  %1488 = vmatpush1.msra.mxu0 0.0
  %1489 = vmatprep.subr.mxu0 0.0
  %1490 = vmatpush1.msra.mxu0 0.0
  %1491 = vmatprep.subr.mxu0 0.0
  %1492 = vmatpush1.msra.mxu0 0.0
  %1493 = vmatprep.subr.mxu0 0.0
  %1494 = vmatpush1.msra.mxu0 0.0
  %1495 = vmatprep.subr.mxu0 0.0
  %1496 = vmatpush1.msra.mxu0 0.0
  %1497 = vmatprep.subr.mxu0 0.0
  %1498 = vmatpush1.msra.mxu0 0.0
  %1499 = vmatprep.subr.mxu0 0.0
  %1500 = vmatpush1.msra.mxu0 0.0
  %1501 = vmatprep.subr.mxu0 0.0
  %1502 = vmatpush1.msra.mxu0 0.0
  %1503 = vmatprep.subr.mxu0 0.0
  %1504 = vmatpush1.msra.mxu0 0.0
  %1505 = vmatprep.subr.mxu0 0.0
  %1506 = vmatpush1.msra.mxu0 0.0
  %1507 = vmatprep.subr.mxu0 0.0
  %1508 = vmatpush1.msra.mxu0 0.0
  %1509 = vmatprep.subr.mxu0 0.0
  %1510 = vmatpush1.msra.mxu0 0.0
  %1511 = vmatprep.subr.mxu0 0.0
  %1512 = vmatpush1.msra.mxu0 0.0
  %1513 = vmatprep.subr.mxu0 0.0
  %1514 = vmatpush1.msra.mxu0 0.0
  %1515 = vmatprep.subr.mxu0 0.0
  %1516 = vmatpush1.msra.mxu0 0.0
  %1517 = vmatprep.subr.mxu0 0.0
  %1518 = vmatpush1.msra.mxu0 0.0
  %1519 = vmatprep.subr.mxu0 0.0
  %1520 = vmatpush1.msra.mxu0 0.0
  %1521 = vmatprep.subr.mxu0 0.0
  %1522 = vmatpush1.msra.mxu0 0.0
  %1523 = vmatprep.subr.mxu0 0.0
  %1524 = vmatpush1.msra.mxu0 0.0
  %1525 = vmatprep.mubr.f32.mxu0 0.0
  %1526 = vmatmul.mubr.f32.gmra.mrb[0].mxu0 %v1450
  %v1527 = vpop.f32.mrb[0].mxu0
  %v1528 = vadd.f32 0.0, %v1527
  %v1529 = vpop.f32.mrb[0].mxu0
  %1530 = vmatprep.mubr.f32.mxu0 0.0
  %1531 = vmatmul.mubr.f32.gmra.mrb[0].mxu0 %v1453
  %v1532 = vpop.f32.mrb[0].mxu0
  %v1533 = vadd.f32 0.0, %v1532
  %v1534 = vpop.f32.mrb[0].mxu0
  %1535 = vmatprep.mubr.f32.mxu0 0.0
  %1536 = vmatmul.mubr.f32.gmra.mrb[0].mxu0 %v1456
  %v1537 = vpop.f32.mrb[0].mxu0
  %v1538 = vadd.f32 0.0, %v1537
  %v1539 = vpop.f32.mrb[0].mxu0
  %1540 = vmatprep.mubr.f32.mxu0 0.0
  %1541 = vmatmul.mubr.f32.gmra.mrb[0].mxu0 %v1459
  %v1542 = vpop.f32.mrb[0].mxu0
  %v1543 = vadd.f32 0.0, %v1542
  %v1544 = vpop.f32.mrb[0].mxu0
  %1545 = vdwg.mxu0
  %v1546 = vadd.f32 %v1329, %v1528
  %v1547 = vadd.f32 %v1330, %v1533
  %v1548 = vadd.f32 %v1331, %v1538
  %v1549 = vadd.f32 %v1332, %v1543
  %s1550 = scalar_lea.vmem %s0, 224
  %v1551 = vld [vmem:[%s1550] sm:$0xff]
  %v1552 = vld [vmem:[%s1550 + $0x8] sm:$0xff]
  %v1553 = vld [vmem:[%s1550 + $0x10] sm:$0xff]
  %v1554 = vld [vmem:[%s1550 + $0x18] sm:$0xff]
  %v1556 = vsel %vm43, %v1551, 0
  %v1559 = vsel %vm43, %v1552, 0
  %v1562 = vsel %vm43, %v1553, 0
  %v1565 = vsel %vm43, %v1554, 0
  %1567 = vmatprep.subr.mxu0 0.0
  %1568 = vmatpush1.msra.mxu0 %v31
  %1569 = vmatprep.subr.mxu0 0.0
  %1570 = vmatpush1.msra.mxu0 %v32
  %1571 = vmatprep.subr.mxu0 0.0
  %1572 = vmatpush1.msra.mxu0 %v33
  %1573 = vmatprep.subr.mxu0 0.0
  %1574 = vmatpush1.msra.mxu0 %v34
  %1575 = vmatprep.subr.mxu0 0.0
  %1576 = vmatpush1.msra.mxu0 %v35
  %1577 = vmatprep.subr.mxu0 0.0
  %1578 = vmatpush1.msra.mxu0 %v36
  %1579 = vmatprep.subr.mxu0 0.0
  %1580 = vmatpush1.msra.mxu0 %v37
  %1581 = vmatprep.subr.mxu0 0.0
  %1582 = vmatpush1.msra.mxu0 %v38
  %1583 = vmatprep.subr.mxu0 0.0
  %1584 = vmatpush1.msra.mxu0 0.0
  %1585 = vmatprep.subr.mxu0 0.0
  %1586 = vmatpush1.msra.mxu0 0.0
  %1587 = vmatprep.subr.mxu0 0.0
  %1588 = vmatpush1.msra.mxu0 0.0
  %1589 = vmatprep.subr.mxu0 0.0
  %1590 = vmatpush1.msra.mxu0 0.0
  %1591 = vmatprep.subr.mxu0 0.0
  %1592 = vmatpush1.msra.mxu0 0.0
  %1593 = vmatprep.subr.mxu0 0.0
  %1594 = vmatpush1.msra.mxu0 0.0
  %1595 = vmatprep.subr.mxu0 0.0
  %1596 = vmatpush1.msra.mxu0 0.0
  %1597 = vmatprep.subr.mxu0 0.0
  %1598 = vmatpush1.msra.mxu0 0.0
  %1599 = vmatprep.subr.mxu0 0.0
  %1600 = vmatpush1.msra.mxu0 0.0
  %1601 = vmatprep.subr.mxu0 0.0
  %1602 = vmatpush1.msra.mxu0 0.0
  %1603 = vmatprep.subr.mxu0 0.0
  %1604 = vmatpush1.msra.mxu0 0.0
  %1605 = vmatprep.subr.mxu0 0.0
  %1606 = vmatpush1.msra.mxu0 0.0
  %1607 = vmatprep.subr.mxu0 0.0
  %1608 = vmatpush1.msra.mxu0 0.0
  %1609 = vmatprep.subr.mxu0 0.0
  %1610 = vmatpush1.msra.mxu0 0.0
  %1611 = vmatprep.subr.mxu0 0.0
  %1612 = vmatpush1.msra.mxu0 0.0
  %1613 = vmatprep.subr.mxu0 0.0
  %1614 = vmatpush1.msra.mxu0 0.0
  %1615 = vmatprep.subr.mxu0 0.0
  %1616 = vmatpush1.msra.mxu0 0.0
  %1617 = vmatprep.subr.mxu0 0.0
  %1618 = vmatpush1.msra.mxu0 0.0
  %1619 = vmatprep.subr.mxu0 0.0
  %1620 = vmatpush1.msra.mxu0 0.0
  %1621 = vmatprep.subr.mxu0 0.0
  %1622 = vmatpush1.msra.mxu0 0.0
  %1623 = vmatprep.subr.mxu0 0.0
  %1624 = vmatpush1.msra.mxu0 0.0
  %1625 = vmatprep.subr.mxu0 0.0
  %1626 = vmatpush1.msra.mxu0 0.0
  %1627 = vmatprep.subr.mxu0 0.0
  %1628 = vmatpush1.msra.mxu0 0.0
  %1629 = vmatprep.subr.mxu0 0.0
  %1630 = vmatpush1.msra.mxu0 0.0
  %1631 = vmatprep.mubr.f32.mxu0 0.0
  %1632 = vmatmul.mubr.f32.gmra.mrb[0].mxu0 %v1556
  %v1633 = vpop.f32.mrb[0].mxu0
  %v1634 = vadd.f32 0.0, %v1633
  %v1635 = vpop.f32.mrb[0].mxu0
  %1636 = vmatprep.mubr.f32.mxu0 0.0
  %1637 = vmatmul.mubr.f32.gmra.mrb[0].mxu0 %v1559
  %v1638 = vpop.f32.mrb[0].mxu0
  %v1639 = vadd.f32 0.0, %v1638
  %v1640 = vpop.f32.mrb[0].mxu0
  %1641 = vmatprep.mubr.f32.mxu0 0.0
  %1642 = vmatmul.mubr.f32.gmra.mrb[0].mxu0 %v1562
  %v1643 = vpop.f32.mrb[0].mxu0
  %v1644 = vadd.f32 0.0, %v1643
  %v1645 = vpop.f32.mrb[0].mxu0
  %1646 = vmatprep.mubr.f32.mxu0 0.0
  %1647 = vmatmul.mubr.f32.gmra.mrb[0].mxu0 %v1565
  %v1648 = vpop.f32.mrb[0].mxu0
  %v1649 = vadd.f32 0.0, %v1648
  %v1650 = vpop.f32.mrb[0].mxu0
  %1651 = vdwg.mxu0
  %vm1652 = vcmp.gt.f32.partialorder %v1634, 0.0
  %vm1653 = vcmp.gt.f32.partialorder %v1639, 0.0
  %vm1654 = vcmp.gt.f32.partialorder %v1644, 0.0
  %vm1655 = vcmp.gt.f32.partialorder %v1649, 0.0
  %v1656 = vmul.f32 %v1634, 0.2
  %v1657 = vmul.f32 %v1639, 0.2
  %v1658 = vmul.f32 %v1644, 0.2
  %v1659 = vmul.f32 %v1649, 0.2
  %v1660 = vsel %vm1652, %v1634, %v1656
  %v1661 = vsel %vm1653, %v1639, %v1657
  %v1662 = vsel %vm1654, %v1644, %v1658
  %v1663 = vsel %vm1655, %v1649, %v1659
  %s1664 = scalar_lea.vmem %s2, 56
  %v1665 = vld [vmem:[%s1664] sm:$0xff]
  %v1667 = vsel %vm270, %v1660, 0
  %v1670 = vsel %vm270, %v1661, 0
  %v1673 = vsel %vm270, %v1662, 0
  %v1676 = vsel %vm270, %v1663, 0
  %1678 = vmatprep.subr.mxu0 0.0
  %1679 = vmatpush1.msra.mxu0 %v1665
  %1680 = vmatprep.subr.mxu0 0.0
  %1681 = vmatpush1.msra.mxu0 0.0
  %1682 = vmatprep.subr.mxu0 0.0
  %1683 = vmatpush1.msra.mxu0 0.0
  %1684 = vmatprep.subr.mxu0 0.0
  %1685 = vmatpush1.msra.mxu0 0.0
  %1686 = vmatprep.subr.mxu0 0.0
  %1687 = vmatpush1.msra.mxu0 0.0
  %1688 = vmatprep.subr.mxu0 0.0
  %1689 = vmatpush1.msra.mxu0 0.0
  %1690 = vmatprep.subr.mxu0 0.0
  %1691 = vmatpush1.msra.mxu0 0.0
  %1692 = vmatprep.subr.mxu0 0.0
  %1693 = vmatpush1.msra.mxu0 0.0
  %1694 = vmatprep.subr.mxu0 0.0
  %1695 = vmatpush1.msra.mxu0 0.0
  %1696 = vmatprep.subr.mxu0 0.0
  %1697 = vmatpush1.msra.mxu0 0.0
  %1698 = vmatprep.subr.mxu0 0.0
  %1699 = vmatpush1.msra.mxu0 0.0
  %1700 = vmatprep.subr.mxu0 0.0
  %1701 = vmatpush1.msra.mxu0 0.0
  %1702 = vmatprep.subr.mxu0 0.0
  %1703 = vmatpush1.msra.mxu0 0.0
  %1704 = vmatprep.subr.mxu0 0.0
  %1705 = vmatpush1.msra.mxu0 0.0
  %1706 = vmatprep.subr.mxu0 0.0
  %1707 = vmatpush1.msra.mxu0 0.0
  %1708 = vmatprep.subr.mxu0 0.0
  %1709 = vmatpush1.msra.mxu0 0.0
  %1710 = vmatprep.subr.mxu0 0.0
  %1711 = vmatpush1.msra.mxu0 0.0
  %1712 = vmatprep.subr.mxu0 0.0
  %1713 = vmatpush1.msra.mxu0 0.0
  %1714 = vmatprep.subr.mxu0 0.0
  %1715 = vmatpush1.msra.mxu0 0.0
  %1716 = vmatprep.subr.mxu0 0.0
  %1717 = vmatpush1.msra.mxu0 0.0
  %1718 = vmatprep.subr.mxu0 0.0
  %1719 = vmatpush1.msra.mxu0 0.0
  %1720 = vmatprep.subr.mxu0 0.0
  %1721 = vmatpush1.msra.mxu0 0.0
  %1722 = vmatprep.subr.mxu0 0.0
  %1723 = vmatpush1.msra.mxu0 0.0
  %1724 = vmatprep.subr.mxu0 0.0
  %1725 = vmatpush1.msra.mxu0 0.0
  %1726 = vmatprep.subr.mxu0 0.0
  %1727 = vmatpush1.msra.mxu0 0.0
  %1728 = vmatprep.subr.mxu0 0.0
  %1729 = vmatpush1.msra.mxu0 0.0
  %1730 = vmatprep.subr.mxu0 0.0
  %1731 = vmatpush1.msra.mxu0 0.0
  %1732 = vmatprep.subr.mxu0 0.0
  %1733 = vmatpush1.msra.mxu0 0.0
  %1734 = vmatprep.subr.mxu0 0.0
  %1735 = vmatpush1.msra.mxu0 0.0
  %1736 = vmatprep.subr.mxu0 0.0
  %1737 = vmatpush1.msra.mxu0 0.0
  %1738 = vmatprep.subr.mxu0 0.0
  %1739 = vmatpush1.msra.mxu0 0.0
  %1740 = vmatprep.subr.mxu0 0.0
  %1741 = vmatpush1.msra.mxu0 0.0
  %1742 = vmatprep.mubr.f32.mxu0 0.0
  %1743 = vmatmul.mubr.f32.gmra.mrb[0].mxu0 %v1667
  %v1744 = vpop.f32.mrb[0].mxu0
  %v1745 = vadd.f32 0.0, %v1744
  %v1746 = vpop.f32.mrb[0].mxu0
  %1747 = vmatprep.mubr.f32.mxu0 0.0
  %1748 = vmatmul.mubr.f32.gmra.mrb[0].mxu0 %v1670
  %v1749 = vpop.f32.mrb[0].mxu0
  %v1750 = vadd.f32 0.0, %v1749
  %v1751 = vpop.f32.mrb[0].mxu0
  %1752 = vmatprep.mubr.f32.mxu0 0.0
  %1753 = vmatmul.mubr.f32.gmra.mrb[0].mxu0 %v1673
  %v1754 = vpop.f32.mrb[0].mxu0
  %v1755 = vadd.f32 0.0, %v1754
  %v1756 = vpop.f32.mrb[0].mxu0
  %1757 = vmatprep.mubr.f32.mxu0 0.0
  %1758 = vmatmul.mubr.f32.gmra.mrb[0].mxu0 %v1676
  %v1759 = vpop.f32.mrb[0].mxu0
  %v1760 = vadd.f32 0.0, %v1759
  %v1761 = vpop.f32.mrb[0].mxu0
  %1762 = vdwg.mxu0
  %v1763 = vadd.f32 %v1546, %v1745
  %v1764 = vadd.f32 %v1547, %v1750
  %v1765 = vadd.f32 %v1548, %v1755
  %v1766 = vadd.f32 %v1549, %v1760
  %s1767 = scalar_lea.vmem %s0, 256
  %v1768 = vld [vmem:[%s1767] sm:$0xff]
  %v1769 = vld [vmem:[%s1767 + $0x8] sm:$0xff]
  %v1770 = vld [vmem:[%s1767 + $0x10] sm:$0xff]
  %v1771 = vld [vmem:[%s1767 + $0x18] sm:$0xff]
  %v1773 = vsel %vm43, %v1768, 0
  %v1776 = vsel %vm43, %v1769, 0
  %v1779 = vsel %vm43, %v1770, 0
  %v1782 = vsel %vm43, %v1771, 0
  %1784 = vmatprep.subr.mxu0 0.0
  %1785 = vmatpush1.msra.mxu0 %v31
  %1786 = vmatprep.subr.mxu0 0.0
  %1787 = vmatpush1.msra.mxu0 %v32
  %1788 = vmatprep.subr.mxu0 0.0
  %1789 = vmatpush1.msra.mxu0 %v33
  %1790 = vmatprep.subr.mxu0 0.0
  %1791 = vmatpush1.msra.mxu0 %v34
  %1792 = vmatprep.subr.mxu0 0.0
  %1793 = vmatpush1.msra.mxu0 %v35
  %1794 = vmatprep.subr.mxu0 0.0
  %1795 = vmatpush1.msra.mxu0 %v36
  %1796 = vmatprep.subr.mxu0 0.0
  %1797 = vmatpush1.msra.mxu0 %v37
  %1798 = vmatprep.subr.mxu0 0.0
  %1799 = vmatpush1.msra.mxu0 %v38
  %1800 = vmatprep.subr.mxu0 0.0
  %1801 = vmatpush1.msra.mxu0 0.0
  %1802 = vmatprep.subr.mxu0 0.0
  %1803 = vmatpush1.msra.mxu0 0.0
  %1804 = vmatprep.subr.mxu0 0.0
  %1805 = vmatpush1.msra.mxu0 0.0
  %1806 = vmatprep.subr.mxu0 0.0
  %1807 = vmatpush1.msra.mxu0 0.0
  %1808 = vmatprep.subr.mxu0 0.0
  %1809 = vmatpush1.msra.mxu0 0.0
  %1810 = vmatprep.subr.mxu0 0.0
  %1811 = vmatpush1.msra.mxu0 0.0
  %1812 = vmatprep.subr.mxu0 0.0
  %1813 = vmatpush1.msra.mxu0 0.0
  %1814 = vmatprep.subr.mxu0 0.0
  %1815 = vmatpush1.msra.mxu0 0.0
  %1816 = vmatprep.subr.mxu0 0.0
  %1817 = vmatpush1.msra.mxu0 0.0
  %1818 = vmatprep.subr.mxu0 0.0
  %1819 = vmatpush1.msra.mxu0 0.0
  %1820 = vmatprep.subr.mxu0 0.0
  %1821 = vmatpush1.msra.mxu0 0.0
  %1822 = vmatprep.subr.mxu0 0.0
  %1823 = vmatpush1.msra.mxu0 0.0
  %1824 = vmatprep.subr.mxu0 0.0
  %1825 = vmatpush1.msra.mxu0 0.0
  %1826 = vmatprep.subr.mxu0 0.0
  %1827 = vmatpush1.msra.mxu0 0.0
  %1828 = vmatprep.subr.mxu0 0.0
  %1829 = vmatpush1.msra.mxu0 0.0
  %1830 = vmatprep.subr.mxu0 0.0
  %1831 = vmatpush1.msra.mxu0 0.0
  %1832 = vmatprep.subr.mxu0 0.0
  %1833 = vmatpush1.msra.mxu0 0.0
  %1834 = vmatprep.subr.mxu0 0.0
  %1835 = vmatpush1.msra.mxu0 0.0
  %1836 = vmatprep.subr.mxu0 0.0
  %1837 = vmatpush1.msra.mxu0 0.0
  %1838 = vmatprep.subr.mxu0 0.0
  %1839 = vmatpush1.msra.mxu0 0.0
  %1840 = vmatprep.subr.mxu0 0.0
  %1841 = vmatpush1.msra.mxu0 0.0
  %1842 = vmatprep.subr.mxu0 0.0
  %1843 = vmatpush1.msra.mxu0 0.0
  %1844 = vmatprep.subr.mxu0 0.0
  %1845 = vmatpush1.msra.mxu0 0.0
  %1846 = vmatprep.subr.mxu0 0.0
  %1847 = vmatpush1.msra.mxu0 0.0
  %1848 = vmatprep.mubr.f32.mxu0 0.0
  %1849 = vmatmul.mubr.f32.gmra.mrb[0].mxu0 %v1773
  %v1850 = vpop.f32.mrb[0].mxu0
  %v1851 = vadd.f32 0.0, %v1850
  %v1852 = vpop.f32.mrb[0].mxu0
  %1853 = vmatprep.mubr.f32.mxu0 0.0
  %1854 = vmatmul.mubr.f32.gmra.mrb[0].mxu0 %v1776
  %v1855 = vpop.f32.mrb[0].mxu0
  %v1856 = vadd.f32 0.0, %v1855
  %v1857 = vpop.f32.mrb[0].mxu0
  %1858 = vmatprep.mubr.f32.mxu0 0.0
  %1859 = vmatmul.mubr.f32.gmra.mrb[0].mxu0 %v1779
  %v1860 = vpop.f32.mrb[0].mxu0
  %v1861 = vadd.f32 0.0, %v1860
  %v1862 = vpop.f32.mrb[0].mxu0
  %1863 = vmatprep.mubr.f32.mxu0 0.0
  %1864 = vmatmul.mubr.f32.gmra.mrb[0].mxu0 %v1782
  %v1865 = vpop.f32.mrb[0].mxu0
  %v1866 = vadd.f32 0.0, %v1865
  %v1867 = vpop.f32.mrb[0].mxu0
  %1868 = vdwg.mxu0
  %vm1869 = vcmp.gt.f32.partialorder %v1851, 0.0
  %vm1870 = vcmp.gt.f32.partialorder %v1856, 0.0
  %vm1871 = vcmp.gt.f32.partialorder %v1861, 0.0
  %vm1872 = vcmp.gt.f32.partialorder %v1866, 0.0
  %v1873 = vmul.f32 %v1851, 0.2
  %v1874 = vmul.f32 %v1856, 0.2
  %v1875 = vmul.f32 %v1861, 0.2
  %v1876 = vmul.f32 %v1866, 0.2
  %v1877 = vsel %vm1869, %v1851, %v1873
  %v1878 = vsel %vm1870, %v1856, %v1874
  %v1879 = vsel %vm1871, %v1861, %v1875
  %v1880 = vsel %vm1872, %v1866, %v1876
  %s1881 = scalar_lea.vmem %s2, 64
  %v1882 = vld [vmem:[%s1881] sm:$0xff]
  %v1884 = vsel %vm270, %v1877, 0
  %v1887 = vsel %vm270, %v1878, 0
  %v1890 = vsel %vm270, %v1879, 0
  %v1893 = vsel %vm270, %v1880, 0
  %1895 = vmatprep.subr.mxu0 0.0
  %1896 = vmatpush1.msra.mxu0 %v1882
  %1897 = vmatprep.subr.mxu0 0.0
  %1898 = vmatpush1.msra.mxu0 0.0
  %1899 = vmatprep.subr.mxu0 0.0
  %1900 = vmatpush1.msra.mxu0 0.0
  %1901 = vmatprep.subr.mxu0 0.0
  %1902 = vmatpush1.msra.mxu0 0.0
  %1903 = vmatprep.subr.mxu0 0.0
  %1904 = vmatpush1.msra.mxu0 0.0
  %1905 = vmatprep.subr.mxu0 0.0
  %1906 = vmatpush1.msra.mxu0 0.0
  %1907 = vmatprep.subr.mxu0 0.0
  %1908 = vmatpush1.msra.mxu0 0.0
  %1909 = vmatprep.subr.mxu0 0.0
  %1910 = vmatpush1.msra.mxu0 0.0
  %1911 = vmatprep.subr.mxu0 0.0
  %1912 = vmatpush1.msra.mxu0 0.0
  %1913 = vmatprep.subr.mxu0 0.0
  %1914 = vmatpush1.msra.mxu0 0.0
  %1915 = vmatprep.subr.mxu0 0.0
  %1916 = vmatpush1.msra.mxu0 0.0
  %1917 = vmatprep.subr.mxu0 0.0
  %1918 = vmatpush1.msra.mxu0 0.0
  %1919 = vmatprep.subr.mxu0 0.0
  %1920 = vmatpush1.msra.mxu0 0.0
  %1921 = vmatprep.subr.mxu0 0.0
  %1922 = vmatpush1.msra.mxu0 0.0
  %1923 = vmatprep.subr.mxu0 0.0
  %1924 = vmatpush1.msra.mxu0 0.0
  %1925 = vmatprep.subr.mxu0 0.0
  %1926 = vmatpush1.msra.mxu0 0.0
  %1927 = vmatprep.subr.mxu0 0.0
  %1928 = vmatpush1.msra.mxu0 0.0
  %1929 = vmatprep.subr.mxu0 0.0
  %1930 = vmatpush1.msra.mxu0 0.0
  %1931 = vmatprep.subr.mxu0 0.0
  %1932 = vmatpush1.msra.mxu0 0.0
  %1933 = vmatprep.subr.mxu0 0.0
  %1934 = vmatpush1.msra.mxu0 0.0
  %1935 = vmatprep.subr.mxu0 0.0
  %1936 = vmatpush1.msra.mxu0 0.0
  %1937 = vmatprep.subr.mxu0 0.0
  %1938 = vmatpush1.msra.mxu0 0.0
  %1939 = vmatprep.subr.mxu0 0.0
  %1940 = vmatpush1.msra.mxu0 0.0
  %1941 = vmatprep.subr.mxu0 0.0
  %1942 = vmatpush1.msra.mxu0 0.0
  %1943 = vmatprep.subr.mxu0 0.0
  %1944 = vmatpush1.msra.mxu0 0.0
  %1945 = vmatprep.subr.mxu0 0.0
  %1946 = vmatpush1.msra.mxu0 0.0
  %1947 = vmatprep.subr.mxu0 0.0
  %1948 = vmatpush1.msra.mxu0 0.0
  %1949 = vmatprep.subr.mxu0 0.0
  %1950 = vmatpush1.msra.mxu0 0.0
  %1951 = vmatprep.subr.mxu0 0.0
  %1952 = vmatpush1.msra.mxu0 0.0
  %1953 = vmatprep.subr.mxu0 0.0
  %1954 = vmatpush1.msra.mxu0 0.0
  %1955 = vmatprep.subr.mxu0 0.0
  %1956 = vmatpush1.msra.mxu0 0.0
  %1957 = vmatprep.subr.mxu0 0.0
  %1958 = vmatpush1.msra.mxu0 0.0
  %1959 = vmatprep.mubr.f32.mxu0 0.0
  %1960 = vmatmul.mubr.f32.gmra.mrb[0].mxu0 %v1884
  %v1961 = vpop.f32.mrb[0].mxu0
  %v1962 = vadd.f32 0.0, %v1961
  %v1963 = vpop.f32.mrb[0].mxu0
  %1964 = vmatprep.mubr.f32.mxu0 0.0
  %1965 = vmatmul.mubr.f32.gmra.mrb[0].mxu0 %v1887
  %v1966 = vpop.f32.mrb[0].mxu0
  %v1967 = vadd.f32 0.0, %v1966
  %v1968 = vpop.f32.mrb[0].mxu0
  %1969 = vmatprep.mubr.f32.mxu0 0.0
  %1970 = vmatmul.mubr.f32.gmra.mrb[0].mxu0 %v1890
  %v1971 = vpop.f32.mrb[0].mxu0
  %v1972 = vadd.f32 0.0, %v1971
  %v1973 = vpop.f32.mrb[0].mxu0
  %1974 = vmatprep.mubr.f32.mxu0 0.0
  %1975 = vmatmul.mubr.f32.gmra.mrb[0].mxu0 %v1893
  %v1976 = vpop.f32.mrb[0].mxu0
  %v1977 = vadd.f32 0.0, %v1976
  %v1978 = vpop.f32.mrb[0].mxu0
  %1979 = vdwg.mxu0
  %v1980 = vadd.f32 %v1763, %v1962
  %v1981 = vadd.f32 %v1764, %v1967
  %v1982 = vadd.f32 %v1765, %v1972
  %v1983 = vadd.f32 %v1766, %v1977
  %s1984 = scalar_lea.vmem %s0, 288
  %v1985 = vld [vmem:[%s1984] sm:$0xff]
  %v1986 = vld [vmem:[%s1984 + $0x8] sm:$0xff]
  %v1987 = vld [vmem:[%s1984 + $0x10] sm:$0xff]
  %v1988 = vld [vmem:[%s1984 + $0x18] sm:$0xff]
  %v1990 = vsel %vm43, %v1985, 0
  %v1993 = vsel %vm43, %v1986, 0
  %v1996 = vsel %vm43, %v1987, 0
  %v1999 = vsel %vm43, %v1988, 0
  %2001 = vmatprep.subr.mxu0 0.0
  %2002 = vmatpush1.msra.mxu0 %v31
  %2003 = vmatprep.subr.mxu0 0.0
  %2004 = vmatpush1.msra.mxu0 %v32
  %2005 = vmatprep.subr.mxu0 0.0
  %2006 = vmatpush1.msra.mxu0 %v33
  %2007 = vmatprep.subr.mxu0 0.0
  %2008 = vmatpush1.msra.mxu0 %v34
  %2009 = vmatprep.subr.mxu0 0.0
  %2010 = vmatpush1.msra.mxu0 %v35
  %2011 = vmatprep.subr.mxu0 0.0
  %2012 = vmatpush1.msra.mxu0 %v36
  %2013 = vmatprep.subr.mxu0 0.0
  %2014 = vmatpush1.msra.mxu0 %v37
  %2015 = vmatprep.subr.mxu0 0.0
  %2016 = vmatpush1.msra.mxu0 %v38
  %2017 = vmatprep.subr.mxu0 0.0
  %2018 = vmatpush1.msra.mxu0 0.0
  %2019 = vmatprep.subr.mxu0 0.0
  %2020 = vmatpush1.msra.mxu0 0.0
  %2021 = vmatprep.subr.mxu0 0.0
  %2022 = vmatpush1.msra.mxu0 0.0
  %2023 = vmatprep.subr.mxu0 0.0
  %2024 = vmatpush1.msra.mxu0 0.0
  %2025 = vmatprep.subr.mxu0 0.0
  %2026 = vmatpush1.msra.mxu0 0.0
  %2027 = vmatprep.subr.mxu0 0.0
  %2028 = vmatpush1.msra.mxu0 0.0
  %2029 = vmatprep.subr.mxu0 0.0
  %2030 = vmatpush1.msra.mxu0 0.0
  %2031 = vmatprep.subr.mxu0 0.0
  %2032 = vmatpush1.msra.mxu0 0.0
  %2033 = vmatprep.subr.mxu0 0.0
  %2034 = vmatpush1.msra.mxu0 0.0
  %2035 = vmatprep.subr.mxu0 0.0
  %2036 = vmatpush1.msra.mxu0 0.0
  %2037 = vmatprep.subr.mxu0 0.0
  %2038 = vmatpush1.msra.mxu0 0.0
  %2039 = vmatprep.subr.mxu0 0.0
  %2040 = vmatpush1.msra.mxu0 0.0
  %2041 = vmatprep.subr.mxu0 0.0
  %2042 = vmatpush1.msra.mxu0 0.0
  %2043 = vmatprep.subr.mxu0 0.0
  %2044 = vmatpush1.msra.mxu0 0.0
  %2045 = vmatprep.subr.mxu0 0.0
  %2046 = vmatpush1.msra.mxu0 0.0
  %2047 = vmatprep.subr.mxu0 0.0
  %2048 = vmatpush1.msra.mxu0 0.0
  %2049 = vmatprep.subr.mxu0 0.0
  %2050 = vmatpush1.msra.mxu0 0.0
  %2051 = vmatprep.subr.mxu0 0.0
  %2052 = vmatpush1.msra.mxu0 0.0
  %2053 = vmatprep.subr.mxu0 0.0
  %2054 = vmatpush1.msra.mxu0 0.0
  %2055 = vmatprep.subr.mxu0 0.0
  %2056 = vmatpush1.msra.mxu0 0.0
  %2057 = vmatprep.subr.mxu0 0.0
  %2058 = vmatpush1.msra.mxu0 0.0
  %2059 = vmatprep.subr.mxu0 0.0
  %2060 = vmatpush1.msra.mxu0 0.0
  %2061 = vmatprep.subr.mxu0 0.0
  %2062 = vmatpush1.msra.mxu0 0.0
  %2063 = vmatprep.subr.mxu0 0.0
  %2064 = vmatpush1.msra.mxu0 0.0
  %2065 = vmatprep.mubr.f32.mxu0 0.0
  %2066 = vmatmul.mubr.f32.gmra.mrb[0].mxu0 %v1990
  %v2067 = vpop.f32.mrb[0].mxu0
  %v2068 = vadd.f32 0.0, %v2067
  %v2069 = vpop.f32.mrb[0].mxu0
  %2070 = vmatprep.mubr.f32.mxu0 0.0
  %2071 = vmatmul.mubr.f32.gmra.mrb[0].mxu0 %v1993
  %v2072 = vpop.f32.mrb[0].mxu0
  %v2073 = vadd.f32 0.0, %v2072
  %v2074 = vpop.f32.mrb[0].mxu0
  %2075 = vmatprep.mubr.f32.mxu0 0.0
  %2076 = vmatmul.mubr.f32.gmra.mrb[0].mxu0 %v1996
  %v2077 = vpop.f32.mrb[0].mxu0
  %v2078 = vadd.f32 0.0, %v2077
  %v2079 = vpop.f32.mrb[0].mxu0
  %2080 = vmatprep.mubr.f32.mxu0 0.0
  %2081 = vmatmul.mubr.f32.gmra.mrb[0].mxu0 %v1999
  %v2082 = vpop.f32.mrb[0].mxu0
  %v2083 = vadd.f32 0.0, %v2082
  %v2084 = vpop.f32.mrb[0].mxu0
  %2085 = vdwg.mxu0
  %vm2086 = vcmp.gt.f32.partialorder %v2068, 0.0
  %vm2087 = vcmp.gt.f32.partialorder %v2073, 0.0
  %vm2088 = vcmp.gt.f32.partialorder %v2078, 0.0
  %vm2089 = vcmp.gt.f32.partialorder %v2083, 0.0
  %v2090 = vmul.f32 %v2068, 0.2
  %v2091 = vmul.f32 %v2073, 0.2
  %v2092 = vmul.f32 %v2078, 0.2
  %v2093 = vmul.f32 %v2083, 0.2
  %v2094 = vsel %vm2086, %v2068, %v2090
  %v2095 = vsel %vm2087, %v2073, %v2091
  %v2096 = vsel %vm2088, %v2078, %v2092
  %v2097 = vsel %vm2089, %v2083, %v2093
  %s2098 = scalar_lea.vmem %s2, 72
  %v2099 = vld [vmem:[%s2098] sm:$0xff]
  %v2101 = vsel %vm270, %v2094, 0
  %v2104 = vsel %vm270, %v2095, 0
  %v2107 = vsel %vm270, %v2096, 0
  %v2110 = vsel %vm270, %v2097, 0
  %2112 = vmatprep.subr.mxu0 0.0
  %2113 = vmatpush1.msra.mxu0 %v2099
  %2114 = vmatprep.subr.mxu0 0.0
  %2115 = vmatpush1.msra.mxu0 0.0
  %2116 = vmatprep.subr.mxu0 0.0
  %2117 = vmatpush1.msra.mxu0 0.0
  %2118 = vmatprep.subr.mxu0 0.0
  %2119 = vmatpush1.msra.mxu0 0.0
  %2120 = vmatprep.subr.mxu0 0.0
  %2121 = vmatpush1.msra.mxu0 0.0
  %2122 = vmatprep.subr.mxu0 0.0
  %2123 = vmatpush1.msra.mxu0 0.0
  %2124 = vmatprep.subr.mxu0 0.0
  %2125 = vmatpush1.msra.mxu0 0.0
  %2126 = vmatprep.subr.mxu0 0.0
  %2127 = vmatpush1.msra.mxu0 0.0
  %2128 = vmatprep.subr.mxu0 0.0
  %2129 = vmatpush1.msra.mxu0 0.0
  %2130 = vmatprep.subr.mxu0 0.0
  %2131 = vmatpush1.msra.mxu0 0.0
  %2132 = vmatprep.subr.mxu0 0.0
  %2133 = vmatpush1.msra.mxu0 0.0
  %2134 = vmatprep.subr.mxu0 0.0
  %2135 = vmatpush1.msra.mxu0 0.0
  %2136 = vmatprep.subr.mxu0 0.0
  %2137 = vmatpush1.msra.mxu0 0.0
  %2138 = vmatprep.subr.mxu0 0.0
  %2139 = vmatpush1.msra.mxu0 0.0
  %2140 = vmatprep.subr.mxu0 0.0
  %2141 = vmatpush1.msra.mxu0 0.0
  %2142 = vmatprep.subr.mxu0 0.0
  %2143 = vmatpush1.msra.mxu0 0.0
  %2144 = vmatprep.subr.mxu0 0.0
  %2145 = vmatpush1.msra.mxu0 0.0
  %2146 = vmatprep.subr.mxu0 0.0
  %2147 = vmatpush1.msra.mxu0 0.0
  %2148 = vmatprep.subr.mxu0 0.0
  %2149 = vmatpush1.msra.mxu0 0.0
  %2150 = vmatprep.subr.mxu0 0.0
  %2151 = vmatpush1.msra.mxu0 0.0
  %2152 = vmatprep.subr.mxu0 0.0
  %2153 = vmatpush1.msra.mxu0 0.0
  %2154 = vmatprep.subr.mxu0 0.0
  %2155 = vmatpush1.msra.mxu0 0.0
  %2156 = vmatprep.subr.mxu0 0.0
  %2157 = vmatpush1.msra.mxu0 0.0
  %2158 = vmatprep.subr.mxu0 0.0
  %2159 = vmatpush1.msra.mxu0 0.0
  %2160 = vmatprep.subr.mxu0 0.0
  %2161 = vmatpush1.msra.mxu0 0.0
  %2162 = vmatprep.subr.mxu0 0.0
  %2163 = vmatpush1.msra.mxu0 0.0
  %2164 = vmatprep.subr.mxu0 0.0
  %2165 = vmatpush1.msra.mxu0 0.0
  %2166 = vmatprep.subr.mxu0 0.0
  %2167 = vmatpush1.msra.mxu0 0.0
  %2168 = vmatprep.subr.mxu0 0.0
  %2169 = vmatpush1.msra.mxu0 0.0
  %2170 = vmatprep.subr.mxu0 0.0
  %2171 = vmatpush1.msra.mxu0 0.0
  %2172 = vmatprep.subr.mxu0 0.0
  %2173 = vmatpush1.msra.mxu0 0.0
  %2174 = vmatprep.subr.mxu0 0.0
  %2175 = vmatpush1.msra.mxu0 0.0
  %2176 = vmatprep.mubr.f32.mxu0 0.0
  %2177 = vmatmul.mubr.f32.gmra.mrb[0].mxu0 %v2101
  %v2178 = vpop.f32.mrb[0].mxu0
  %v2179 = vadd.f32 0.0, %v2178
  %v2180 = vpop.f32.mrb[0].mxu0
  %2181 = vmatprep.mubr.f32.mxu0 0.0
  %2182 = vmatmul.mubr.f32.gmra.mrb[0].mxu0 %v2104
  %v2183 = vpop.f32.mrb[0].mxu0
  %v2184 = vadd.f32 0.0, %v2183
  %v2185 = vpop.f32.mrb[0].mxu0
  %2186 = vmatprep.mubr.f32.mxu0 0.0
  %2187 = vmatmul.mubr.f32.gmra.mrb[0].mxu0 %v2107
  %v2188 = vpop.f32.mrb[0].mxu0
  %v2189 = vadd.f32 0.0, %v2188
  %v2190 = vpop.f32.mrb[0].mxu0
  %2191 = vmatprep.mubr.f32.mxu0 0.0
  %2192 = vmatmul.mubr.f32.gmra.mrb[0].mxu0 %v2110
  %v2193 = vpop.f32.mrb[0].mxu0
  %v2194 = vadd.f32 0.0, %v2193
  %v2195 = vpop.f32.mrb[0].mxu0
  %2196 = vdwg.mxu0
  %v2197 = vadd.f32 %v1980, %v2179
  %v2198 = vadd.f32 %v1981, %v2184
  %v2199 = vadd.f32 %v1982, %v2189
  %v2200 = vadd.f32 %v1983, %v2194
  %s2201 = scalar_lea.vmem %s0, 320
  %v2202 = vld [vmem:[%s2201] sm:$0xff]
  %v2203 = vld [vmem:[%s2201 + $0x8] sm:$0xff]
  %v2204 = vld [vmem:[%s2201 + $0x10] sm:$0xff]
  %v2205 = vld [vmem:[%s2201 + $0x18] sm:$0xff]
  %v2207 = vsel %vm43, %v2202, 0
  %v2210 = vsel %vm43, %v2203, 0
  %v2213 = vsel %vm43, %v2204, 0
  %v2216 = vsel %vm43, %v2205, 0
  %2218 = vmatprep.subr.mxu0 0.0
  %2219 = vmatpush1.msra.mxu0 %v31
  %2220 = vmatprep.subr.mxu0 0.0
  %2221 = vmatpush1.msra.mxu0 %v32
  %2222 = vmatprep.subr.mxu0 0.0
  %2223 = vmatpush1.msra.mxu0 %v33
  %2224 = vmatprep.subr.mxu0 0.0
  %2225 = vmatpush1.msra.mxu0 %v34
  %2226 = vmatprep.subr.mxu0 0.0
  %2227 = vmatpush1.msra.mxu0 %v35
  %2228 = vmatprep.subr.mxu0 0.0
  %2229 = vmatpush1.msra.mxu0 %v36
  %2230 = vmatprep.subr.mxu0 0.0
  %2231 = vmatpush1.msra.mxu0 %v37
  %2232 = vmatprep.subr.mxu0 0.0
  %2233 = vmatpush1.msra.mxu0 %v38
  %2234 = vmatprep.subr.mxu0 0.0
  %2235 = vmatpush1.msra.mxu0 0.0
  %2236 = vmatprep.subr.mxu0 0.0
  %2237 = vmatpush1.msra.mxu0 0.0
  %2238 = vmatprep.subr.mxu0 0.0
  %2239 = vmatpush1.msra.mxu0 0.0
  %2240 = vmatprep.subr.mxu0 0.0
  %2241 = vmatpush1.msra.mxu0 0.0
  %2242 = vmatprep.subr.mxu0 0.0
  %2243 = vmatpush1.msra.mxu0 0.0
  %2244 = vmatprep.subr.mxu0 0.0
  %2245 = vmatpush1.msra.mxu0 0.0
  %2246 = vmatprep.subr.mxu0 0.0
  %2247 = vmatpush1.msra.mxu0 0.0
  %2248 = vmatprep.subr.mxu0 0.0
  %2249 = vmatpush1.msra.mxu0 0.0
  %2250 = vmatprep.subr.mxu0 0.0
  %2251 = vmatpush1.msra.mxu0 0.0
  %2252 = vmatprep.subr.mxu0 0.0
  %2253 = vmatpush1.msra.mxu0 0.0
  %2254 = vmatprep.subr.mxu0 0.0
  %2255 = vmatpush1.msra.mxu0 0.0
  %2256 = vmatprep.subr.mxu0 0.0
  %2257 = vmatpush1.msra.mxu0 0.0
  %2258 = vmatprep.subr.mxu0 0.0
  %2259 = vmatpush1.msra.mxu0 0.0
  %2260 = vmatprep.subr.mxu0 0.0
  %2261 = vmatpush1.msra.mxu0 0.0
  %2262 = vmatprep.subr.mxu0 0.0
  %2263 = vmatpush1.msra.mxu0 0.0
  %2264 = vmatprep.subr.mxu0 0.0
  %2265 = vmatpush1.msra.mxu0 0.0
  %2266 = vmatprep.subr.mxu0 0.0
  %2267 = vmatpush1.msra.mxu0 0.0
  %2268 = vmatprep.subr.mxu0 0.0
  %2269 = vmatpush1.msra.mxu0 0.0
  %2270 = vmatprep.subr.mxu0 0.0
  %2271 = vmatpush1.msra.mxu0 0.0
  %2272 = vmatprep.subr.mxu0 0.0
  %2273 = vmatpush1.msra.mxu0 0.0
  %2274 = vmatprep.subr.mxu0 0.0
  %2275 = vmatpush1.msra.mxu0 0.0
  %2276 = vmatprep.subr.mxu0 0.0
  %2277 = vmatpush1.msra.mxu0 0.0
  %2278 = vmatprep.subr.mxu0 0.0
  %2279 = vmatpush1.msra.mxu0 0.0
  %2280 = vmatprep.subr.mxu0 0.0
  %2281 = vmatpush1.msra.mxu0 0.0
  %2282 = vmatprep.mubr.f32.mxu0 0.0
  %2283 = vmatmul.mubr.f32.gmra.mrb[0].mxu0 %v2207
  %v2284 = vpop.f32.mrb[0].mxu0
  %v2285 = vadd.f32 0.0, %v2284
  %v2286 = vpop.f32.mrb[0].mxu0
  %2287 = vmatprep.mubr.f32.mxu0 0.0
  %2288 = vmatmul.mubr.f32.gmra.mrb[0].mxu0 %v2210
  %v2289 = vpop.f32.mrb[0].mxu0
  %v2290 = vadd.f32 0.0, %v2289
  %v2291 = vpop.f32.mrb[0].mxu0
  %2292 = vmatprep.mubr.f32.mxu0 0.0
  %2293 = vmatmul.mubr.f32.gmra.mrb[0].mxu0 %v2213
  %v2294 = vpop.f32.mrb[0].mxu0
  %v2295 = vadd.f32 0.0, %v2294
  %v2296 = vpop.f32.mrb[0].mxu0
  %2297 = vmatprep.mubr.f32.mxu0 0.0
  %2298 = vmatmul.mubr.f32.gmra.mrb[0].mxu0 %v2216
  %v2299 = vpop.f32.mrb[0].mxu0
  %v2300 = vadd.f32 0.0, %v2299
  %v2301 = vpop.f32.mrb[0].mxu0
  %2302 = vdwg.mxu0
  %vm2303 = vcmp.gt.f32.partialorder %v2285, 0.0
  %vm2304 = vcmp.gt.f32.partialorder %v2290, 0.0
  %vm2305 = vcmp.gt.f32.partialorder %v2295, 0.0
  %vm2306 = vcmp.gt.f32.partialorder %v2300, 0.0
  %v2307 = vmul.f32 %v2285, 0.2
  %v2308 = vmul.f32 %v2290, 0.2
  %v2309 = vmul.f32 %v2295, 0.2
  %v2310 = vmul.f32 %v2300, 0.2
  %v2311 = vsel %vm2303, %v2285, %v2307
  %v2312 = vsel %vm2304, %v2290, %v2308
  %v2313 = vsel %vm2305, %v2295, %v2309
  %v2314 = vsel %vm2306, %v2300, %v2310
  %s2315 = scalar_lea.vmem %s2, 80
  %v2316 = vld [vmem:[%s2315] sm:$0xff]
  %v2318 = vsel %vm270, %v2311, 0
  %v2321 = vsel %vm270, %v2312, 0
  %v2324 = vsel %vm270, %v2313, 0
  %v2327 = vsel %vm270, %v2314, 0
  %2329 = vmatprep.subr.mxu0 0.0
  %2330 = vmatpush1.msra.mxu0 %v2316
  %2331 = vmatprep.subr.mxu0 0.0
  %2332 = vmatpush1.msra.mxu0 0.0
  %2333 = vmatprep.subr.mxu0 0.0
  %2334 = vmatpush1.msra.mxu0 0.0
  %2335 = vmatprep.subr.mxu0 0.0
  %2336 = vmatpush1.msra.mxu0 0.0
  %2337 = vmatprep.subr.mxu0 0.0
  %2338 = vmatpush1.msra.mxu0 0.0
  %2339 = vmatprep.subr.mxu0 0.0
  %2340 = vmatpush1.msra.mxu0 0.0
  %2341 = vmatprep.subr.mxu0 0.0
  %2342 = vmatpush1.msra.mxu0 0.0
  %2343 = vmatprep.subr.mxu0 0.0
  %2344 = vmatpush1.msra.mxu0 0.0
  %2345 = vmatprep.subr.mxu0 0.0
  %2346 = vmatpush1.msra.mxu0 0.0
  %2347 = vmatprep.subr.mxu0 0.0
  %2348 = vmatpush1.msra.mxu0 0.0
  %2349 = vmatprep.subr.mxu0 0.0
  %2350 = vmatpush1.msra.mxu0 0.0
  %2351 = vmatprep.subr.mxu0 0.0
  %2352 = vmatpush1.msra.mxu0 0.0
  %2353 = vmatprep.subr.mxu0 0.0
  %2354 = vmatpush1.msra.mxu0 0.0
  %2355 = vmatprep.subr.mxu0 0.0
  %2356 = vmatpush1.msra.mxu0 0.0
  %2357 = vmatprep.subr.mxu0 0.0
  %2358 = vmatpush1.msra.mxu0 0.0
  %2359 = vmatprep.subr.mxu0 0.0
  %2360 = vmatpush1.msra.mxu0 0.0
  %2361 = vmatprep.subr.mxu0 0.0
  %2362 = vmatpush1.msra.mxu0 0.0
  %2363 = vmatprep.subr.mxu0 0.0
  %2364 = vmatpush1.msra.mxu0 0.0
  %2365 = vmatprep.subr.mxu0 0.0
  %2366 = vmatpush1.msra.mxu0 0.0
  %2367 = vmatprep.subr.mxu0 0.0
  %2368 = vmatpush1.msra.mxu0 0.0
  %2369 = vmatprep.subr.mxu0 0.0
  %2370 = vmatpush1.msra.mxu0 0.0
  %2371 = vmatprep.subr.mxu0 0.0
  %2372 = vmatpush1.msra.mxu0 0.0
  %2373 = vmatprep.subr.mxu0 0.0
  %2374 = vmatpush1.msra.mxu0 0.0
  %2375 = vmatprep.subr.mxu0 0.0
  %2376 = vmatpush1.msra.mxu0 0.0
  %2377 = vmatprep.subr.mxu0 0.0
  %2378 = vmatpush1.msra.mxu0 0.0
  %2379 = vmatprep.subr.mxu0 0.0
  %2380 = vmatpush1.msra.mxu0 0.0
  %2381 = vmatprep.subr.mxu0 0.0
  %2382 = vmatpush1.msra.mxu0 0.0
  %2383 = vmatprep.subr.mxu0 0.0
  %2384 = vmatpush1.msra.mxu0 0.0
  %2385 = vmatprep.subr.mxu0 0.0
  %2386 = vmatpush1.msra.mxu0 0.0
  %2387 = vmatprep.subr.mxu0 0.0
  %2388 = vmatpush1.msra.mxu0 0.0
  %2389 = vmatprep.subr.mxu0 0.0
  %2390 = vmatpush1.msra.mxu0 0.0
  %2391 = vmatprep.subr.mxu0 0.0
  %2392 = vmatpush1.msra.mxu0 0.0
  %2393 = vmatprep.mubr.f32.mxu0 0.0
  %2394 = vmatmul.mubr.f32.gmra.mrb[0].mxu0 %v2318
  %v2395 = vpop.f32.mrb[0].mxu0
  %v2396 = vadd.f32 0.0, %v2395
  %v2397 = vpop.f32.mrb[0].mxu0
  %2398 = vmatprep.mubr.f32.mxu0 0.0
  %2399 = vmatmul.mubr.f32.gmra.mrb[0].mxu0 %v2321
  %v2400 = vpop.f32.mrb[0].mxu0
  %v2401 = vadd.f32 0.0, %v2400
  %v2402 = vpop.f32.mrb[0].mxu0
  %2403 = vmatprep.mubr.f32.mxu0 0.0
  %2404 = vmatmul.mubr.f32.gmra.mrb[0].mxu0 %v2324
  %v2405 = vpop.f32.mrb[0].mxu0
  %v2406 = vadd.f32 0.0, %v2405
  %v2407 = vpop.f32.mrb[0].mxu0
  %2408 = vmatprep.mubr.f32.mxu0 0.0
  %2409 = vmatmul.mubr.f32.gmra.mrb[0].mxu0 %v2327
  %v2410 = vpop.f32.mrb[0].mxu0
  %v2411 = vadd.f32 0.0, %v2410
  %v2412 = vpop.f32.mrb[0].mxu0
  %2413 = vdwg.mxu0
  %v2414 = vadd.f32 %v2197, %v2396
  %v2415 = vadd.f32 %v2198, %v2401
  %v2416 = vadd.f32 %v2199, %v2406
  %v2417 = vadd.f32 %v2200, %v2411
  %s2418 = scalar_lea.vmem %s0, 352
  %v2419 = vld [vmem:[%s2418] sm:$0xff]
  %v2420 = vld [vmem:[%s2418 + $0x8] sm:$0xff]
  %v2421 = vld [vmem:[%s2418 + $0x10] sm:$0xff]
  %v2422 = vld [vmem:[%s2418 + $0x18] sm:$0xff]
  %v2424 = vsel %vm43, %v2419, 0
  %v2427 = vsel %vm43, %v2420, 0
  %v2430 = vsel %vm43, %v2421, 0
  %v2433 = vsel %vm43, %v2422, 0
  %2435 = vmatprep.subr.mxu0 0.0
  %2436 = vmatpush1.msra.mxu0 %v31
  %2437 = vmatprep.subr.mxu0 0.0
  %2438 = vmatpush1.msra.mxu0 %v32
  %2439 = vmatprep.subr.mxu0 0.0
  %2440 = vmatpush1.msra.mxu0 %v33
  %2441 = vmatprep.subr.mxu0 0.0
  %2442 = vmatpush1.msra.mxu0 %v34
  %2443 = vmatprep.subr.mxu0 0.0
  %2444 = vmatpush1.msra.mxu0 %v35
  %2445 = vmatprep.subr.mxu0 0.0
  %2446 = vmatpush1.msra.mxu0 %v36
  %2447 = vmatprep.subr.mxu0 0.0
  %2448 = vmatpush1.msra.mxu0 %v37
  %2449 = vmatprep.subr.mxu0 0.0
  %2450 = vmatpush1.msra.mxu0 %v38
  %2451 = vmatprep.subr.mxu0 0.0
  %2452 = vmatpush1.msra.mxu0 0.0
  %2453 = vmatprep.subr.mxu0 0.0
  %2454 = vmatpush1.msra.mxu0 0.0
  %2455 = vmatprep.subr.mxu0 0.0
  %2456 = vmatpush1.msra.mxu0 0.0
  %2457 = vmatprep.subr.mxu0 0.0
  %2458 = vmatpush1.msra.mxu0 0.0
  %2459 = vmatprep.subr.mxu0 0.0
  %2460 = vmatpush1.msra.mxu0 0.0
  %2461 = vmatprep.subr.mxu0 0.0
  %2462 = vmatpush1.msra.mxu0 0.0
  %2463 = vmatprep.subr.mxu0 0.0
  %2464 = vmatpush1.msra.mxu0 0.0
  %2465 = vmatprep.subr.mxu0 0.0
  %2466 = vmatpush1.msra.mxu0 0.0
  %2467 = vmatprep.subr.mxu0 0.0
  %2468 = vmatpush1.msra.mxu0 0.0
  %2469 = vmatprep.subr.mxu0 0.0
  %2470 = vmatpush1.msra.mxu0 0.0
  %2471 = vmatprep.subr.mxu0 0.0
  %2472 = vmatpush1.msra.mxu0 0.0
  %2473 = vmatprep.subr.mxu0 0.0
  %2474 = vmatpush1.msra.mxu0 0.0
  %2475 = vmatprep.subr.mxu0 0.0
  %2476 = vmatpush1.msra.mxu0 0.0
  %2477 = vmatprep.subr.mxu0 0.0
  %2478 = vmatpush1.msra.mxu0 0.0
  %2479 = vmatprep.subr.mxu0 0.0
  %2480 = vmatpush1.msra.mxu0 0.0
  %2481 = vmatprep.subr.mxu0 0.0
  %2482 = vmatpush1.msra.mxu0 0.0
  %2483 = vmatprep.subr.mxu0 0.0
  %2484 = vmatpush1.msra.mxu0 0.0
  %2485 = vmatprep.subr.mxu0 0.0
  %2486 = vmatpush1.msra.mxu0 0.0
  %2487 = vmatprep.subr.mxu0 0.0
  %2488 = vmatpush1.msra.mxu0 0.0
  %2489 = vmatprep.subr.mxu0 0.0
  %2490 = vmatpush1.msra.mxu0 0.0
  %2491 = vmatprep.subr.mxu0 0.0
  %2492 = vmatpush1.msra.mxu0 0.0
  %2493 = vmatprep.subr.mxu0 0.0
  %2494 = vmatpush1.msra.mxu0 0.0
  %2495 = vmatprep.subr.mxu0 0.0
  %2496 = vmatpush1.msra.mxu0 0.0
  %2497 = vmatprep.subr.mxu0 0.0
  %2498 = vmatpush1.msra.mxu0 0.0
  %2499 = vmatprep.mubr.f32.mxu0 0.0
  %2500 = vmatmul.mubr.f32.gmra.mrb[0].mxu0 %v2424
  %v2501 = vpop.f32.mrb[0].mxu0
  %v2502 = vadd.f32 0.0, %v2501
  %v2503 = vpop.f32.mrb[0].mxu0
  %2504 = vmatprep.mubr.f32.mxu0 0.0
  %2505 = vmatmul.mubr.f32.gmra.mrb[0].mxu0 %v2427
  %v2506 = vpop.f32.mrb[0].mxu0
  %v2507 = vadd.f32 0.0, %v2506
  %v2508 = vpop.f32.mrb[0].mxu0
  %2509 = vmatprep.mubr.f32.mxu0 0.0
  %2510 = vmatmul.mubr.f32.gmra.mrb[0].mxu0 %v2430
  %v2511 = vpop.f32.mrb[0].mxu0
  %v2512 = vadd.f32 0.0, %v2511
  %v2513 = vpop.f32.mrb[0].mxu0
  %2514 = vmatprep.mubr.f32.mxu0 0.0
  %2515 = vmatmul.mubr.f32.gmra.mrb[0].mxu0 %v2433
  %v2516 = vpop.f32.mrb[0].mxu0
  %v2517 = vadd.f32 0.0, %v2516
  %v2518 = vpop.f32.mrb[0].mxu0
  %2519 = vdwg.mxu0
  %vm2520 = vcmp.gt.f32.partialorder %v2502, 0.0
  %vm2521 = vcmp.gt.f32.partialorder %v2507, 0.0
  %vm2522 = vcmp.gt.f32.partialorder %v2512, 0.0
  %vm2523 = vcmp.gt.f32.partialorder %v2517, 0.0
  %v2524 = vmul.f32 %v2502, 0.2
  %v2525 = vmul.f32 %v2507, 0.2
  %v2526 = vmul.f32 %v2512, 0.2
  %v2527 = vmul.f32 %v2517, 0.2
  %v2528 = vsel %vm2520, %v2502, %v2524
  %v2529 = vsel %vm2521, %v2507, %v2525
  %v2530 = vsel %vm2522, %v2512, %v2526
  %v2531 = vsel %vm2523, %v2517, %v2527
  %s2532 = scalar_lea.vmem %s2, 88
  %v2533 = vld [vmem:[%s2532] sm:$0xff]
  %v2535 = vsel %vm270, %v2528, 0
  %v2538 = vsel %vm270, %v2529, 0
  %v2541 = vsel %vm270, %v2530, 0
  %v2544 = vsel %vm270, %v2531, 0
  %2546 = vmatprep.subr.mxu0 0.0
  %2547 = vmatpush1.msra.mxu0 %v2533
  %2548 = vmatprep.subr.mxu0 0.0
  %2549 = vmatpush1.msra.mxu0 0.0
  %2550 = vmatprep.subr.mxu0 0.0
  %2551 = vmatpush1.msra.mxu0 0.0
  %2552 = vmatprep.subr.mxu0 0.0
  %2553 = vmatpush1.msra.mxu0 0.0
  %2554 = vmatprep.subr.mxu0 0.0
  %2555 = vmatpush1.msra.mxu0 0.0
  %2556 = vmatprep.subr.mxu0 0.0
  %2557 = vmatpush1.msra.mxu0 0.0
  %2558 = vmatprep.subr.mxu0 0.0
  %2559 = vmatpush1.msra.mxu0 0.0
  %2560 = vmatprep.subr.mxu0 0.0
  %2561 = vmatpush1.msra.mxu0 0.0
  %2562 = vmatprep.subr.mxu0 0.0
  %2563 = vmatpush1.msra.mxu0 0.0
  %2564 = vmatprep.subr.mxu0 0.0
  %2565 = vmatpush1.msra.mxu0 0.0
  %2566 = vmatprep.subr.mxu0 0.0
  %2567 = vmatpush1.msra.mxu0 0.0
  %2568 = vmatprep.subr.mxu0 0.0
  %2569 = vmatpush1.msra.mxu0 0.0
  %2570 = vmatprep.subr.mxu0 0.0
  %2571 = vmatpush1.msra.mxu0 0.0
  %2572 = vmatprep.subr.mxu0 0.0
  %2573 = vmatpush1.msra.mxu0 0.0
  %2574 = vmatprep.subr.mxu0 0.0
  %2575 = vmatpush1.msra.mxu0 0.0
  %2576 = vmatprep.subr.mxu0 0.0
  %2577 = vmatpush1.msra.mxu0 0.0
  %2578 = vmatprep.subr.mxu0 0.0
  %2579 = vmatpush1.msra.mxu0 0.0
  %2580 = vmatprep.subr.mxu0 0.0
  %2581 = vmatpush1.msra.mxu0 0.0
  %2582 = vmatprep.subr.mxu0 0.0
  %2583 = vmatpush1.msra.mxu0 0.0
  %2584 = vmatprep.subr.mxu0 0.0
  %2585 = vmatpush1.msra.mxu0 0.0
  %2586 = vmatprep.subr.mxu0 0.0
  %2587 = vmatpush1.msra.mxu0 0.0
  %2588 = vmatprep.subr.mxu0 0.0
  %2589 = vmatpush1.msra.mxu0 0.0
  %2590 = vmatprep.subr.mxu0 0.0
  %2591 = vmatpush1.msra.mxu0 0.0
  %2592 = vmatprep.subr.mxu0 0.0
  %2593 = vmatpush1.msra.mxu0 0.0
  %2594 = vmatprep.subr.mxu0 0.0
  %2595 = vmatpush1.msra.mxu0 0.0
  %2596 = vmatprep.subr.mxu0 0.0
  %2597 = vmatpush1.msra.mxu0 0.0
  %2598 = vmatprep.subr.mxu0 0.0
  %2599 = vmatpush1.msra.mxu0 0.0
  %2600 = vmatprep.subr.mxu0 0.0
  %2601 = vmatpush1.msra.mxu0 0.0
  %2602 = vmatprep.subr.mxu0 0.0
  %2603 = vmatpush1.msra.mxu0 0.0
  %2604 = vmatprep.subr.mxu0 0.0
  %2605 = vmatpush1.msra.mxu0 0.0
  %2606 = vmatprep.subr.mxu0 0.0
  %2607 = vmatpush1.msra.mxu0 0.0
  %2608 = vmatprep.subr.mxu0 0.0
  %2609 = vmatpush1.msra.mxu0 0.0
  %2610 = vmatprep.mubr.f32.mxu0 0.0
  %2611 = vmatmul.mubr.f32.gmra.mrb[0].mxu0 %v2535
  %v2612 = vpop.f32.mrb[0].mxu0
  %v2613 = vadd.f32 0.0, %v2612
  %v2614 = vpop.f32.mrb[0].mxu0
  %2615 = vmatprep.mubr.f32.mxu0 0.0
  %2616 = vmatmul.mubr.f32.gmra.mrb[0].mxu0 %v2538
  %v2617 = vpop.f32.mrb[0].mxu0
  %v2618 = vadd.f32 0.0, %v2617
  %v2619 = vpop.f32.mrb[0].mxu0
  %2620 = vmatprep.mubr.f32.mxu0 0.0
  %2621 = vmatmul.mubr.f32.gmra.mrb[0].mxu0 %v2541
  %v2622 = vpop.f32.mrb[0].mxu0
  %v2623 = vadd.f32 0.0, %v2622
  %v2624 = vpop.f32.mrb[0].mxu0
  %2625 = vmatprep.mubr.f32.mxu0 0.0
  %2626 = vmatmul.mubr.f32.gmra.mrb[0].mxu0 %v2544
  %v2627 = vpop.f32.mrb[0].mxu0
  %v2628 = vadd.f32 0.0, %v2627
  %v2629 = vpop.f32.mrb[0].mxu0
  %2630 = vdwg.mxu0
  %v2631 = vadd.f32 %v2414, %v2613
  %v2632 = vadd.f32 %v2415, %v2618
  %v2633 = vadd.f32 %v2416, %v2623
  %v2634 = vadd.f32 %v2417, %v2628
  %s2635 = scalar_lea.vmem %s0, 384
  %v2636 = vld [vmem:[%s2635] sm:$0xff]
  %v2637 = vld [vmem:[%s2635 + $0x8] sm:$0xff]
  %v2638 = vld [vmem:[%s2635 + $0x10] sm:$0xff]
  %v2639 = vld [vmem:[%s2635 + $0x18] sm:$0xff]
  %v2641 = vsel %vm43, %v2636, 0
  %v2644 = vsel %vm43, %v2637, 0
  %v2647 = vsel %vm43, %v2638, 0
  %v2650 = vsel %vm43, %v2639, 0
  %2652 = vmatprep.subr.mxu0 0.0
  %2653 = vmatpush1.msra.mxu0 %v31
  %2654 = vmatprep.subr.mxu0 0.0
  %2655 = vmatpush1.msra.mxu0 %v32
  %2656 = vmatprep.subr.mxu0 0.0
  %2657 = vmatpush1.msra.mxu0 %v33
  %2658 = vmatprep.subr.mxu0 0.0
  %2659 = vmatpush1.msra.mxu0 %v34
  %2660 = vmatprep.subr.mxu0 0.0
  %2661 = vmatpush1.msra.mxu0 %v35
  %2662 = vmatprep.subr.mxu0 0.0
  %2663 = vmatpush1.msra.mxu0 %v36
  %2664 = vmatprep.subr.mxu0 0.0
  %2665 = vmatpush1.msra.mxu0 %v37
  %2666 = vmatprep.subr.mxu0 0.0
  %2667 = vmatpush1.msra.mxu0 %v38
  %2668 = vmatprep.subr.mxu0 0.0
  %2669 = vmatpush1.msra.mxu0 0.0
  %2670 = vmatprep.subr.mxu0 0.0
  %2671 = vmatpush1.msra.mxu0 0.0
  %2672 = vmatprep.subr.mxu0 0.0
  %2673 = vmatpush1.msra.mxu0 0.0
  %2674 = vmatprep.subr.mxu0 0.0
  %2675 = vmatpush1.msra.mxu0 0.0
  %2676 = vmatprep.subr.mxu0 0.0
  %2677 = vmatpush1.msra.mxu0 0.0
  %2678 = vmatprep.subr.mxu0 0.0
  %2679 = vmatpush1.msra.mxu0 0.0
  %2680 = vmatprep.subr.mxu0 0.0
  %2681 = vmatpush1.msra.mxu0 0.0
  %2682 = vmatprep.subr.mxu0 0.0
  %2683 = vmatpush1.msra.mxu0 0.0
  %2684 = vmatprep.subr.mxu0 0.0
  %2685 = vmatpush1.msra.mxu0 0.0
  %2686 = vmatprep.subr.mxu0 0.0
  %2687 = vmatpush1.msra.mxu0 0.0
  %2688 = vmatprep.subr.mxu0 0.0
  %2689 = vmatpush1.msra.mxu0 0.0
  %2690 = vmatprep.subr.mxu0 0.0
  %2691 = vmatpush1.msra.mxu0 0.0
  %2692 = vmatprep.subr.mxu0 0.0
  %2693 = vmatpush1.msra.mxu0 0.0
  %2694 = vmatprep.subr.mxu0 0.0
  %2695 = vmatpush1.msra.mxu0 0.0
  %2696 = vmatprep.subr.mxu0 0.0
  %2697 = vmatpush1.msra.mxu0 0.0
  %2698 = vmatprep.subr.mxu0 0.0
  %2699 = vmatpush1.msra.mxu0 0.0
  %2700 = vmatprep.subr.mxu0 0.0
  %2701 = vmatpush1.msra.mxu0 0.0
  %2702 = vmatprep.subr.mxu0 0.0
  %2703 = vmatpush1.msra.mxu0 0.0
  %2704 = vmatprep.subr.mxu0 0.0
  %2705 = vmatpush1.msra.mxu0 0.0
  %2706 = vmatprep.subr.mxu0 0.0
  %2707 = vmatpush1.msra.mxu0 0.0
  %2708 = vmatprep.subr.mxu0 0.0
  %2709 = vmatpush1.msra.mxu0 0.0
  %2710 = vmatprep.subr.mxu0 0.0
  %2711 = vmatpush1.msra.mxu0 0.0
  %2712 = vmatprep.subr.mxu0 0.0
  %2713 = vmatpush1.msra.mxu0 0.0
  %2714 = vmatprep.subr.mxu0 0.0
  %2715 = vmatpush1.msra.mxu0 0.0
  %2716 = vmatprep.mubr.f32.mxu0 0.0
  %2717 = vmatmul.mubr.f32.gmra.mrb[0].mxu0 %v2641
  %v2718 = vpop.f32.mrb[0].mxu0
  %v2719 = vadd.f32 0.0, %v2718
  %v2720 = vpop.f32.mrb[0].mxu0
  %2721 = vmatprep.mubr.f32.mxu0 0.0
  %2722 = vmatmul.mubr.f32.gmra.mrb[0].mxu0 %v2644
  %v2723 = vpop.f32.mrb[0].mxu0
  %v2724 = vadd.f32 0.0, %v2723
  %v2725 = vpop.f32.mrb[0].mxu0
  %2726 = vmatprep.mubr.f32.mxu0 0.0
  %2727 = vmatmul.mubr.f32.gmra.mrb[0].mxu0 %v2647
  %v2728 = vpop.f32.mrb[0].mxu0
  %v2729 = vadd.f32 0.0, %v2728
  %v2730 = vpop.f32.mrb[0].mxu0
  %2731 = vmatprep.mubr.f32.mxu0 0.0
  %2732 = vmatmul.mubr.f32.gmra.mrb[0].mxu0 %v2650
  %v2733 = vpop.f32.mrb[0].mxu0
  %v2734 = vadd.f32 0.0, %v2733
  %v2735 = vpop.f32.mrb[0].mxu0
  %2736 = vdwg.mxu0
  %vm2737 = vcmp.gt.f32.partialorder %v2719, 0.0
  %vm2738 = vcmp.gt.f32.partialorder %v2724, 0.0
  %vm2739 = vcmp.gt.f32.partialorder %v2729, 0.0
  %vm2740 = vcmp.gt.f32.partialorder %v2734, 0.0
  %v2741 = vmul.f32 %v2719, 0.2
  %v2742 = vmul.f32 %v2724, 0.2
  %v2743 = vmul.f32 %v2729, 0.2
  %v2744 = vmul.f32 %v2734, 0.2
  %v2745 = vsel %vm2737, %v2719, %v2741
  %v2746 = vsel %vm2738, %v2724, %v2742
  %v2747 = vsel %vm2739, %v2729, %v2743
  %v2748 = vsel %vm2740, %v2734, %v2744
  %s2749 = scalar_lea.vmem %s2, 96
  %v2750 = vld [vmem:[%s2749] sm:$0xff]
  %v2752 = vsel %vm270, %v2745, 0
  %v2755 = vsel %vm270, %v2746, 0
  %v2758 = vsel %vm270, %v2747, 0
  %v2761 = vsel %vm270, %v2748, 0
  %2763 = vmatprep.subr.mxu0 0.0
  %2764 = vmatpush1.msra.mxu0 %v2750
  %2765 = vmatprep.subr.mxu0 0.0
  %2766 = vmatpush1.msra.mxu0 0.0
  %2767 = vmatprep.subr.mxu0 0.0
  %2768 = vmatpush1.msra.mxu0 0.0
  %2769 = vmatprep.subr.mxu0 0.0
  %2770 = vmatpush1.msra.mxu0 0.0
  %2771 = vmatprep.subr.mxu0 0.0
  %2772 = vmatpush1.msra.mxu0 0.0
  %2773 = vmatprep.subr.mxu0 0.0
  %2774 = vmatpush1.msra.mxu0 0.0
  %2775 = vmatprep.subr.mxu0 0.0
  %2776 = vmatpush1.msra.mxu0 0.0
  %2777 = vmatprep.subr.mxu0 0.0
  %2778 = vmatpush1.msra.mxu0 0.0
  %2779 = vmatprep.subr.mxu0 0.0
  %2780 = vmatpush1.msra.mxu0 0.0
  %2781 = vmatprep.subr.mxu0 0.0
  %2782 = vmatpush1.msra.mxu0 0.0
  %2783 = vmatprep.subr.mxu0 0.0
  %2784 = vmatpush1.msra.mxu0 0.0
  %2785 = vmatprep.subr.mxu0 0.0
  %2786 = vmatpush1.msra.mxu0 0.0
  %2787 = vmatprep.subr.mxu0 0.0
  %2788 = vmatpush1.msra.mxu0 0.0
  %2789 = vmatprep.subr.mxu0 0.0
  %2790 = vmatpush1.msra.mxu0 0.0
  %2791 = vmatprep.subr.mxu0 0.0
  %2792 = vmatpush1.msra.mxu0 0.0
  %2793 = vmatprep.subr.mxu0 0.0
  %2794 = vmatpush1.msra.mxu0 0.0
  %2795 = vmatprep.subr.mxu0 0.0
  %2796 = vmatpush1.msra.mxu0 0.0
  %2797 = vmatprep.subr.mxu0 0.0
  %2798 = vmatpush1.msra.mxu0 0.0
  %2799 = vmatprep.subr.mxu0 0.0
  %2800 = vmatpush1.msra.mxu0 0.0
  %2801 = vmatprep.subr.mxu0 0.0
  %2802 = vmatpush1.msra.mxu0 0.0
  %2803 = vmatprep.subr.mxu0 0.0
  %2804 = vmatpush1.msra.mxu0 0.0
  %2805 = vmatprep.subr.mxu0 0.0
  %2806 = vmatpush1.msra.mxu0 0.0
  %2807 = vmatprep.subr.mxu0 0.0
  %2808 = vmatpush1.msra.mxu0 0.0
  %2809 = vmatprep.subr.mxu0 0.0
  %2810 = vmatpush1.msra.mxu0 0.0
  %2811 = vmatprep.subr.mxu0 0.0
  %2812 = vmatpush1.msra.mxu0 0.0
  %2813 = vmatprep.subr.mxu0 0.0
  %2814 = vmatpush1.msra.mxu0 0.0
  %2815 = vmatprep.subr.mxu0 0.0
  %2816 = vmatpush1.msra.mxu0 0.0
  %2817 = vmatprep.subr.mxu0 0.0
  %2818 = vmatpush1.msra.mxu0 0.0
  %2819 = vmatprep.subr.mxu0 0.0
  %2820 = vmatpush1.msra.mxu0 0.0
  %2821 = vmatprep.subr.mxu0 0.0
  %2822 = vmatpush1.msra.mxu0 0.0
  %2823 = vmatprep.subr.mxu0 0.0
  %2824 = vmatpush1.msra.mxu0 0.0
  %2825 = vmatprep.subr.mxu0 0.0
  %2826 = vmatpush1.msra.mxu0 0.0
  %2827 = vmatprep.mubr.f32.mxu0 0.0
  %2828 = vmatmul.mubr.f32.gmra.mrb[0].mxu0 %v2752
  %v2829 = vpop.f32.mrb[0].mxu0
  %v2830 = vadd.f32 0.0, %v2829
  %v2831 = vpop.f32.mrb[0].mxu0
  %2832 = vmatprep.mubr.f32.mxu0 0.0
  %2833 = vmatmul.mubr.f32.gmra.mrb[0].mxu0 %v2755
  %v2834 = vpop.f32.mrb[0].mxu0
  %v2835 = vadd.f32 0.0, %v2834
  %v2836 = vpop.f32.mrb[0].mxu0
  %2837 = vmatprep.mubr.f32.mxu0 0.0
  %2838 = vmatmul.mubr.f32.gmra.mrb[0].mxu0 %v2758
  %v2839 = vpop.f32.mrb[0].mxu0
  %v2840 = vadd.f32 0.0, %v2839
  %v2841 = vpop.f32.mrb[0].mxu0
  %2842 = vmatprep.mubr.f32.mxu0 0.0
  %2843 = vmatmul.mubr.f32.gmra.mrb[0].mxu0 %v2761
  %v2844 = vpop.f32.mrb[0].mxu0
  %v2845 = vadd.f32 0.0, %v2844
  %v2846 = vpop.f32.mrb[0].mxu0
  %2847 = vdwg.mxu0
  %v2848 = vadd.f32 %v2631, %v2830
  %v2849 = vadd.f32 %v2632, %v2835
  %v2850 = vadd.f32 %v2633, %v2840
  %v2851 = vadd.f32 %v2634, %v2845
  %s2852 = scalar_lea.vmem %s0, 416
  %v2853 = vld [vmem:[%s2852] sm:$0xff]
  %v2854 = vld [vmem:[%s2852 + $0x8] sm:$0xff]
  %v2855 = vld [vmem:[%s2852 + $0x10] sm:$0xff]
  %v2856 = vld [vmem:[%s2852 + $0x18] sm:$0xff]
  %v2858 = vsel %vm43, %v2853, 0
  %v2861 = vsel %vm43, %v2854, 0
  %v2864 = vsel %vm43, %v2855, 0
  %v2867 = vsel %vm43, %v2856, 0
  %2869 = vmatprep.subr.mxu0 0.0
  %2870 = vmatpush1.msra.mxu0 %v31
  %2871 = vmatprep.subr.mxu0 0.0
  %2872 = vmatpush1.msra.mxu0 %v32
  %2873 = vmatprep.subr.mxu0 0.0
  %2874 = vmatpush1.msra.mxu0 %v33
  %2875 = vmatprep.subr.mxu0 0.0
  %2876 = vmatpush1.msra.mxu0 %v34
  %2877 = vmatprep.subr.mxu0 0.0
  %2878 = vmatpush1.msra.mxu0 %v35
  %2879 = vmatprep.subr.mxu0 0.0
  %2880 = vmatpush1.msra.mxu0 %v36
  %2881 = vmatprep.subr.mxu0 0.0
  %2882 = vmatpush1.msra.mxu0 %v37
  %2883 = vmatprep.subr.mxu0 0.0
  %2884 = vmatpush1.msra.mxu0 %v38
  %2885 = vmatprep.subr.mxu0 0.0
  %2886 = vmatpush1.msra.mxu0 0.0
  %2887 = vmatprep.subr.mxu0 0.0
  %2888 = vmatpush1.msra.mxu0 0.0
  %2889 = vmatprep.subr.mxu0 0.0
  %2890 = vmatpush1.msra.mxu0 0.0
  %2891 = vmatprep.subr.mxu0 0.0
  %2892 = vmatpush1.msra.mxu0 0.0
  %2893 = vmatprep.subr.mxu0 0.0
  %2894 = vmatpush1.msra.mxu0 0.0
  %2895 = vmatprep.subr.mxu0 0.0
  %2896 = vmatpush1.msra.mxu0 0.0
  %2897 = vmatprep.subr.mxu0 0.0
  %2898 = vmatpush1.msra.mxu0 0.0
  %2899 = vmatprep.subr.mxu0 0.0
  %2900 = vmatpush1.msra.mxu0 0.0
  %2901 = vmatprep.subr.mxu0 0.0
  %2902 = vmatpush1.msra.mxu0 0.0
  %2903 = vmatprep.subr.mxu0 0.0
  %2904 = vmatpush1.msra.mxu0 0.0
  %2905 = vmatprep.subr.mxu0 0.0
  %2906 = vmatpush1.msra.mxu0 0.0
  %2907 = vmatprep.subr.mxu0 0.0
  %2908 = vmatpush1.msra.mxu0 0.0
  %2909 = vmatprep.subr.mxu0 0.0
  %2910 = vmatpush1.msra.mxu0 0.0
  %2911 = vmatprep.subr.mxu0 0.0
  %2912 = vmatpush1.msra.mxu0 0.0
  %2913 = vmatprep.subr.mxu0 0.0
  %2914 = vmatpush1.msra.mxu0 0.0
  %2915 = vmatprep.subr.mxu0 0.0
  %2916 = vmatpush1.msra.mxu0 0.0
  %2917 = vmatprep.subr.mxu0 0.0
  %2918 = vmatpush1.msra.mxu0 0.0
  %2919 = vmatprep.subr.mxu0 0.0
  %2920 = vmatpush1.msra.mxu0 0.0
  %2921 = vmatprep.subr.mxu0 0.0
  %2922 = vmatpush1.msra.mxu0 0.0
  %2923 = vmatprep.subr.mxu0 0.0
  %2924 = vmatpush1.msra.mxu0 0.0
  %2925 = vmatprep.subr.mxu0 0.0
  %2926 = vmatpush1.msra.mxu0 0.0
  %2927 = vmatprep.subr.mxu0 0.0
  %2928 = vmatpush1.msra.mxu0 0.0
  %2929 = vmatprep.subr.mxu0 0.0
  %2930 = vmatpush1.msra.mxu0 0.0
  %2931 = vmatprep.subr.mxu0 0.0
  %2932 = vmatpush1.msra.mxu0 0.0
  %2933 = vmatprep.mubr.f32.mxu0 0.0
  %2934 = vmatmul.mubr.f32.gmra.mrb[0].mxu0 %v2858
  %v2935 = vpop.f32.mrb[0].mxu0
  %v2936 = vadd.f32 0.0, %v2935
  %v2937 = vpop.f32.mrb[0].mxu0
  %2938 = vmatprep.mubr.f32.mxu0 0.0
  %2939 = vmatmul.mubr.f32.gmra.mrb[0].mxu0 %v2861
  %v2940 = vpop.f32.mrb[0].mxu0
  %v2941 = vadd.f32 0.0, %v2940
  %v2942 = vpop.f32.mrb[0].mxu0
  %2943 = vmatprep.mubr.f32.mxu0 0.0
  %2944 = vmatmul.mubr.f32.gmra.mrb[0].mxu0 %v2864
  %v2945 = vpop.f32.mrb[0].mxu0
  %v2946 = vadd.f32 0.0, %v2945
  %v2947 = vpop.f32.mrb[0].mxu0
  %2948 = vmatprep.mubr.f32.mxu0 0.0
  %2949 = vmatmul.mubr.f32.gmra.mrb[0].mxu0 %v2867
  %v2950 = vpop.f32.mrb[0].mxu0
  %v2951 = vadd.f32 0.0, %v2950
  %v2952 = vpop.f32.mrb[0].mxu0
  %2953 = vdwg.mxu0
  %vm2954 = vcmp.gt.f32.partialorder %v2936, 0.0
  %vm2955 = vcmp.gt.f32.partialorder %v2941, 0.0
  %vm2956 = vcmp.gt.f32.partialorder %v2946, 0.0
  %vm2957 = vcmp.gt.f32.partialorder %v2951, 0.0
  %v2958 = vmul.f32 %v2936, 0.2
  %v2959 = vmul.f32 %v2941, 0.2
  %v2960 = vmul.f32 %v2946, 0.2
  %v2961 = vmul.f32 %v2951, 0.2
  %v2962 = vsel %vm2954, %v2936, %v2958
  %v2963 = vsel %vm2955, %v2941, %v2959
  %v2964 = vsel %vm2956, %v2946, %v2960
  %v2965 = vsel %vm2957, %v2951, %v2961
  %s2966 = scalar_lea.vmem %s2, 104
  %v2967 = vld [vmem:[%s2966] sm:$0xff]
  %v2969 = vsel %vm270, %v2962, 0
  %v2972 = vsel %vm270, %v2963, 0
  %v2975 = vsel %vm270, %v2964, 0
  %v2978 = vsel %vm270, %v2965, 0
  %2980 = vmatprep.subr.mxu0 0.0
  %2981 = vmatpush1.msra.mxu0 %v2967
  %2982 = vmatprep.subr.mxu0 0.0
  %2983 = vmatpush1.msra.mxu0 0.0
  %2984 = vmatprep.subr.mxu0 0.0
  %2985 = vmatpush1.msra.mxu0 0.0
  %2986 = vmatprep.subr.mxu0 0.0
  %2987 = vmatpush1.msra.mxu0 0.0
  %2988 = vmatprep.subr.mxu0 0.0
  %2989 = vmatpush1.msra.mxu0 0.0
  %2990 = vmatprep.subr.mxu0 0.0
  %2991 = vmatpush1.msra.mxu0 0.0
  %2992 = vmatprep.subr.mxu0 0.0
  %2993 = vmatpush1.msra.mxu0 0.0
  %2994 = vmatprep.subr.mxu0 0.0
  %2995 = vmatpush1.msra.mxu0 0.0
  %2996 = vmatprep.subr.mxu0 0.0
  %2997 = vmatpush1.msra.mxu0 0.0
  %2998 = vmatprep.subr.mxu0 0.0
  %2999 = vmatpush1.msra.mxu0 0.0
  %3000 = vmatprep.subr.mxu0 0.0
  %3001 = vmatpush1.msra.mxu0 0.0
  %3002 = vmatprep.subr.mxu0 0.0
  %3003 = vmatpush1.msra.mxu0 0.0
  %3004 = vmatprep.subr.mxu0 0.0
  %3005 = vmatpush1.msra.mxu0 0.0
  %3006 = vmatprep.subr.mxu0 0.0
  %3007 = vmatpush1.msra.mxu0 0.0
  %3008 = vmatprep.subr.mxu0 0.0
  %3009 = vmatpush1.msra.mxu0 0.0
  %3010 = vmatprep.subr.mxu0 0.0
  %3011 = vmatpush1.msra.mxu0 0.0
  %3012 = vmatprep.subr.mxu0 0.0
  %3013 = vmatpush1.msra.mxu0 0.0
  %3014 = vmatprep.subr.mxu0 0.0
  %3015 = vmatpush1.msra.mxu0 0.0
  %3016 = vmatprep.subr.mxu0 0.0
  %3017 = vmatpush1.msra.mxu0 0.0
  %3018 = vmatprep.subr.mxu0 0.0
  %3019 = vmatpush1.msra.mxu0 0.0
  %3020 = vmatprep.subr.mxu0 0.0
  %3021 = vmatpush1.msra.mxu0 0.0
  %3022 = vmatprep.subr.mxu0 0.0
  %3023 = vmatpush1.msra.mxu0 0.0
  %3024 = vmatprep.subr.mxu0 0.0
  %3025 = vmatpush1.msra.mxu0 0.0
  %3026 = vmatprep.subr.mxu0 0.0
  %3027 = vmatpush1.msra.mxu0 0.0
  %3028 = vmatprep.subr.mxu0 0.0
  %3029 = vmatpush1.msra.mxu0 0.0
  %3030 = vmatprep.subr.mxu0 0.0
  %3031 = vmatpush1.msra.mxu0 0.0
  %3032 = vmatprep.subr.mxu0 0.0
  %3033 = vmatpush1.msra.mxu0 0.0
  %3034 = vmatprep.subr.mxu0 0.0
  %3035 = vmatpush1.msra.mxu0 0.0
  %3036 = vmatprep.subr.mxu0 0.0
  %3037 = vmatpush1.msra.mxu0 0.0
  %3038 = vmatprep.subr.mxu0 0.0
  %3039 = vmatpush1.msra.mxu0 0.0
  %3040 = vmatprep.subr.mxu0 0.0
  %3041 = vmatpush1.msra.mxu0 0.0
  %3042 = vmatprep.subr.mxu0 0.0
  %3043 = vmatpush1.msra.mxu0 0.0
  %3044 = vmatprep.mubr.f32.mxu0 0.0
  %3045 = vmatmul.mubr.f32.gmra.mrb[0].mxu0 %v2969
  %v3046 = vpop.f32.mrb[0].mxu0
  %v3047 = vadd.f32 0.0, %v3046
  %v3048 = vpop.f32.mrb[0].mxu0
  %3049 = vmatprep.mubr.f32.mxu0 0.0
  %3050 = vmatmul.mubr.f32.gmra.mrb[0].mxu0 %v2972
  %v3051 = vpop.f32.mrb[0].mxu0
  %v3052 = vadd.f32 0.0, %v3051
  %v3053 = vpop.f32.mrb[0].mxu0
  %3054 = vmatprep.mubr.f32.mxu0 0.0
  %3055 = vmatmul.mubr.f32.gmra.mrb[0].mxu0 %v2975
  %v3056 = vpop.f32.mrb[0].mxu0
  %v3057 = vadd.f32 0.0, %v3056
  %v3058 = vpop.f32.mrb[0].mxu0
  %3059 = vmatprep.mubr.f32.mxu0 0.0
  %3060 = vmatmul.mubr.f32.gmra.mrb[0].mxu0 %v2978
  %v3061 = vpop.f32.mrb[0].mxu0
  %v3062 = vadd.f32 0.0, %v3061
  %v3063 = vpop.f32.mrb[0].mxu0
  %3064 = vdwg.mxu0
  %v3065 = vadd.f32 %v2848, %v3047
  %v3066 = vadd.f32 %v2849, %v3052
  %v3067 = vadd.f32 %v2850, %v3057
  %v3068 = vadd.f32 %v2851, %v3062
  %s3069 = scalar_lea.vmem %s0, 448
  %v3070 = vld [vmem:[%s3069] sm:$0xff]
  %v3071 = vld [vmem:[%s3069 + $0x8] sm:$0xff]
  %v3072 = vld [vmem:[%s3069 + $0x10] sm:$0xff]
  %v3073 = vld [vmem:[%s3069 + $0x18] sm:$0xff]
  %v3075 = vsel %vm43, %v3070, 0
  %v3078 = vsel %vm43, %v3071, 0
  %v3081 = vsel %vm43, %v3072, 0
  %v3084 = vsel %vm43, %v3073, 0
  %3086 = vmatprep.subr.mxu0 0.0
  %3087 = vmatpush1.msra.mxu0 %v31
  %3088 = vmatprep.subr.mxu0 0.0
  %3089 = vmatpush1.msra.mxu0 %v32
  %3090 = vmatprep.subr.mxu0 0.0
  %3091 = vmatpush1.msra.mxu0 %v33
  %3092 = vmatprep.subr.mxu0 0.0
  %3093 = vmatpush1.msra.mxu0 %v34
  %3094 = vmatprep.subr.mxu0 0.0
  %3095 = vmatpush1.msra.mxu0 %v35
  %3096 = vmatprep.subr.mxu0 0.0
  %3097 = vmatpush1.msra.mxu0 %v36
  %3098 = vmatprep.subr.mxu0 0.0
  %3099 = vmatpush1.msra.mxu0 %v37
  %3100 = vmatprep.subr.mxu0 0.0
  %3101 = vmatpush1.msra.mxu0 %v38
  %3102 = vmatprep.subr.mxu0 0.0
  %3103 = vmatpush1.msra.mxu0 0.0
  %3104 = vmatprep.subr.mxu0 0.0
  %3105 = vmatpush1.msra.mxu0 0.0
  %3106 = vmatprep.subr.mxu0 0.0
  %3107 = vmatpush1.msra.mxu0 0.0
  %3108 = vmatprep.subr.mxu0 0.0
  %3109 = vmatpush1.msra.mxu0 0.0
  %3110 = vmatprep.subr.mxu0 0.0
  %3111 = vmatpush1.msra.mxu0 0.0
  %3112 = vmatprep.subr.mxu0 0.0
  %3113 = vmatpush1.msra.mxu0 0.0
  %3114 = vmatprep.subr.mxu0 0.0
  %3115 = vmatpush1.msra.mxu0 0.0
  %3116 = vmatprep.subr.mxu0 0.0
  %3117 = vmatpush1.msra.mxu0 0.0
  %3118 = vmatprep.subr.mxu0 0.0
  %3119 = vmatpush1.msra.mxu0 0.0
  %3120 = vmatprep.subr.mxu0 0.0
  %3121 = vmatpush1.msra.mxu0 0.0
  %3122 = vmatprep.subr.mxu0 0.0
  %3123 = vmatpush1.msra.mxu0 0.0
  %3124 = vmatprep.subr.mxu0 0.0
  %3125 = vmatpush1.msra.mxu0 0.0
  %3126 = vmatprep.subr.mxu0 0.0
  %3127 = vmatpush1.msra.mxu0 0.0
  %3128 = vmatprep.subr.mxu0 0.0
  %3129 = vmatpush1.msra.mxu0 0.0
  %3130 = vmatprep.subr.mxu0 0.0
  %3131 = vmatpush1.msra.mxu0 0.0
  %3132 = vmatprep.subr.mxu0 0.0
  %3133 = vmatpush1.msra.mxu0 0.0
  %3134 = vmatprep.subr.mxu0 0.0
  %3135 = vmatpush1.msra.mxu0 0.0
  %3136 = vmatprep.subr.mxu0 0.0
  %3137 = vmatpush1.msra.mxu0 0.0
  %3138 = vmatprep.subr.mxu0 0.0
  %3139 = vmatpush1.msra.mxu0 0.0
  %3140 = vmatprep.subr.mxu0 0.0
  %3141 = vmatpush1.msra.mxu0 0.0
  %3142 = vmatprep.subr.mxu0 0.0
  %3143 = vmatpush1.msra.mxu0 0.0
  %3144 = vmatprep.subr.mxu0 0.0
  %3145 = vmatpush1.msra.mxu0 0.0
  %3146 = vmatprep.subr.mxu0 0.0
  %3147 = vmatpush1.msra.mxu0 0.0
  %3148 = vmatprep.subr.mxu0 0.0
  %3149 = vmatpush1.msra.mxu0 0.0
  %3150 = vmatprep.mubr.f32.mxu0 0.0
  %3151 = vmatmul.mubr.f32.gmra.mrb[0].mxu0 %v3075
  %v3152 = vpop.f32.mrb[0].mxu0
  %v3153 = vadd.f32 0.0, %v3152
  %v3154 = vpop.f32.mrb[0].mxu0
  %3155 = vmatprep.mubr.f32.mxu0 0.0
  %3156 = vmatmul.mubr.f32.gmra.mrb[0].mxu0 %v3078
  %v3157 = vpop.f32.mrb[0].mxu0
  %v3158 = vadd.f32 0.0, %v3157
  %v3159 = vpop.f32.mrb[0].mxu0
  %3160 = vmatprep.mubr.f32.mxu0 0.0
  %3161 = vmatmul.mubr.f32.gmra.mrb[0].mxu0 %v3081
  %v3162 = vpop.f32.mrb[0].mxu0
  %v3163 = vadd.f32 0.0, %v3162
  %v3164 = vpop.f32.mrb[0].mxu0
  %3165 = vmatprep.mubr.f32.mxu0 0.0
  %3166 = vmatmul.mubr.f32.gmra.mrb[0].mxu0 %v3084
  %v3167 = vpop.f32.mrb[0].mxu0
  %v3168 = vadd.f32 0.0, %v3167
  %v3169 = vpop.f32.mrb[0].mxu0
  %3170 = vdwg.mxu0
  %vm3171 = vcmp.gt.f32.partialorder %v3153, 0.0
  %vm3172 = vcmp.gt.f32.partialorder %v3158, 0.0
  %vm3173 = vcmp.gt.f32.partialorder %v3163, 0.0
  %vm3174 = vcmp.gt.f32.partialorder %v3168, 0.0
  %v3175 = vmul.f32 %v3153, 0.2
  %v3176 = vmul.f32 %v3158, 0.2
  %v3177 = vmul.f32 %v3163, 0.2
  %v3178 = vmul.f32 %v3168, 0.2
  %v3179 = vsel %vm3171, %v3153, %v3175
  %v3180 = vsel %vm3172, %v3158, %v3176
  %v3181 = vsel %vm3173, %v3163, %v3177
  %v3182 = vsel %vm3174, %v3168, %v3178
  %s3183 = scalar_lea.vmem %s2, 112
  %v3184 = vld [vmem:[%s3183] sm:$0xff]
  %v3186 = vsel %vm270, %v3179, 0
  %v3189 = vsel %vm270, %v3180, 0
  %v3192 = vsel %vm270, %v3181, 0
  %v3195 = vsel %vm270, %v3182, 0
  %3197 = vmatprep.subr.mxu0 0.0
  %3198 = vmatpush1.msra.mxu0 %v3184
  %3199 = vmatprep.subr.mxu0 0.0
  %3200 = vmatpush1.msra.mxu0 0.0
  %3201 = vmatprep.subr.mxu0 0.0
  %3202 = vmatpush1.msra.mxu0 0.0
  %3203 = vmatprep.subr.mxu0 0.0
  %3204 = vmatpush1.msra.mxu0 0.0
  %3205 = vmatprep.subr.mxu0 0.0
  %3206 = vmatpush1.msra.mxu0 0.0
  %3207 = vmatprep.subr.mxu0 0.0
  %3208 = vmatpush1.msra.mxu0 0.0
  %3209 = vmatprep.subr.mxu0 0.0
  %3210 = vmatpush1.msra.mxu0 0.0
  %3211 = vmatprep.subr.mxu0 0.0
  %3212 = vmatpush1.msra.mxu0 0.0
  %3213 = vmatprep.subr.mxu0 0.0
  %3214 = vmatpush1.msra.mxu0 0.0
  %3215 = vmatprep.subr.mxu0 0.0
  %3216 = vmatpush1.msra.mxu0 0.0
  %3217 = vmatprep.subr.mxu0 0.0
  %3218 = vmatpush1.msra.mxu0 0.0
  %3219 = vmatprep.subr.mxu0 0.0
  %3220 = vmatpush1.msra.mxu0 0.0
  %3221 = vmatprep.subr.mxu0 0.0
  %3222 = vmatpush1.msra.mxu0 0.0
  %3223 = vmatprep.subr.mxu0 0.0
  %3224 = vmatpush1.msra.mxu0 0.0
  %3225 = vmatprep.subr.mxu0 0.0
  %3226 = vmatpush1.msra.mxu0 0.0
  %3227 = vmatprep.subr.mxu0 0.0
  %3228 = vmatpush1.msra.mxu0 0.0
  %3229 = vmatprep.subr.mxu0 0.0
  %3230 = vmatpush1.msra.mxu0 0.0
  %3231 = vmatprep.subr.mxu0 0.0
  %3232 = vmatpush1.msra.mxu0 0.0
  %3233 = vmatprep.subr.mxu0 0.0
  %3234 = vmatpush1.msra.mxu0 0.0
  %3235 = vmatprep.subr.mxu0 0.0
  %3236 = vmatpush1.msra.mxu0 0.0
  %3237 = vmatprep.subr.mxu0 0.0
  %3238 = vmatpush1.msra.mxu0 0.0
  %3239 = vmatprep.subr.mxu0 0.0
  %3240 = vmatpush1.msra.mxu0 0.0
  %3241 = vmatprep.subr.mxu0 0.0
  %3242 = vmatpush1.msra.mxu0 0.0
  %3243 = vmatprep.subr.mxu0 0.0
  %3244 = vmatpush1.msra.mxu0 0.0
  %3245 = vmatprep.subr.mxu0 0.0
  %3246 = vmatpush1.msra.mxu0 0.0
  %3247 = vmatprep.subr.mxu0 0.0
  %3248 = vmatpush1.msra.mxu0 0.0
  %3249 = vmatprep.subr.mxu0 0.0
  %3250 = vmatpush1.msra.mxu0 0.0
  %3251 = vmatprep.subr.mxu0 0.0
  %3252 = vmatpush1.msra.mxu0 0.0
  %3253 = vmatprep.subr.mxu0 0.0
  %3254 = vmatpush1.msra.mxu0 0.0
  %3255 = vmatprep.subr.mxu0 0.0
  %3256 = vmatpush1.msra.mxu0 0.0
  %3257 = vmatprep.subr.mxu0 0.0
  %3258 = vmatpush1.msra.mxu0 0.0
  %3259 = vmatprep.subr.mxu0 0.0
  %3260 = vmatpush1.msra.mxu0 0.0
  %3261 = vmatprep.mubr.f32.mxu0 0.0
  %3262 = vmatmul.mubr.f32.gmra.mrb[0].mxu0 %v3186
  %v3263 = vpop.f32.mrb[0].mxu0
  %v3264 = vadd.f32 0.0, %v3263
  %v3265 = vpop.f32.mrb[0].mxu0
  %3266 = vmatprep.mubr.f32.mxu0 0.0
  %3267 = vmatmul.mubr.f32.gmra.mrb[0].mxu0 %v3189
  %v3268 = vpop.f32.mrb[0].mxu0
  %v3269 = vadd.f32 0.0, %v3268
  %v3270 = vpop.f32.mrb[0].mxu0
  %3271 = vmatprep.mubr.f32.mxu0 0.0
  %3272 = vmatmul.mubr.f32.gmra.mrb[0].mxu0 %v3192
  %v3273 = vpop.f32.mrb[0].mxu0
  %v3274 = vadd.f32 0.0, %v3273
  %v3275 = vpop.f32.mrb[0].mxu0
  %3276 = vmatprep.mubr.f32.mxu0 0.0
  %3277 = vmatmul.mubr.f32.gmra.mrb[0].mxu0 %v3195
  %v3278 = vpop.f32.mrb[0].mxu0
  %v3279 = vadd.f32 0.0, %v3278
  %v3280 = vpop.f32.mrb[0].mxu0
  %3281 = vdwg.mxu0
  %v3282 = vadd.f32 %v3065, %v3264
  %v3283 = vadd.f32 %v3066, %v3269
  %v3284 = vadd.f32 %v3067, %v3274
  %v3285 = vadd.f32 %v3068, %v3279
  %s3286 = scalar_lea.vmem %s0, 480
  %v3287 = vld [vmem:[%s3286] sm:$0xff]
  %v3288 = vld [vmem:[%s3286 + $0x8] sm:$0xff]
  %v3289 = vld [vmem:[%s3286 + $0x10] sm:$0xff]
  %v3290 = vld [vmem:[%s3286 + $0x18] sm:$0xff]
  %v3292 = vsel %vm43, %v3287, 0
  %v3295 = vsel %vm43, %v3288, 0
  %v3298 = vsel %vm43, %v3289, 0
  %v3301 = vsel %vm43, %v3290, 0
  %3303 = vmatprep.subr.mxu0 0.0
  %3304 = vmatpush1.msra.mxu0 %v31
  %3305 = vmatprep.subr.mxu0 0.0
  %3306 = vmatpush1.msra.mxu0 %v32
  %3307 = vmatprep.subr.mxu0 0.0
  %3308 = vmatpush1.msra.mxu0 %v33
  %3309 = vmatprep.subr.mxu0 0.0
  %3310 = vmatpush1.msra.mxu0 %v34
  %3311 = vmatprep.subr.mxu0 0.0
  %3312 = vmatpush1.msra.mxu0 %v35
  %3313 = vmatprep.subr.mxu0 0.0
  %3314 = vmatpush1.msra.mxu0 %v36
  %3315 = vmatprep.subr.mxu0 0.0
  %3316 = vmatpush1.msra.mxu0 %v37
  %3317 = vmatprep.subr.mxu0 0.0
  %3318 = vmatpush1.msra.mxu0 %v38
  %3319 = vmatprep.subr.mxu0 0.0
  %3320 = vmatpush1.msra.mxu0 0.0
  %3321 = vmatprep.subr.mxu0 0.0
  %3322 = vmatpush1.msra.mxu0 0.0
  %3323 = vmatprep.subr.mxu0 0.0
  %3324 = vmatpush1.msra.mxu0 0.0
  %3325 = vmatprep.subr.mxu0 0.0
  %3326 = vmatpush1.msra.mxu0 0.0
  %3327 = vmatprep.subr.mxu0 0.0
  %3328 = vmatpush1.msra.mxu0 0.0
  %3329 = vmatprep.subr.mxu0 0.0
  %3330 = vmatpush1.msra.mxu0 0.0
  %3331 = vmatprep.subr.mxu0 0.0
  %3332 = vmatpush1.msra.mxu0 0.0
  %3333 = vmatprep.subr.mxu0 0.0
  %3334 = vmatpush1.msra.mxu0 0.0
  %3335 = vmatprep.subr.mxu0 0.0
  %3336 = vmatpush1.msra.mxu0 0.0
  %3337 = vmatprep.subr.mxu0 0.0
  %3338 = vmatpush1.msra.mxu0 0.0
  %3339 = vmatprep.subr.mxu0 0.0
  %3340 = vmatpush1.msra.mxu0 0.0
  %3341 = vmatprep.subr.mxu0 0.0
  %3342 = vmatpush1.msra.mxu0 0.0
  %3343 = vmatprep.subr.mxu0 0.0
  %3344 = vmatpush1.msra.mxu0 0.0
  %3345 = vmatprep.subr.mxu0 0.0
  %3346 = vmatpush1.msra.mxu0 0.0
  %3347 = vmatprep.subr.mxu0 0.0
  %3348 = vmatpush1.msra.mxu0 0.0
  %3349 = vmatprep.subr.mxu0 0.0
  %3350 = vmatpush1.msra.mxu0 0.0
  %3351 = vmatprep.subr.mxu0 0.0
  %3352 = vmatpush1.msra.mxu0 0.0
  %3353 = vmatprep.subr.mxu0 0.0
  %3354 = vmatpush1.msra.mxu0 0.0
  %3355 = vmatprep.subr.mxu0 0.0
  %3356 = vmatpush1.msra.mxu0 0.0
  %3357 = vmatprep.subr.mxu0 0.0
  %3358 = vmatpush1.msra.mxu0 0.0
  %3359 = vmatprep.subr.mxu0 0.0
  %3360 = vmatpush1.msra.mxu0 0.0
  %3361 = vmatprep.subr.mxu0 0.0
  %3362 = vmatpush1.msra.mxu0 0.0
  %3363 = vmatprep.subr.mxu0 0.0
  %3364 = vmatpush1.msra.mxu0 0.0
  %3365 = vmatprep.subr.mxu0 0.0
  %3366 = vmatpush1.msra.mxu0 0.0
  %3367 = vmatprep.mubr.f32.mxu0 0.0
  %3368 = vmatmul.mubr.f32.gmra.mrb[0].mxu0 %v3292
  %v3369 = vpop.f32.mrb[0].mxu0
  %v3370 = vadd.f32 0.0, %v3369
  %v3371 = vpop.f32.mrb[0].mxu0
  %3372 = vmatprep.mubr.f32.mxu0 0.0
  %3373 = vmatmul.mubr.f32.gmra.mrb[0].mxu0 %v3295
  %v3374 = vpop.f32.mrb[0].mxu0
  %v3375 = vadd.f32 0.0, %v3374
  %v3376 = vpop.f32.mrb[0].mxu0
  %3377 = vmatprep.mubr.f32.mxu0 0.0
  %3378 = vmatmul.mubr.f32.gmra.mrb[0].mxu0 %v3298
  %v3379 = vpop.f32.mrb[0].mxu0
  %v3380 = vadd.f32 0.0, %v3379
  %v3381 = vpop.f32.mrb[0].mxu0
  %3382 = vmatprep.mubr.f32.mxu0 0.0
  %3383 = vmatmul.mubr.f32.gmra.mrb[0].mxu0 %v3301
  %v3384 = vpop.f32.mrb[0].mxu0
  %v3385 = vadd.f32 0.0, %v3384
  %v3386 = vpop.f32.mrb[0].mxu0
  %3387 = vdwg.mxu0
  %vm3388 = vcmp.gt.f32.partialorder %v3370, 0.0
  %vm3389 = vcmp.gt.f32.partialorder %v3375, 0.0
  %vm3390 = vcmp.gt.f32.partialorder %v3380, 0.0
  %vm3391 = vcmp.gt.f32.partialorder %v3385, 0.0
  %v3392 = vmul.f32 %v3370, 0.2
  %v3393 = vmul.f32 %v3375, 0.2
  %v3394 = vmul.f32 %v3380, 0.2
  %v3395 = vmul.f32 %v3385, 0.2
  %v3396 = vsel %vm3388, %v3370, %v3392
  %v3397 = vsel %vm3389, %v3375, %v3393
  %v3398 = vsel %vm3390, %v3380, %v3394
  %v3399 = vsel %vm3391, %v3385, %v3395
  %s3400 = scalar_lea.vmem %s2, 120
  %v3401 = vld [vmem:[%s3400] sm:$0xff]
  %v3403 = vsel %vm270, %v3396, 0
  %v3406 = vsel %vm270, %v3397, 0
  %v3409 = vsel %vm270, %v3398, 0
  %v3412 = vsel %vm270, %v3399, 0
  %3414 = vmatprep.subr.mxu0 0.0
  %3415 = vmatpush1.msra.mxu0 %v3401
  %3416 = vmatprep.subr.mxu0 0.0
  %3417 = vmatpush1.msra.mxu0 0.0
  %3418 = vmatprep.subr.mxu0 0.0
  %3419 = vmatpush1.msra.mxu0 0.0
  %3420 = vmatprep.subr.mxu0 0.0
  %3421 = vmatpush1.msra.mxu0 0.0
  %3422 = vmatprep.subr.mxu0 0.0
  %3423 = vmatpush1.msra.mxu0 0.0
  %3424 = vmatprep.subr.mxu0 0.0
  %3425 = vmatpush1.msra.mxu0 0.0
  %3426 = vmatprep.subr.mxu0 0.0
  %3427 = vmatpush1.msra.mxu0 0.0
  %3428 = vmatprep.subr.mxu0 0.0
  %3429 = vmatpush1.msra.mxu0 0.0
  %3430 = vmatprep.subr.mxu0 0.0
  %3431 = vmatpush1.msra.mxu0 0.0
  %3432 = vmatprep.subr.mxu0 0.0
  %3433 = vmatpush1.msra.mxu0 0.0
  %3434 = vmatprep.subr.mxu0 0.0
  %3435 = vmatpush1.msra.mxu0 0.0
  %3436 = vmatprep.subr.mxu0 0.0
  %3437 = vmatpush1.msra.mxu0 0.0
  %3438 = vmatprep.subr.mxu0 0.0
  %3439 = vmatpush1.msra.mxu0 0.0
  %3440 = vmatprep.subr.mxu0 0.0
  %3441 = vmatpush1.msra.mxu0 0.0
  %3442 = vmatprep.subr.mxu0 0.0
  %3443 = vmatpush1.msra.mxu0 0.0
  %3444 = vmatprep.subr.mxu0 0.0
  %3445 = vmatpush1.msra.mxu0 0.0
  %3446 = vmatprep.subr.mxu0 0.0
  %3447 = vmatpush1.msra.mxu0 0.0
  %3448 = vmatprep.subr.mxu0 0.0
  %3449 = vmatpush1.msra.mxu0 0.0
  %3450 = vmatprep.subr.mxu0 0.0
  %3451 = vmatpush1.msra.mxu0 0.0
  %3452 = vmatprep.subr.mxu0 0.0
  %3453 = vmatpush1.msra.mxu0 0.0
  %3454 = vmatprep.subr.mxu0 0.0
  %3455 = vmatpush1.msra.mxu0 0.0
  %3456 = vmatprep.subr.mxu0 0.0
  %3457 = vmatpush1.msra.mxu0 0.0
  %3458 = vmatprep.subr.mxu0 0.0
  %3459 = vmatpush1.msra.mxu0 0.0
  %3460 = vmatprep.subr.mxu0 0.0
  %3461 = vmatpush1.msra.mxu0 0.0
  %3462 = vmatprep.subr.mxu0 0.0
  %3463 = vmatpush1.msra.mxu0 0.0
  %3464 = vmatprep.subr.mxu0 0.0
  %3465 = vmatpush1.msra.mxu0 0.0
  %3466 = vmatprep.subr.mxu0 0.0
  %3467 = vmatpush1.msra.mxu0 0.0
  %3468 = vmatprep.subr.mxu0 0.0
  %3469 = vmatpush1.msra.mxu0 0.0
  %3470 = vmatprep.subr.mxu0 0.0
  %3471 = vmatpush1.msra.mxu0 0.0
  %3472 = vmatprep.subr.mxu0 0.0
  %3473 = vmatpush1.msra.mxu0 0.0
  %3474 = vmatprep.subr.mxu0 0.0
  %3475 = vmatpush1.msra.mxu0 0.0
  %3476 = vmatprep.subr.mxu0 0.0
  %3477 = vmatpush1.msra.mxu0 0.0
  %3478 = vmatprep.mubr.f32.mxu0 0.0
  %3479 = vmatmul.mubr.f32.gmra.mrb[0].mxu0 %v3403
  %v3480 = vpop.f32.mrb[0].mxu0
  %v3481 = vadd.f32 0.0, %v3480
  %v3482 = vpop.f32.mrb[0].mxu0
  %3483 = vmatprep.mubr.f32.mxu0 0.0
  %3484 = vmatmul.mubr.f32.gmra.mrb[0].mxu0 %v3406
  %v3485 = vpop.f32.mrb[0].mxu0
  %v3486 = vadd.f32 0.0, %v3485
  %v3487 = vpop.f32.mrb[0].mxu0
  %3488 = vmatprep.mubr.f32.mxu0 0.0
  %3489 = vmatmul.mubr.f32.gmra.mrb[0].mxu0 %v3409
  %v3490 = vpop.f32.mrb[0].mxu0
  %v3491 = vadd.f32 0.0, %v3490
  %v3492 = vpop.f32.mrb[0].mxu0
  %3493 = vmatprep.mubr.f32.mxu0 0.0
  %3494 = vmatmul.mubr.f32.gmra.mrb[0].mxu0 %v3412
  %v3495 = vpop.f32.mrb[0].mxu0
  %v3496 = vadd.f32 0.0, %v3495
  %v3497 = vpop.f32.mrb[0].mxu0
  %3498 = vdwg.mxu0
  %v3499 = vadd.f32 %v3282, %v3481
  %v3500 = vadd.f32 %v3283, %v3486
  %v3501 = vadd.f32 %v3284, %v3491
  %v3502 = vadd.f32 %v3285, %v3496
  %v3503 = vld [vmem:[%s3] sm:$0x1]
  %v3505 = vlaneseq
  %v3506 = vshrl.u32 %v3505, 7
  %v3507 = vsub.s32 0, %v3506
  %v3508 = vrot.slane %v3503, %v3507
  %v3510 = vadd.f32 %v3499, %v3508
  %v3511 = vadd.f32 %v3500, %v3508
  %v3512 = vadd.f32 %v3501, %v3508
  %v3513 = vadd.f32 %v3502, %v3508
  %vm3514 = vcmp.gt.f32.partialorder %v3510, 0.0
  %vm3515 = vcmp.gt.f32.partialorder %v3511, 0.0
  %vm3516 = vcmp.gt.f32.partialorder %v3512, 0.0
  %vm3517 = vcmp.gt.f32.partialorder %v3513, 0.0
  %v3518 = vmul.f32 %v3510, 0.2
  %v3519 = vmul.f32 %v3511, 0.2
  %v3520 = vmul.f32 %v3512, 0.2
  %v3521 = vmul.f32 %v3513, 0.2
  %v3522 = vsel %vm3514, %v3510, %v3518
  %v3523 = vsel %vm3515, %v3511, %v3519
  %v3524 = vsel %vm3516, %v3512, %v3520
  %v3525 = vsel %vm3517, %v3513, %v3521
  %v3526 = vsub.f32 0.0, %v3522
  %v3527 = vsub.f32 0.0, %v3523
  %v3528 = vsub.f32 0.0, %v3524
  %v3529 = vsub.f32 0.0, %v3525
  %v3530 = vmul.f32 %v3526, 1.442695
  %v3531 = vpow.pop %v3530
  %v3532 = vmul.f32 %v3527, 1.442695
  %v3533 = vpow.pop %v3532
  %v3534 = vmul.f32 %v3528, 1.442695
  %v3535 = vpow.pop %v3534
  %v3536 = vmul.f32 %v3529, 1.442695
  %v3537 = vpow.pop %v3536
  %v3538 = vadd.f32 %v3531, 1.0
  %v3539 = vadd.f32 %v3533, 1.0
  %v3540 = vadd.f32 %v3535, 1.0
  %v3541 = vadd.f32 %v3537, 1.0
  %v3542 = vrcp.pop %v3538
  %v3543 = vmul.f32 1.0, %v3542
  %v3544 = vrcp.pop %v3539
  %v3545 = vmul.f32 1.0, %v3544
  %v3546 = vrcp.pop %v3540
  %v3547 = vmul.f32 1.0, %v3546
  %v3548 = vrcp.pop %v3541
  %v3549 = vmul.f32 1.0, %v3548
  %v3550 = vmul.f32 %v3522, %v3543
  %v3551 = vmul.f32 %v3523, %v3545
  %v3552 = vmul.f32 %v3524, %v3547
  %v3553 = vmul.f32 %v3525, %v3549
  %vm3554 = vcmask 130048
  %3555 = vst.msk [vmem:[#allocation2] sm:$0xff] %vm3554, %v3550
  %3556 = vst.msk [vmem:[#allocation2 + $0x8] sm:$0xff] %vm3554, %v3551
  %3557 = vst.msk [vmem:[#allocation2 + $0x10] sm:$0xff] %vm3554, %v3552
  %3558 = vst.msk [vmem:[#allocation2 + $0x18] sm:$0xff] %vm3554, %v3553
  %v3559 = vld [vmem:[#allocation2] sm:$0x3]
  %v3560 = vld [vmem:[%s4] sm:$0xff]
  %v3561 = vld [vmem:[%s4 + $0x8] sm:$0xff]
  %v3562 = vld [vmem:[#allocation2 + $0x2] sm:$0x3]
  %s3563 = scalar_lea.vmem %s4, 16
  %v3564 = vld [vmem:[%s3563] sm:$0xff]
  %v3565 = vld [vmem:[%s3563 + $0x8] sm:$0xff]
  %v3567 = vsel %vm3554, %v3562, 0
  %3569 = vmatprep.subr.mxu0 0.0
  %3570 = vmatpush1.msra.mxu0 %v3564
  %3571 = vmatprep.subr.mxu0 0.0
  %3572 = vmatpush1.msra.mxu0 %v3565
  %3573 = vmatprep.subr.mxu0 0.0
  %3574 = vmatpush1.msra.mxu0 0.0
  %3575 = vmatprep.subr.mxu0 0.0
  %3576 = vmatpush1.msra.mxu0 0.0
  %3577 = vmatprep.subr.mxu0 0.0
  %3578 = vmatpush1.msra.mxu0 0.0
  %3579 = vmatprep.subr.mxu0 0.0
  %3580 = vmatpush1.msra.mxu0 0.0
  %3581 = vmatprep.subr.mxu0 0.0
  %3582 = vmatpush1.msra.mxu0 0.0
  %3583 = vmatprep.subr.mxu0 0.0
  %3584 = vmatpush1.msra.mxu0 0.0
  %3585 = vmatprep.subr.mxu0 0.0
  %3586 = vmatpush1.msra.mxu0 0.0
  %3587 = vmatprep.subr.mxu0 0.0
  %3588 = vmatpush1.msra.mxu0 0.0
  %3589 = vmatprep.subr.mxu0 0.0
  %3590 = vmatpush1.msra.mxu0 0.0
  %3591 = vmatprep.subr.mxu0 0.0
  %3592 = vmatpush1.msra.mxu0 0.0
  %3593 = vmatprep.subr.mxu0 0.0
  %3594 = vmatpush1.msra.mxu0 0.0
  %3595 = vmatprep.subr.mxu0 0.0
  %3596 = vmatpush1.msra.mxu0 0.0
  %3597 = vmatprep.subr.mxu0 0.0
  %3598 = vmatpush1.msra.mxu0 0.0
  %3599 = vmatprep.subr.mxu0 0.0
  %3600 = vmatpush1.msra.mxu0 0.0
  %3601 = vmatprep.subr.mxu0 0.0
  %3602 = vmatpush1.msra.mxu0 0.0
  %3603 = vmatprep.subr.mxu0 0.0
  %3604 = vmatpush1.msra.mxu0 0.0
  %3605 = vmatprep.subr.mxu0 0.0
  %3606 = vmatpush1.msra.mxu0 0.0
  %3607 = vmatprep.subr.mxu0 0.0
  %3608 = vmatpush1.msra.mxu0 0.0
  %3609 = vmatprep.subr.mxu0 0.0
  %3610 = vmatpush1.msra.mxu0 0.0
  %3611 = vmatprep.subr.mxu0 0.0
  %3612 = vmatpush1.msra.mxu0 0.0
  %3613 = vmatprep.subr.mxu0 0.0
  %3614 = vmatpush1.msra.mxu0 0.0
  %3615 = vmatprep.subr.mxu0 0.0
  %3616 = vmatpush1.msra.mxu0 0.0
  %3617 = vmatprep.subr.mxu0 0.0
  %3618 = vmatpush1.msra.mxu0 0.0
  %3619 = vmatprep.subr.mxu0 0.0
  %3620 = vmatpush1.msra.mxu0 0.0
  %3621 = vmatprep.subr.mxu0 0.0
  %3622 = vmatpush1.msra.mxu0 0.0
  %3623 = vmatprep.subr.mxu0 0.0
  %3624 = vmatpush1.msra.mxu0 0.0
  %3625 = vmatprep.subr.mxu0 0.0
  %3626 = vmatpush1.msra.mxu0 0.0
  %3627 = vmatprep.subr.mxu0 0.0
  %3628 = vmatpush1.msra.mxu0 0.0
  %3629 = vmatprep.subr.mxu0 0.0
  %3630 = vmatpush1.msra.mxu0 0.0
  %3631 = vmatprep.subr.mxu0 0.0
  %3632 = vmatpush1.msra.mxu0 0.0
  %3633 = vmatprep.mubr.f32.mxu0 0.0
  %3634 = vmatmul.mubr.f32.gmra.mrb[0].mxu0 %v3567
  %v3635 = vpop.f32.mrb[0].mxu0
  %v3636 = vadd.f32 0.0, %v3635
  %v3637 = vpop.f32.mrb[0].mxu0
  %3638 = vdwg.mxu0
  %v3640 = vsel %vm3554, %v3559, 0
  %3642 = vmatprep.subr.mxu0 0.0
  %3643 = vmatpush1.msra.mxu0 %v3560
  %3644 = vmatprep.subr.mxu0 0.0
  %3645 = vmatpush1.msra.mxu0 %v3561
  %3646 = vmatprep.subr.mxu0 0.0
  %3647 = vmatpush1.msra.mxu0 0.0
  %3648 = vmatprep.subr.mxu0 0.0
  %3649 = vmatpush1.msra.mxu0 0.0
  %3650 = vmatprep.subr.mxu0 0.0
  %3651 = vmatpush1.msra.mxu0 0.0
  %3652 = vmatprep.subr.mxu0 0.0
  %3653 = vmatpush1.msra.mxu0 0.0
  %3654 = vmatprep.subr.mxu0 0.0
  %3655 = vmatpush1.msra.mxu0 0.0
  %3656 = vmatprep.subr.mxu0 0.0
  %3657 = vmatpush1.msra.mxu0 0.0
  %3658 = vmatprep.subr.mxu0 0.0
  %3659 = vmatpush1.msra.mxu0 0.0
  %3660 = vmatprep.subr.mxu0 0.0
  %3661 = vmatpush1.msra.mxu0 0.0
  %3662 = vmatprep.subr.mxu0 0.0
  %3663 = vmatpush1.msra.mxu0 0.0
  %3664 = vmatprep.subr.mxu0 0.0
  %3665 = vmatpush1.msra.mxu0 0.0
  %3666 = vmatprep.subr.mxu0 0.0
  %3667 = vmatpush1.msra.mxu0 0.0
  %3668 = vmatprep.subr.mxu0 0.0
  %3669 = vmatpush1.msra.mxu0 0.0
  %3670 = vmatprep.subr.mxu0 0.0
  %3671 = vmatpush1.msra.mxu0 0.0
  %3672 = vmatprep.subr.mxu0 0.0
  %3673 = vmatpush1.msra.mxu0 0.0
  %3674 = vmatprep.subr.mxu0 0.0
  %3675 = vmatpush1.msra.mxu0 0.0
  %3676 = vmatprep.subr.mxu0 0.0
  %3677 = vmatpush1.msra.mxu0 0.0
  %3678 = vmatprep.subr.mxu0 0.0
  %3679 = vmatpush1.msra.mxu0 0.0
  %3680 = vmatprep.subr.mxu0 0.0
  %3681 = vmatpush1.msra.mxu0 0.0
  %3682 = vmatprep.subr.mxu0 0.0
  %3683 = vmatpush1.msra.mxu0 0.0
  %3684 = vmatprep.subr.mxu0 0.0
  %3685 = vmatpush1.msra.mxu0 0.0
  %3686 = vmatprep.subr.mxu0 0.0
  %3687 = vmatpush1.msra.mxu0 0.0
  %3688 = vmatprep.subr.mxu0 0.0
  %3689 = vmatpush1.msra.mxu0 0.0
  %3690 = vmatprep.subr.mxu0 0.0
  %3691 = vmatpush1.msra.mxu0 0.0
  %3692 = vmatprep.subr.mxu0 0.0
  %3693 = vmatpush1.msra.mxu0 0.0
  %3694 = vmatprep.subr.mxu0 0.0
  %3695 = vmatpush1.msra.mxu0 0.0
  %3696 = vmatprep.subr.mxu0 0.0
  %3697 = vmatpush1.msra.mxu0 0.0
  %3698 = vmatprep.subr.mxu0 0.0
  %3699 = vmatpush1.msra.mxu0 0.0
  %3700 = vmatprep.subr.mxu0 0.0
  %3701 = vmatpush1.msra.mxu0 0.0
  %3702 = vmatprep.subr.mxu0 0.0
  %3703 = vmatpush1.msra.mxu0 0.0
  %3704 = vmatprep.subr.mxu0 0.0
  %3705 = vmatpush1.msra.mxu0 0.0
  %3706 = vmatprep.mubr.f32.mxu0 0.0
  %3707 = vmatmul.mubr.f32.gmra.mrb[0].mxu0 %v3640
  %v3708 = vpop.f32.mrb[0].mxu0
  %v3709 = vadd.f32 %v3636, %v3708
  %v3710 = vpop.f32.mrb[0].mxu0
  %3711 = vdwg.mxu0
  %v3712 = vld [vmem:[#allocation2 + $0x4] sm:$0x3]
  %s3713 = scalar_lea.vmem %s4, 32
  %v3714 = vld [vmem:[%s3713] sm:$0xff]
  %v3715 = vld [vmem:[%s3713 + $0x8] sm:$0xff]
  %v3717 = vsel %vm3554, %v3712, 0
  %3719 = vmatprep.subr.mxu0 0.0
  %3720 = vmatpush1.msra.mxu0 %v3714
  %3721 = vmatprep.subr.mxu0 0.0
  %3722 = vmatpush1.msra.mxu0 %v3715
  %3723 = vmatprep.subr.mxu0 0.0
  %3724 = vmatpush1.msra.mxu0 0.0
  %3725 = vmatprep.subr.mxu0 0.0
  %3726 = vmatpush1.msra.mxu0 0.0
  %3727 = vmatprep.subr.mxu0 0.0
  %3728 = vmatpush1.msra.mxu0 0.0
  %3729 = vmatprep.subr.mxu0 0.0
  %3730 = vmatpush1.msra.mxu0 0.0
  %3731 = vmatprep.subr.mxu0 0.0
  %3732 = vmatpush1.msra.mxu0 0.0
  %3733 = vmatprep.subr.mxu0 0.0
  %3734 = vmatpush1.msra.mxu0 0.0
  %3735 = vmatprep.subr.mxu0 0.0
  %3736 = vmatpush1.msra.mxu0 0.0
  %3737 = vmatprep.subr.mxu0 0.0
  %3738 = vmatpush1.msra.mxu0 0.0
  %3739 = vmatprep.subr.mxu0 0.0
  %3740 = vmatpush1.msra.mxu0 0.0
  %3741 = vmatprep.subr.mxu0 0.0
  %3742 = vmatpush1.msra.mxu0 0.0
  %3743 = vmatprep.subr.mxu0 0.0
  %3744 = vmatpush1.msra.mxu0 0.0
  %3745 = vmatprep.subr.mxu0 0.0
  %3746 = vmatpush1.msra.mxu0 0.0
  %3747 = vmatprep.subr.mxu0 0.0
  %3748 = vmatpush1.msra.mxu0 0.0
  %3749 = vmatprep.subr.mxu0 0.0
  %3750 = vmatpush1.msra.mxu0 0.0
  %3751 = vmatprep.subr.mxu0 0.0
  %3752 = vmatpush1.msra.mxu0 0.0
  %3753 = vmatprep.subr.mxu0 0.0
  %3754 = vmatpush1.msra.mxu0 0.0
  %3755 = vmatprep.subr.mxu0 0.0
  %3756 = vmatpush1.msra.mxu0 0.0
  %3757 = vmatprep.subr.mxu0 0.0
  %3758 = vmatpush1.msra.mxu0 0.0
  %3759 = vmatprep.subr.mxu0 0.0
  %3760 = vmatpush1.msra.mxu0 0.0
  %3761 = vmatprep.subr.mxu0 0.0
  %3762 = vmatpush1.msra.mxu0 0.0
  %3763 = vmatprep.subr.mxu0 0.0
  %3764 = vmatpush1.msra.mxu0 0.0
  %3765 = vmatprep.subr.mxu0 0.0
  %3766 = vmatpush1.msra.mxu0 0.0
  %3767 = vmatprep.subr.mxu0 0.0
  %3768 = vmatpush1.msra.mxu0 0.0
  %3769 = vmatprep.subr.mxu0 0.0
  %3770 = vmatpush1.msra.mxu0 0.0
  %3771 = vmatprep.subr.mxu0 0.0
  %3772 = vmatpush1.msra.mxu0 0.0
  %3773 = vmatprep.subr.mxu0 0.0
  %3774 = vmatpush1.msra.mxu0 0.0
  %3775 = vmatprep.subr.mxu0 0.0
  %3776 = vmatpush1.msra.mxu0 0.0
  %3777 = vmatprep.subr.mxu0 0.0
  %3778 = vmatpush1.msra.mxu0 0.0
  %3779 = vmatprep.subr.mxu0 0.0
  %3780 = vmatpush1.msra.mxu0 0.0
  %3781 = vmatprep.subr.mxu0 0.0
  %3782 = vmatpush1.msra.mxu0 0.0
  %3783 = vmatprep.mubr.f32.mxu0 0.0
  %3784 = vmatmul.mubr.f32.gmra.mrb[0].mxu0 %v3717
  %v3785 = vpop.f32.mrb[0].mxu0
  %v3786 = vadd.f32 0.0, %v3785
  %v3787 = vpop.f32.mrb[0].mxu0
  %3788 = vdwg.mxu0
  %v3789 = vadd.f32 %v3709, %v3786
  %v3790 = vld [vmem:[#allocation2 + $0x6] sm:$0x3]
  %s3791 = scalar_lea.vmem %s4, 48
  %v3792 = vld [vmem:[%s3791] sm:$0xff]
  %v3793 = vld [vmem:[%s3791 + $0x8] sm:$0xff]
  %v3795 = vsel %vm3554, %v3790, 0
  %3797 = vmatprep.subr.mxu0 0.0
  %3798 = vmatpush1.msra.mxu0 %v3792
  %3799 = vmatprep.subr.mxu0 0.0
  %3800 = vmatpush1.msra.mxu0 %v3793
  %3801 = vmatprep.subr.mxu0 0.0
  %3802 = vmatpush1.msra.mxu0 0.0
  %3803 = vmatprep.subr.mxu0 0.0
  %3804 = vmatpush1.msra.mxu0 0.0
  %3805 = vmatprep.subr.mxu0 0.0
  %3806 = vmatpush1.msra.mxu0 0.0
  %3807 = vmatprep.subr.mxu0 0.0
  %3808 = vmatpush1.msra.mxu0 0.0
  %3809 = vmatprep.subr.mxu0 0.0
  %3810 = vmatpush1.msra.mxu0 0.0
  %3811 = vmatprep.subr.mxu0 0.0
  %3812 = vmatpush1.msra.mxu0 0.0
  %3813 = vmatprep.subr.mxu0 0.0
  %3814 = vmatpush1.msra.mxu0 0.0
  %3815 = vmatprep.subr.mxu0 0.0
  %3816 = vmatpush1.msra.mxu0 0.0
  %3817 = vmatprep.subr.mxu0 0.0
  %3818 = vmatpush1.msra.mxu0 0.0
  %3819 = vmatprep.subr.mxu0 0.0
  %3820 = vmatpush1.msra.mxu0 0.0
  %3821 = vmatprep.subr.mxu0 0.0
  %3822 = vmatpush1.msra.mxu0 0.0
  %3823 = vmatprep.subr.mxu0 0.0
  %3824 = vmatpush1.msra.mxu0 0.0
  %3825 = vmatprep.subr.mxu0 0.0
  %3826 = vmatpush1.msra.mxu0 0.0
  %3827 = vmatprep.subr.mxu0 0.0
  %3828 = vmatpush1.msra.mxu0 0.0
  %3829 = vmatprep.subr.mxu0 0.0
  %3830 = vmatpush1.msra.mxu0 0.0
  %3831 = vmatprep.subr.mxu0 0.0
  %3832 = vmatpush1.msra.mxu0 0.0
  %3833 = vmatprep.subr.mxu0 0.0
  %3834 = vmatpush1.msra.mxu0 0.0
  %3835 = vmatprep.subr.mxu0 0.0
  %3836 = vmatpush1.msra.mxu0 0.0
  %3837 = vmatprep.subr.mxu0 0.0
  %3838 = vmatpush1.msra.mxu0 0.0
  %3839 = vmatprep.subr.mxu0 0.0
  %3840 = vmatpush1.msra.mxu0 0.0
  %3841 = vmatprep.subr.mxu0 0.0
  %3842 = vmatpush1.msra.mxu0 0.0
  %3843 = vmatprep.subr.mxu0 0.0
  %3844 = vmatpush1.msra.mxu0 0.0
  %3845 = vmatprep.subr.mxu0 0.0
  %3846 = vmatpush1.msra.mxu0 0.0
  %3847 = vmatprep.subr.mxu0 0.0
  %3848 = vmatpush1.msra.mxu0 0.0
  %3849 = vmatprep.subr.mxu0 0.0
  %3850 = vmatpush1.msra.mxu0 0.0
  %3851 = vmatprep.subr.mxu0 0.0
  %3852 = vmatpush1.msra.mxu0 0.0
  %3853 = vmatprep.subr.mxu0 0.0
  %3854 = vmatpush1.msra.mxu0 0.0
  %3855 = vmatprep.subr.mxu0 0.0
  %3856 = vmatpush1.msra.mxu0 0.0
  %3857 = vmatprep.subr.mxu0 0.0
  %3858 = vmatpush1.msra.mxu0 0.0
  %3859 = vmatprep.subr.mxu0 0.0
  %3860 = vmatpush1.msra.mxu0 0.0
  %3861 = vmatprep.mubr.f32.mxu0 0.0
  %3862 = vmatmul.mubr.f32.gmra.mrb[0].mxu0 %v3795
  %v3863 = vpop.f32.mrb[0].mxu0
  %v3864 = vadd.f32 0.0, %v3863
  %v3865 = vpop.f32.mrb[0].mxu0
  %3866 = vdwg.mxu0
  %v3867 = vadd.f32 %v3789, %v3864
  %v3868 = vld [vmem:[#allocation2 + $0x8] sm:$0x3]
  %s3869 = scalar_lea.vmem %s4, 64
  %v3870 = vld [vmem:[%s3869] sm:$0xff]
  %v3871 = vld [vmem:[%s3869 + $0x8] sm:$0xff]
  %v3873 = vsel %vm3554, %v3868, 0
  %3875 = vmatprep.subr.mxu0 0.0
  %3876 = vmatpush1.msra.mxu0 %v3870
  %3877 = vmatprep.subr.mxu0 0.0
  %3878 = vmatpush1.msra.mxu0 %v3871
  %3879 = vmatprep.subr.mxu0 0.0
  %3880 = vmatpush1.msra.mxu0 0.0
  %3881 = vmatprep.subr.mxu0 0.0
  %3882 = vmatpush1.msra.mxu0 0.0
  %3883 = vmatprep.subr.mxu0 0.0
  %3884 = vmatpush1.msra.mxu0 0.0
  %3885 = vmatprep.subr.mxu0 0.0
  %3886 = vmatpush1.msra.mxu0 0.0
  %3887 = vmatprep.subr.mxu0 0.0
  %3888 = vmatpush1.msra.mxu0 0.0
  %3889 = vmatprep.subr.mxu0 0.0
  %3890 = vmatpush1.msra.mxu0 0.0
  %3891 = vmatprep.subr.mxu0 0.0
  %3892 = vmatpush1.msra.mxu0 0.0
  %3893 = vmatprep.subr.mxu0 0.0
  %3894 = vmatpush1.msra.mxu0 0.0
  %3895 = vmatprep.subr.mxu0 0.0
  %3896 = vmatpush1.msra.mxu0 0.0
  %3897 = vmatprep.subr.mxu0 0.0
  %3898 = vmatpush1.msra.mxu0 0.0
  %3899 = vmatprep.subr.mxu0 0.0
  %3900 = vmatpush1.msra.mxu0 0.0
  %3901 = vmatprep.subr.mxu0 0.0
  %3902 = vmatpush1.msra.mxu0 0.0
  %3903 = vmatprep.subr.mxu0 0.0
  %3904 = vmatpush1.msra.mxu0 0.0
  %3905 = vmatprep.subr.mxu0 0.0
  %3906 = vmatpush1.msra.mxu0 0.0
  %3907 = vmatprep.subr.mxu0 0.0
  %3908 = vmatpush1.msra.mxu0 0.0
  %3909 = vmatprep.subr.mxu0 0.0
  %3910 = vmatpush1.msra.mxu0 0.0
  %3911 = vmatprep.subr.mxu0 0.0
  %3912 = vmatpush1.msra.mxu0 0.0
  %3913 = vmatprep.subr.mxu0 0.0
  %3914 = vmatpush1.msra.mxu0 0.0
  %3915 = vmatprep.subr.mxu0 0.0
  %3916 = vmatpush1.msra.mxu0 0.0
  %3917 = vmatprep.subr.mxu0 0.0
  %3918 = vmatpush1.msra.mxu0 0.0
  %3919 = vmatprep.subr.mxu0 0.0
  %3920 = vmatpush1.msra.mxu0 0.0
  %3921 = vmatprep.subr.mxu0 0.0
  %3922 = vmatpush1.msra.mxu0 0.0
  %3923 = vmatprep.subr.mxu0 0.0
  %3924 = vmatpush1.msra.mxu0 0.0
  %3925 = vmatprep.subr.mxu0 0.0
  %3926 = vmatpush1.msra.mxu0 0.0
  %3927 = vmatprep.subr.mxu0 0.0
  %3928 = vmatpush1.msra.mxu0 0.0
  %3929 = vmatprep.subr.mxu0 0.0
  %3930 = vmatpush1.msra.mxu0 0.0
  %3931 = vmatprep.subr.mxu0 0.0
  %3932 = vmatpush1.msra.mxu0 0.0
  %3933 = vmatprep.subr.mxu0 0.0
  %3934 = vmatpush1.msra.mxu0 0.0
  %3935 = vmatprep.subr.mxu0 0.0
  %3936 = vmatpush1.msra.mxu0 0.0
  %3937 = vmatprep.subr.mxu0 0.0
  %3938 = vmatpush1.msra.mxu0 0.0
  %3939 = vmatprep.mubr.f32.mxu0 0.0
  %3940 = vmatmul.mubr.f32.gmra.mrb[0].mxu0 %v3873
  %v3941 = vpop.f32.mrb[0].mxu0
  %v3942 = vadd.f32 0.0, %v3941
  %v3943 = vpop.f32.mrb[0].mxu0
  %3944 = vdwg.mxu0
  %v3945 = vadd.f32 %v3867, %v3942
  %v3946 = vld [vmem:[#allocation2 + $0xa] sm:$0x3]
  %s3947 = scalar_lea.vmem %s4, 80
  %v3948 = vld [vmem:[%s3947] sm:$0xff]
  %v3949 = vld [vmem:[%s3947 + $0x8] sm:$0xff]
  %v3951 = vsel %vm3554, %v3946, 0
  %3953 = vmatprep.subr.mxu0 0.0
  %3954 = vmatpush1.msra.mxu0 %v3948
  %3955 = vmatprep.subr.mxu0 0.0
  %3956 = vmatpush1.msra.mxu0 %v3949
  %3957 = vmatprep.subr.mxu0 0.0
  %3958 = vmatpush1.msra.mxu0 0.0
  %3959 = vmatprep.subr.mxu0 0.0
  %3960 = vmatpush1.msra.mxu0 0.0
  %3961 = vmatprep.subr.mxu0 0.0
  %3962 = vmatpush1.msra.mxu0 0.0
  %3963 = vmatprep.subr.mxu0 0.0
  %3964 = vmatpush1.msra.mxu0 0.0
  %3965 = vmatprep.subr.mxu0 0.0
  %3966 = vmatpush1.msra.mxu0 0.0
  %3967 = vmatprep.subr.mxu0 0.0
  %3968 = vmatpush1.msra.mxu0 0.0
  %3969 = vmatprep.subr.mxu0 0.0
  %3970 = vmatpush1.msra.mxu0 0.0
  %3971 = vmatprep.subr.mxu0 0.0
  %3972 = vmatpush1.msra.mxu0 0.0
  %3973 = vmatprep.subr.mxu0 0.0
  %3974 = vmatpush1.msra.mxu0 0.0
  %3975 = vmatprep.subr.mxu0 0.0
  %3976 = vmatpush1.msra.mxu0 0.0
  %3977 = vmatprep.subr.mxu0 0.0
  %3978 = vmatpush1.msra.mxu0 0.0
  %3979 = vmatprep.subr.mxu0 0.0
  %3980 = vmatpush1.msra.mxu0 0.0
  %3981 = vmatprep.subr.mxu0 0.0
  %3982 = vmatpush1.msra.mxu0 0.0
  %3983 = vmatprep.subr.mxu0 0.0
  %3984 = vmatpush1.msra.mxu0 0.0
  %3985 = vmatprep.subr.mxu0 0.0
  %3986 = vmatpush1.msra.mxu0 0.0
  %3987 = vmatprep.subr.mxu0 0.0
  %3988 = vmatpush1.msra.mxu0 0.0
  %3989 = vmatprep.subr.mxu0 0.0
  %3990 = vmatpush1.msra.mxu0 0.0
  %3991 = vmatprep.subr.mxu0 0.0
  %3992 = vmatpush1.msra.mxu0 0.0
  %3993 = vmatprep.subr.mxu0 0.0
  %3994 = vmatpush1.msra.mxu0 0.0
  %3995 = vmatprep.subr.mxu0 0.0
  %3996 = vmatpush1.msra.mxu0 0.0
  %3997 = vmatprep.subr.mxu0 0.0
  %3998 = vmatpush1.msra.mxu0 0.0
  %3999 = vmatprep.subr.mxu0 0.0
  %4000 = vmatpush1.msra.mxu0 0.0
  %4001 = vmatprep.subr.mxu0 0.0
  %4002 = vmatpush1.msra.mxu0 0.0
  %4003 = vmatprep.subr.mxu0 0.0
  %4004 = vmatpush1.msra.mxu0 0.0
  %4005 = vmatprep.subr.mxu0 0.0
  %4006 = vmatpush1.msra.mxu0 0.0
  %4007 = vmatprep.subr.mxu0 0.0
  %4008 = vmatpush1.msra.mxu0 0.0
  %4009 = vmatprep.subr.mxu0 0.0
  %4010 = vmatpush1.msra.mxu0 0.0
  %4011 = vmatprep.subr.mxu0 0.0
  %4012 = vmatpush1.msra.mxu0 0.0
  %4013 = vmatprep.subr.mxu0 0.0
  %4014 = vmatpush1.msra.mxu0 0.0
  %4015 = vmatprep.subr.mxu0 0.0
  %4016 = vmatpush1.msra.mxu0 0.0
  %4017 = vmatprep.mubr.f32.mxu0 0.0
  %4018 = vmatmul.mubr.f32.gmra.mrb[0].mxu0 %v3951
  %v4019 = vpop.f32.mrb[0].mxu0
  %v4020 = vadd.f32 0.0, %v4019
  %v4021 = vpop.f32.mrb[0].mxu0
  %4022 = vdwg.mxu0
  %v4023 = vadd.f32 %v3945, %v4020
  %v4024 = vld [vmem:[#allocation2 + $0xc] sm:$0x3]
  %s4025 = scalar_lea.vmem %s4, 96
  %v4026 = vld [vmem:[%s4025] sm:$0xff]
  %v4027 = vld [vmem:[%s4025 + $0x8] sm:$0xff]
  %v4029 = vsel %vm3554, %v4024, 0
  %4031 = vmatprep.subr.mxu0 0.0
  %4032 = vmatpush1.msra.mxu0 %v4026
  %4033 = vmatprep.subr.mxu0 0.0
  %4034 = vmatpush1.msra.mxu0 %v4027
  %4035 = vmatprep.subr.mxu0 0.0
  %4036 = vmatpush1.msra.mxu0 0.0
  %4037 = vmatprep.subr.mxu0 0.0
  %4038 = vmatpush1.msra.mxu0 0.0
  %4039 = vmatprep.subr.mxu0 0.0
  %4040 = vmatpush1.msra.mxu0 0.0
  %4041 = vmatprep.subr.mxu0 0.0
  %4042 = vmatpush1.msra.mxu0 0.0
  %4043 = vmatprep.subr.mxu0 0.0
  %4044 = vmatpush1.msra.mxu0 0.0
  %4045 = vmatprep.subr.mxu0 0.0
  %4046 = vmatpush1.msra.mxu0 0.0
  %4047 = vmatprep.subr.mxu0 0.0
  %4048 = vmatpush1.msra.mxu0 0.0
  %4049 = vmatprep.subr.mxu0 0.0
  %4050 = vmatpush1.msra.mxu0 0.0
  %4051 = vmatprep.subr.mxu0 0.0
  %4052 = vmatpush1.msra.mxu0 0.0
  %4053 = vmatprep.subr.mxu0 0.0
  %4054 = vmatpush1.msra.mxu0 0.0
  %4055 = vmatprep.subr.mxu0 0.0
  %4056 = vmatpush1.msra.mxu0 0.0
  %4057 = vmatprep.subr.mxu0 0.0
  %4058 = vmatpush1.msra.mxu0 0.0
  %4059 = vmatprep.subr.mxu0 0.0
  %4060 = vmatpush1.msra.mxu0 0.0
  %4061 = vmatprep.subr.mxu0 0.0
  %4062 = vmatpush1.msra.mxu0 0.0
  %4063 = vmatprep.subr.mxu0 0.0
  %4064 = vmatpush1.msra.mxu0 0.0
  %4065 = vmatprep.subr.mxu0 0.0
  %4066 = vmatpush1.msra.mxu0 0.0
  %4067 = vmatprep.subr.mxu0 0.0
  %4068 = vmatpush1.msra.mxu0 0.0
  %4069 = vmatprep.subr.mxu0 0.0
  %4070 = vmatpush1.msra.mxu0 0.0
  %4071 = vmatprep.subr.mxu0 0.0
  %4072 = vmatpush1.msra.mxu0 0.0
  %4073 = vmatprep.subr.mxu0 0.0
  %4074 = vmatpush1.msra.mxu0 0.0
  %4075 = vmatprep.subr.mxu0 0.0
  %4076 = vmatpush1.msra.mxu0 0.0
  %4077 = vmatprep.subr.mxu0 0.0
  %4078 = vmatpush1.msra.mxu0 0.0
  %4079 = vmatprep.subr.mxu0 0.0
  %4080 = vmatpush1.msra.mxu0 0.0
  %4081 = vmatprep.subr.mxu0 0.0
  %4082 = vmatpush1.msra.mxu0 0.0
  %4083 = vmatprep.subr.mxu0 0.0
  %4084 = vmatpush1.msra.mxu0 0.0
  %4085 = vmatprep.subr.mxu0 0.0
  %4086 = vmatpush1.msra.mxu0 0.0
  %4087 = vmatprep.subr.mxu0 0.0
  %4088 = vmatpush1.msra.mxu0 0.0
  %4089 = vmatprep.subr.mxu0 0.0
  %4090 = vmatpush1.msra.mxu0 0.0
  %4091 = vmatprep.subr.mxu0 0.0
  %4092 = vmatpush1.msra.mxu0 0.0
  %4093 = vmatprep.subr.mxu0 0.0
  %4094 = vmatpush1.msra.mxu0 0.0
  %4095 = vmatprep.mubr.f32.mxu0 0.0
  %4096 = vmatmul.mubr.f32.gmra.mrb[0].mxu0 %v4029
  %v4097 = vpop.f32.mrb[0].mxu0
  %v4098 = vadd.f32 0.0, %v4097
  %v4099 = vpop.f32.mrb[0].mxu0
  %4100 = vdwg.mxu0
  %v4101 = vadd.f32 %v4023, %v4098
  %v4102 = vld [vmem:[#allocation2 + $0xe] sm:$0x3]
  %s4103 = scalar_lea.vmem %s4, 112
  %v4104 = vld [vmem:[%s4103] sm:$0xff]
  %v4105 = vld [vmem:[%s4103 + $0x8] sm:$0xff]
  %v4107 = vsel %vm3554, %v4102, 0
  %4109 = vmatprep.subr.mxu0 0.0
  %4110 = vmatpush1.msra.mxu0 %v4104
  %4111 = vmatprep.subr.mxu0 0.0
  %4112 = vmatpush1.msra.mxu0 %v4105
  %4113 = vmatprep.subr.mxu0 0.0
  %4114 = vmatpush1.msra.mxu0 0.0
  %4115 = vmatprep.subr.mxu0 0.0
  %4116 = vmatpush1.msra.mxu0 0.0
  %4117 = vmatprep.subr.mxu0 0.0
  %4118 = vmatpush1.msra.mxu0 0.0
  %4119 = vmatprep.subr.mxu0 0.0
  %4120 = vmatpush1.msra.mxu0 0.0
  %4121 = vmatprep.subr.mxu0 0.0
  %4122 = vmatpush1.msra.mxu0 0.0
  %4123 = vmatprep.subr.mxu0 0.0
  %4124 = vmatpush1.msra.mxu0 0.0
  %4125 = vmatprep.subr.mxu0 0.0
  %4126 = vmatpush1.msra.mxu0 0.0
  %4127 = vmatprep.subr.mxu0 0.0
  %4128 = vmatpush1.msra.mxu0 0.0
  %4129 = vmatprep.subr.mxu0 0.0
  %4130 = vmatpush1.msra.mxu0 0.0
  %4131 = vmatprep.subr.mxu0 0.0
  %4132 = vmatpush1.msra.mxu0 0.0
  %4133 = vmatprep.subr.mxu0 0.0
  %4134 = vmatpush1.msra.mxu0 0.0
  %4135 = vmatprep.subr.mxu0 0.0
  %4136 = vmatpush1.msra.mxu0 0.0
  %4137 = vmatprep.subr.mxu0 0.0
  %4138 = vmatpush1.msra.mxu0 0.0
  %4139 = vmatprep.subr.mxu0 0.0
  %4140 = vmatpush1.msra.mxu0 0.0
  %4141 = vmatprep.subr.mxu0 0.0
  %4142 = vmatpush1.msra.mxu0 0.0
  %4143 = vmatprep.subr.mxu0 0.0
  %4144 = vmatpush1.msra.mxu0 0.0
  %4145 = vmatprep.subr.mxu0 0.0
  %4146 = vmatpush1.msra.mxu0 0.0
  %4147 = vmatprep.subr.mxu0 0.0
  %4148 = vmatpush1.msra.mxu0 0.0
  %4149 = vmatprep.subr.mxu0 0.0
  %4150 = vmatpush1.msra.mxu0 0.0
  %4151 = vmatprep.subr.mxu0 0.0
  %4152 = vmatpush1.msra.mxu0 0.0
  %4153 = vmatprep.subr.mxu0 0.0
  %4154 = vmatpush1.msra.mxu0 0.0
  %4155 = vmatprep.subr.mxu0 0.0
  %4156 = vmatpush1.msra.mxu0 0.0
  %4157 = vmatprep.subr.mxu0 0.0
  %4158 = vmatpush1.msra.mxu0 0.0
  %4159 = vmatprep.subr.mxu0 0.0
  %4160 = vmatpush1.msra.mxu0 0.0
  %4161 = vmatprep.subr.mxu0 0.0
  %4162 = vmatpush1.msra.mxu0 0.0
  %4163 = vmatprep.subr.mxu0 0.0
  %4164 = vmatpush1.msra.mxu0 0.0
  %4165 = vmatprep.subr.mxu0 0.0
  %4166 = vmatpush1.msra.mxu0 0.0
  %4167 = vmatprep.subr.mxu0 0.0
  %4168 = vmatpush1.msra.mxu0 0.0
  %4169 = vmatprep.subr.mxu0 0.0
  %4170 = vmatpush1.msra.mxu0 0.0
  %4171 = vmatprep.subr.mxu0 0.0
  %4172 = vmatpush1.msra.mxu0 0.0
  %4173 = vmatprep.mubr.f32.mxu0 0.0
  %4174 = vmatmul.mubr.f32.gmra.mrb[0].mxu0 %v4107
  %v4175 = vpop.f32.mrb[0].mxu0
  %v4176 = vadd.f32 0.0, %v4175
  %v4177 = vpop.f32.mrb[0].mxu0
  %4178 = vdwg.mxu0
  %v4179 = vadd.f32 %v4101, %v4176
  %v4180 = vld [vmem:[#allocation2 + $0x10] sm:$0x3]
  %s4181 = scalar_lea.vmem %s4, 128
  %v4182 = vld [vmem:[%s4181] sm:$0xff]
  %v4183 = vld [vmem:[%s4181 + $0x8] sm:$0xff]
  %v4185 = vsel %vm3554, %v4180, 0
  %4187 = vmatprep.subr.mxu0 0.0
  %4188 = vmatpush1.msra.mxu0 %v4182
  %4189 = vmatprep.subr.mxu0 0.0
  %4190 = vmatpush1.msra.mxu0 %v4183
  %4191 = vmatprep.subr.mxu0 0.0
  %4192 = vmatpush1.msra.mxu0 0.0
  %4193 = vmatprep.subr.mxu0 0.0
  %4194 = vmatpush1.msra.mxu0 0.0
  %4195 = vmatprep.subr.mxu0 0.0
  %4196 = vmatpush1.msra.mxu0 0.0
  %4197 = vmatprep.subr.mxu0 0.0
  %4198 = vmatpush1.msra.mxu0 0.0
  %4199 = vmatprep.subr.mxu0 0.0
  %4200 = vmatpush1.msra.mxu0 0.0
  %4201 = vmatprep.subr.mxu0 0.0
  %4202 = vmatpush1.msra.mxu0 0.0
  %4203 = vmatprep.subr.mxu0 0.0
  %4204 = vmatpush1.msra.mxu0 0.0
  %4205 = vmatprep.subr.mxu0 0.0
  %4206 = vmatpush1.msra.mxu0 0.0
  %4207 = vmatprep.subr.mxu0 0.0
  %4208 = vmatpush1.msra.mxu0 0.0
  %4209 = vmatprep.subr.mxu0 0.0
  %4210 = vmatpush1.msra.mxu0 0.0
  %4211 = vmatprep.subr.mxu0 0.0
  %4212 = vmatpush1.msra.mxu0 0.0
  %4213 = vmatprep.subr.mxu0 0.0
  %4214 = vmatpush1.msra.mxu0 0.0
  %4215 = vmatprep.subr.mxu0 0.0
  %4216 = vmatpush1.msra.mxu0 0.0
  %4217 = vmatprep.subr.mxu0 0.0
  %4218 = vmatpush1.msra.mxu0 0.0
  %4219 = vmatprep.subr.mxu0 0.0
  %4220 = vmatpush1.msra.mxu0 0.0
  %4221 = vmatprep.subr.mxu0 0.0
  %4222 = vmatpush1.msra.mxu0 0.0
  %4223 = vmatprep.subr.mxu0 0.0
  %4224 = vmatpush1.msra.mxu0 0.0
  %4225 = vmatprep.subr.mxu0 0.0
  %4226 = vmatpush1.msra.mxu0 0.0
  %4227 = vmatprep.subr.mxu0 0.0
  %4228 = vmatpush1.msra.mxu0 0.0
  %4229 = vmatprep.subr.mxu0 0.0
  %4230 = vmatpush1.msra.mxu0 0.0
  %4231 = vmatprep.subr.mxu0 0.0
  %4232 = vmatpush1.msra.mxu0 0.0
  %4233 = vmatprep.subr.mxu0 0.0
  %4234 = vmatpush1.msra.mxu0 0.0
  %4235 = vmatprep.subr.mxu0 0.0
  %4236 = vmatpush1.msra.mxu0 0.0
  %4237 = vmatprep.subr.mxu0 0.0
  %4238 = vmatpush1.msra.mxu0 0.0
  %4239 = vmatprep.subr.mxu0 0.0
  %4240 = vmatpush1.msra.mxu0 0.0
  %4241 = vmatprep.subr.mxu0 0.0
  %4242 = vmatpush1.msra.mxu0 0.0
  %4243 = vmatprep.subr.mxu0 0.0
  %4244 = vmatpush1.msra.mxu0 0.0
  %4245 = vmatprep.subr.mxu0 0.0
  %4246 = vmatpush1.msra.mxu0 0.0
  %4247 = vmatprep.subr.mxu0 0.0
  %4248 = vmatpush1.msra.mxu0 0.0
  %4249 = vmatprep.subr.mxu0 0.0
  %4250 = vmatpush1.msra.mxu0 0.0
  %4251 = vmatprep.mubr.f32.mxu0 0.0
  %4252 = vmatmul.mubr.f32.gmra.mrb[0].mxu0 %v4185
  %v4253 = vpop.f32.mrb[0].mxu0
  %v4254 = vadd.f32 0.0, %v4253
  %v4255 = vpop.f32.mrb[0].mxu0
  %4256 = vdwg.mxu0
  %v4257 = vadd.f32 %v4179, %v4254
  %v4258 = vld [vmem:[#allocation2 + $0x12] sm:$0x3]
  %s4259 = scalar_lea.vmem %s4, 144
  %v4260 = vld [vmem:[%s4259] sm:$0xff]
  %v4261 = vld [vmem:[%s4259 + $0x8] sm:$0xff]
  %v4263 = vsel %vm3554, %v4258, 0
  %4265 = vmatprep.subr.mxu0 0.0
  %4266 = vmatpush1.msra.mxu0 %v4260
  %4267 = vmatprep.subr.mxu0 0.0
  %4268 = vmatpush1.msra.mxu0 %v4261
  %4269 = vmatprep.subr.mxu0 0.0
  %4270 = vmatpush1.msra.mxu0 0.0
  %4271 = vmatprep.subr.mxu0 0.0
  %4272 = vmatpush1.msra.mxu0 0.0
  %4273 = vmatprep.subr.mxu0 0.0
  %4274 = vmatpush1.msra.mxu0 0.0
  %4275 = vmatprep.subr.mxu0 0.0
  %4276 = vmatpush1.msra.mxu0 0.0
  %4277 = vmatprep.subr.mxu0 0.0
  %4278 = vmatpush1.msra.mxu0 0.0
  %4279 = vmatprep.subr.mxu0 0.0
  %4280 = vmatpush1.msra.mxu0 0.0
  %4281 = vmatprep.subr.mxu0 0.0
  %4282 = vmatpush1.msra.mxu0 0.0
  %4283 = vmatprep.subr.mxu0 0.0
  %4284 = vmatpush1.msra.mxu0 0.0
  %4285 = vmatprep.subr.mxu0 0.0
  %4286 = vmatpush1.msra.mxu0 0.0
  %4287 = vmatprep.subr.mxu0 0.0
  %4288 = vmatpush1.msra.mxu0 0.0
  %4289 = vmatprep.subr.mxu0 0.0
  %4290 = vmatpush1.msra.mxu0 0.0
  %4291 = vmatprep.subr.mxu0 0.0
  %4292 = vmatpush1.msra.mxu0 0.0
  %4293 = vmatprep.subr.mxu0 0.0
  %4294 = vmatpush1.msra.mxu0 0.0
  %4295 = vmatprep.subr.mxu0 0.0
  %4296 = vmatpush1.msra.mxu0 0.0
  %4297 = vmatprep.subr.mxu0 0.0
  %4298 = vmatpush1.msra.mxu0 0.0
  %4299 = vmatprep.subr.mxu0 0.0
  %4300 = vmatpush1.msra.mxu0 0.0
  %4301 = vmatprep.subr.mxu0 0.0
  %4302 = vmatpush1.msra.mxu0 0.0
  %4303 = vmatprep.subr.mxu0 0.0
  %4304 = vmatpush1.msra.mxu0 0.0
  %4305 = vmatprep.subr.mxu0 0.0
  %4306 = vmatpush1.msra.mxu0 0.0
  %4307 = vmatprep.subr.mxu0 0.0
  %4308 = vmatpush1.msra.mxu0 0.0
  %4309 = vmatprep.subr.mxu0 0.0
  %4310 = vmatpush1.msra.mxu0 0.0
  %4311 = vmatprep.subr.mxu0 0.0
  %4312 = vmatpush1.msra.mxu0 0.0
  %4313 = vmatprep.subr.mxu0 0.0
  %4314 = vmatpush1.msra.mxu0 0.0
  %4315 = vmatprep.subr.mxu0 0.0
  %4316 = vmatpush1.msra.mxu0 0.0
  %4317 = vmatprep.subr.mxu0 0.0
  %4318 = vmatpush1.msra.mxu0 0.0
  %4319 = vmatprep.subr.mxu0 0.0
  %4320 = vmatpush1.msra.mxu0 0.0
  %4321 = vmatprep.subr.mxu0 0.0
  %4322 = vmatpush1.msra.mxu0 0.0
  %4323 = vmatprep.subr.mxu0 0.0
  %4324 = vmatpush1.msra.mxu0 0.0
  %4325 = vmatprep.subr.mxu0 0.0
  %4326 = vmatpush1.msra.mxu0 0.0
  %4327 = vmatprep.subr.mxu0 0.0
  %4328 = vmatpush1.msra.mxu0 0.0
  %4329 = vmatprep.mubr.f32.mxu0 0.0
  %4330 = vmatmul.mubr.f32.gmra.mrb[0].mxu0 %v4263
  %v4331 = vpop.f32.mrb[0].mxu0
  %v4332 = vadd.f32 0.0, %v4331
  %v4333 = vpop.f32.mrb[0].mxu0
  %4334 = vdwg.mxu0
  %v4335 = vadd.f32 %v4257, %v4332
  %v4336 = vld [vmem:[#allocation2 + $0x14] sm:$0x3]
  %s4337 = scalar_lea.vmem %s4, 160
  %v4338 = vld [vmem:[%s4337] sm:$0xff]
  %v4339 = vld [vmem:[%s4337 + $0x8] sm:$0xff]
  %v4341 = vsel %vm3554, %v4336, 0
  %4343 = vmatprep.subr.mxu0 0.0
  %4344 = vmatpush1.msra.mxu0 %v4338
  %4345 = vmatprep.subr.mxu0 0.0
  %4346 = vmatpush1.msra.mxu0 %v4339
  %4347 = vmatprep.subr.mxu0 0.0
  %4348 = vmatpush1.msra.mxu0 0.0
  %4349 = vmatprep.subr.mxu0 0.0
  %4350 = vmatpush1.msra.mxu0 0.0
  %4351 = vmatprep.subr.mxu0 0.0
  %4352 = vmatpush1.msra.mxu0 0.0
  %4353 = vmatprep.subr.mxu0 0.0
  %4354 = vmatpush1.msra.mxu0 0.0
  %4355 = vmatprep.subr.mxu0 0.0
  %4356 = vmatpush1.msra.mxu0 0.0
  %4357 = vmatprep.subr.mxu0 0.0
  %4358 = vmatpush1.msra.mxu0 0.0
  %4359 = vmatprep.subr.mxu0 0.0
  %4360 = vmatpush1.msra.mxu0 0.0
  %4361 = vmatprep.subr.mxu0 0.0
  %4362 = vmatpush1.msra.mxu0 0.0
  %4363 = vmatprep.subr.mxu0 0.0
  %4364 = vmatpush1.msra.mxu0 0.0
  %4365 = vmatprep.subr.mxu0 0.0
  %4366 = vmatpush1.msra.mxu0 0.0
  %4367 = vmatprep.subr.mxu0 0.0
  %4368 = vmatpush1.msra.mxu0 0.0
  %4369 = vmatprep.subr.mxu0 0.0
  %4370 = vmatpush1.msra.mxu0 0.0
  %4371 = vmatprep.subr.mxu0 0.0
  %4372 = vmatpush1.msra.mxu0 0.0
  %4373 = vmatprep.subr.mxu0 0.0
  %4374 = vmatpush1.msra.mxu0 0.0
  %4375 = vmatprep.subr.mxu0 0.0
  %4376 = vmatpush1.msra.mxu0 0.0
  %4377 = vmatprep.subr.mxu0 0.0
  %4378 = vmatpush1.msra.mxu0 0.0
  %4379 = vmatprep.subr.mxu0 0.0
  %4380 = vmatpush1.msra.mxu0 0.0
  %4381 = vmatprep.subr.mxu0 0.0
  %4382 = vmatpush1.msra.mxu0 0.0
  %4383 = vmatprep.subr.mxu0 0.0
  %4384 = vmatpush1.msra.mxu0 0.0
  %4385 = vmatprep.subr.mxu0 0.0
  %4386 = vmatpush1.msra.mxu0 0.0
  %4387 = vmatprep.subr.mxu0 0.0
  %4388 = vmatpush1.msra.mxu0 0.0
  %4389 = vmatprep.subr.mxu0 0.0
  %4390 = vmatpush1.msra.mxu0 0.0
  %4391 = vmatprep.subr.mxu0 0.0
  %4392 = vmatpush1.msra.mxu0 0.0
  %4393 = vmatprep.subr.mxu0 0.0
  %4394 = vmatpush1.msra.mxu0 0.0
  %4395 = vmatprep.subr.mxu0 0.0
  %4396 = vmatpush1.msra.mxu0 0.0
  %4397 = vmatprep.subr.mxu0 0.0
  %4398 = vmatpush1.msra.mxu0 0.0
  %4399 = vmatprep.subr.mxu0 0.0
  %4400 = vmatpush1.msra.mxu0 0.0
  %4401 = vmatprep.subr.mxu0 0.0
  %4402 = vmatpush1.msra.mxu0 0.0
  %4403 = vmatprep.subr.mxu0 0.0
  %4404 = vmatpush1.msra.mxu0 0.0
  %4405 = vmatprep.subr.mxu0 0.0
  %4406 = vmatpush1.msra.mxu0 0.0
  %4407 = vmatprep.mubr.f32.mxu0 0.0
  %4408 = vmatmul.mubr.f32.gmra.mrb[0].mxu0 %v4341
  %v4409 = vpop.f32.mrb[0].mxu0
  %v4410 = vadd.f32 0.0, %v4409
  %v4411 = vpop.f32.mrb[0].mxu0
  %4412 = vdwg.mxu0
  %v4413 = vadd.f32 %v4335, %v4410
  %v4414 = vld [vmem:[#allocation2 + $0x16] sm:$0x3]
  %s4415 = scalar_lea.vmem %s4, 176
  %v4416 = vld [vmem:[%s4415] sm:$0xff]
  %v4417 = vld [vmem:[%s4415 + $0x8] sm:$0xff]
  %v4419 = vsel %vm3554, %v4414, 0
  %4421 = vmatprep.subr.mxu0 0.0
  %4422 = vmatpush1.msra.mxu0 %v4416
  %4423 = vmatprep.subr.mxu0 0.0
  %4424 = vmatpush1.msra.mxu0 %v4417
  %4425 = vmatprep.subr.mxu0 0.0
  %4426 = vmatpush1.msra.mxu0 0.0
  %4427 = vmatprep.subr.mxu0 0.0
  %4428 = vmatpush1.msra.mxu0 0.0
  %4429 = vmatprep.subr.mxu0 0.0
  %4430 = vmatpush1.msra.mxu0 0.0
  %4431 = vmatprep.subr.mxu0 0.0
  %4432 = vmatpush1.msra.mxu0 0.0
  %4433 = vmatprep.subr.mxu0 0.0
  %4434 = vmatpush1.msra.mxu0 0.0
  %4435 = vmatprep.subr.mxu0 0.0
  %4436 = vmatpush1.msra.mxu0 0.0
  %4437 = vmatprep.subr.mxu0 0.0
  %4438 = vmatpush1.msra.mxu0 0.0
  %4439 = vmatprep.subr.mxu0 0.0
  %4440 = vmatpush1.msra.mxu0 0.0
  %4441 = vmatprep.subr.mxu0 0.0
  %4442 = vmatpush1.msra.mxu0 0.0
  %4443 = vmatprep.subr.mxu0 0.0
  %4444 = vmatpush1.msra.mxu0 0.0
  %4445 = vmatprep.subr.mxu0 0.0
  %4446 = vmatpush1.msra.mxu0 0.0
  %4447 = vmatprep.subr.mxu0 0.0
  %4448 = vmatpush1.msra.mxu0 0.0
  %4449 = vmatprep.subr.mxu0 0.0
  %4450 = vmatpush1.msra.mxu0 0.0
  %4451 = vmatprep.subr.mxu0 0.0
  %4452 = vmatpush1.msra.mxu0 0.0
  %4453 = vmatprep.subr.mxu0 0.0
  %4454 = vmatpush1.msra.mxu0 0.0
  %4455 = vmatprep.subr.mxu0 0.0
  %4456 = vmatpush1.msra.mxu0 0.0
  %4457 = vmatprep.subr.mxu0 0.0
  %4458 = vmatpush1.msra.mxu0 0.0
  %4459 = vmatprep.subr.mxu0 0.0
  %4460 = vmatpush1.msra.mxu0 0.0
  %4461 = vmatprep.subr.mxu0 0.0
  %4462 = vmatpush1.msra.mxu0 0.0
  %4463 = vmatprep.subr.mxu0 0.0
  %4464 = vmatpush1.msra.mxu0 0.0
  %4465 = vmatprep.subr.mxu0 0.0
  %4466 = vmatpush1.msra.mxu0 0.0
  %4467 = vmatprep.subr.mxu0 0.0
  %4468 = vmatpush1.msra.mxu0 0.0
  %4469 = vmatprep.subr.mxu0 0.0
  %4470 = vmatpush1.msra.mxu0 0.0
  %4471 = vmatprep.subr.mxu0 0.0
  %4472 = vmatpush1.msra.mxu0 0.0
  %4473 = vmatprep.subr.mxu0 0.0
  %4474 = vmatpush1.msra.mxu0 0.0
  %4475 = vmatprep.subr.mxu0 0.0
  %4476 = vmatpush1.msra.mxu0 0.0
  %4477 = vmatprep.subr.mxu0 0.0
  %4478 = vmatpush1.msra.mxu0 0.0
  %4479 = vmatprep.subr.mxu0 0.0
  %4480 = vmatpush1.msra.mxu0 0.0
  %4481 = vmatprep.subr.mxu0 0.0
  %4482 = vmatpush1.msra.mxu0 0.0
  %4483 = vmatprep.subr.mxu0 0.0
  %4484 = vmatpush1.msra.mxu0 0.0
  %4485 = vmatprep.mubr.f32.mxu0 0.0
  %4486 = vmatmul.mubr.f32.gmra.mrb[0].mxu0 %v4419
  %v4487 = vpop.f32.mrb[0].mxu0
  %v4488 = vadd.f32 0.0, %v4487
  %v4489 = vpop.f32.mrb[0].mxu0
  %4490 = vdwg.mxu0
  %v4491 = vadd.f32 %v4413, %v4488
  %v4492 = vld [vmem:[#allocation2 + $0x18] sm:$0x3]
  %s4493 = scalar_lea.vmem %s4, 192
  %v4494 = vld [vmem:[%s4493] sm:$0xff]
  %v4495 = vld [vmem:[%s4493 + $0x8] sm:$0xff]
  %v4497 = vsel %vm3554, %v4492, 0
  %4499 = vmatprep.subr.mxu0 0.0
  %4500 = vmatpush1.msra.mxu0 %v4494
  %4501 = vmatprep.subr.mxu0 0.0
  %4502 = vmatpush1.msra.mxu0 %v4495
  %4503 = vmatprep.subr.mxu0 0.0
  %4504 = vmatpush1.msra.mxu0 0.0
  %4505 = vmatprep.subr.mxu0 0.0
  %4506 = vmatpush1.msra.mxu0 0.0
  %4507 = vmatprep.subr.mxu0 0.0
  %4508 = vmatpush1.msra.mxu0 0.0
  %4509 = vmatprep.subr.mxu0 0.0
  %4510 = vmatpush1.msra.mxu0 0.0
  %4511 = vmatprep.subr.mxu0 0.0
  %4512 = vmatpush1.msra.mxu0 0.0
  %4513 = vmatprep.subr.mxu0 0.0
  %4514 = vmatpush1.msra.mxu0 0.0
  %4515 = vmatprep.subr.mxu0 0.0
  %4516 = vmatpush1.msra.mxu0 0.0
  %4517 = vmatprep.subr.mxu0 0.0
  %4518 = vmatpush1.msra.mxu0 0.0
  %4519 = vmatprep.subr.mxu0 0.0
  %4520 = vmatpush1.msra.mxu0 0.0
  %4521 = vmatprep.subr.mxu0 0.0
  %4522 = vmatpush1.msra.mxu0 0.0
  %4523 = vmatprep.subr.mxu0 0.0
  %4524 = vmatpush1.msra.mxu0 0.0
  %4525 = vmatprep.subr.mxu0 0.0
  %4526 = vmatpush1.msra.mxu0 0.0
  %4527 = vmatprep.subr.mxu0 0.0
  %4528 = vmatpush1.msra.mxu0 0.0
  %4529 = vmatprep.subr.mxu0 0.0
  %4530 = vmatpush1.msra.mxu0 0.0
  %4531 = vmatprep.subr.mxu0 0.0
  %4532 = vmatpush1.msra.mxu0 0.0
  %4533 = vmatprep.subr.mxu0 0.0
  %4534 = vmatpush1.msra.mxu0 0.0
  %4535 = vmatprep.subr.mxu0 0.0
  %4536 = vmatpush1.msra.mxu0 0.0
  %4537 = vmatprep.subr.mxu0 0.0
  %4538 = vmatpush1.msra.mxu0 0.0
  %4539 = vmatprep.subr.mxu0 0.0
  %4540 = vmatpush1.msra.mxu0 0.0
  %4541 = vmatprep.subr.mxu0 0.0
  %4542 = vmatpush1.msra.mxu0 0.0
  %4543 = vmatprep.subr.mxu0 0.0
  %4544 = vmatpush1.msra.mxu0 0.0
  %4545 = vmatprep.subr.mxu0 0.0
  %4546 = vmatpush1.msra.mxu0 0.0
  %4547 = vmatprep.subr.mxu0 0.0
  %4548 = vmatpush1.msra.mxu0 0.0
  %4549 = vmatprep.subr.mxu0 0.0
  %4550 = vmatpush1.msra.mxu0 0.0
  %4551 = vmatprep.subr.mxu0 0.0
  %4552 = vmatpush1.msra.mxu0 0.0
  %4553 = vmatprep.subr.mxu0 0.0
  %4554 = vmatpush1.msra.mxu0 0.0
  %4555 = vmatprep.subr.mxu0 0.0
  %4556 = vmatpush1.msra.mxu0 0.0
  %4557 = vmatprep.subr.mxu0 0.0
  %4558 = vmatpush1.msra.mxu0 0.0
  %4559 = vmatprep.subr.mxu0 0.0
  %4560 = vmatpush1.msra.mxu0 0.0
  %4561 = vmatprep.subr.mxu0 0.0
  %4562 = vmatpush1.msra.mxu0 0.0
  %4563 = vmatprep.mubr.f32.mxu0 0.0
  %4564 = vmatmul.mubr.f32.gmra.mrb[0].mxu0 %v4497
  %v4565 = vpop.f32.mrb[0].mxu0
  %v4566 = vadd.f32 0.0, %v4565
  %v4567 = vpop.f32.mrb[0].mxu0
  %4568 = vdwg.mxu0
  %v4569 = vadd.f32 %v4491, %v4566
  %v4570 = vld [vmem:[#allocation2 + $0x1a] sm:$0x3]
  %s4571 = scalar_lea.vmem %s4, 208
  %v4572 = vld [vmem:[%s4571] sm:$0xff]
  %v4573 = vld [vmem:[%s4571 + $0x8] sm:$0xff]
  %v4575 = vsel %vm3554, %v4570, 0
  %4577 = vmatprep.subr.mxu0 0.0
  %4578 = vmatpush1.msra.mxu0 %v4572
  %4579 = vmatprep.subr.mxu0 0.0
  %4580 = vmatpush1.msra.mxu0 %v4573
  %4581 = vmatprep.subr.mxu0 0.0
  %4582 = vmatpush1.msra.mxu0 0.0
  %4583 = vmatprep.subr.mxu0 0.0
  %4584 = vmatpush1.msra.mxu0 0.0
  %4585 = vmatprep.subr.mxu0 0.0
  %4586 = vmatpush1.msra.mxu0 0.0
  %4587 = vmatprep.subr.mxu0 0.0
  %4588 = vmatpush1.msra.mxu0 0.0
  %4589 = vmatprep.subr.mxu0 0.0
  %4590 = vmatpush1.msra.mxu0 0.0
  %4591 = vmatprep.subr.mxu0 0.0
  %4592 = vmatpush1.msra.mxu0 0.0
  %4593 = vmatprep.subr.mxu0 0.0
  %4594 = vmatpush1.msra.mxu0 0.0
  %4595 = vmatprep.subr.mxu0 0.0
  %4596 = vmatpush1.msra.mxu0 0.0
  %4597 = vmatprep.subr.mxu0 0.0
  %4598 = vmatpush1.msra.mxu0 0.0
  %4599 = vmatprep.subr.mxu0 0.0
  %4600 = vmatpush1.msra.mxu0 0.0
  %4601 = vmatprep.subr.mxu0 0.0
  %4602 = vmatpush1.msra.mxu0 0.0
  %4603 = vmatprep.subr.mxu0 0.0
  %4604 = vmatpush1.msra.mxu0 0.0
  %4605 = vmatprep.subr.mxu0 0.0
  %4606 = vmatpush1.msra.mxu0 0.0
  %4607 = vmatprep.subr.mxu0 0.0
  %4608 = vmatpush1.msra.mxu0 0.0
  %4609 = vmatprep.subr.mxu0 0.0
  %4610 = vmatpush1.msra.mxu0 0.0
  %4611 = vmatprep.subr.mxu0 0.0
  %4612 = vmatpush1.msra.mxu0 0.0
  %4613 = vmatprep.subr.mxu0 0.0
  %4614 = vmatpush1.msra.mxu0 0.0
  %4615 = vmatprep.subr.mxu0 0.0
  %4616 = vmatpush1.msra.mxu0 0.0
  %4617 = vmatprep.subr.mxu0 0.0
  %4618 = vmatpush1.msra.mxu0 0.0
  %4619 = vmatprep.subr.mxu0 0.0
  %4620 = vmatpush1.msra.mxu0 0.0
  %4621 = vmatprep.subr.mxu0 0.0
  %4622 = vmatpush1.msra.mxu0 0.0
  %4623 = vmatprep.subr.mxu0 0.0
  %4624 = vmatpush1.msra.mxu0 0.0
  %4625 = vmatprep.subr.mxu0 0.0
  %4626 = vmatpush1.msra.mxu0 0.0
  %4627 = vmatprep.subr.mxu0 0.0
  %4628 = vmatpush1.msra.mxu0 0.0
  %4629 = vmatprep.subr.mxu0 0.0
  %4630 = vmatpush1.msra.mxu0 0.0
  %4631 = vmatprep.subr.mxu0 0.0
  %4632 = vmatpush1.msra.mxu0 0.0
  %4633 = vmatprep.subr.mxu0 0.0
  %4634 = vmatpush1.msra.mxu0 0.0
  %4635 = vmatprep.subr.mxu0 0.0
  %4636 = vmatpush1.msra.mxu0 0.0
  %4637 = vmatprep.subr.mxu0 0.0
  %4638 = vmatpush1.msra.mxu0 0.0
  %4639 = vmatprep.subr.mxu0 0.0
  %4640 = vmatpush1.msra.mxu0 0.0
  %4641 = vmatprep.mubr.f32.mxu0 0.0
  %4642 = vmatmul.mubr.f32.gmra.mrb[0].mxu0 %v4575
  %v4643 = vpop.f32.mrb[0].mxu0
  %v4644 = vadd.f32 0.0, %v4643
  %v4645 = vpop.f32.mrb[0].mxu0
  %4646 = vdwg.mxu0
  %v4647 = vadd.f32 %v4569, %v4644
  %v4648 = vld [vmem:[#allocation2 + $0x1c] sm:$0x3]
  %s4649 = scalar_lea.vmem %s4, 224
  %v4650 = vld [vmem:[%s4649] sm:$0xff]
  %v4651 = vld [vmem:[%s4649 + $0x8] sm:$0xff]
  %v4653 = vsel %vm3554, %v4648, 0
  %4655 = vmatprep.subr.mxu0 0.0
  %4656 = vmatpush1.msra.mxu0 %v4650
  %4657 = vmatprep.subr.mxu0 0.0
  %4658 = vmatpush1.msra.mxu0 %v4651
  %4659 = vmatprep.subr.mxu0 0.0
  %4660 = vmatpush1.msra.mxu0 0.0
  %4661 = vmatprep.subr.mxu0 0.0
  %4662 = vmatpush1.msra.mxu0 0.0
  %4663 = vmatprep.subr.mxu0 0.0
  %4664 = vmatpush1.msra.mxu0 0.0
  %4665 = vmatprep.subr.mxu0 0.0
  %4666 = vmatpush1.msra.mxu0 0.0
  %4667 = vmatprep.subr.mxu0 0.0
  %4668 = vmatpush1.msra.mxu0 0.0
  %4669 = vmatprep.subr.mxu0 0.0
  %4670 = vmatpush1.msra.mxu0 0.0
  %4671 = vmatprep.subr.mxu0 0.0
  %4672 = vmatpush1.msra.mxu0 0.0
  %4673 = vmatprep.subr.mxu0 0.0
  %4674 = vmatpush1.msra.mxu0 0.0
  %4675 = vmatprep.subr.mxu0 0.0
  %4676 = vmatpush1.msra.mxu0 0.0
  %4677 = vmatprep.subr.mxu0 0.0
  %4678 = vmatpush1.msra.mxu0 0.0
  %4679 = vmatprep.subr.mxu0 0.0
  %4680 = vmatpush1.msra.mxu0 0.0
  %4681 = vmatprep.subr.mxu0 0.0
  %4682 = vmatpush1.msra.mxu0 0.0
  %4683 = vmatprep.subr.mxu0 0.0
  %4684 = vmatpush1.msra.mxu0 0.0
  %4685 = vmatprep.subr.mxu0 0.0
  %4686 = vmatpush1.msra.mxu0 0.0
  %4687 = vmatprep.subr.mxu0 0.0
  %4688 = vmatpush1.msra.mxu0 0.0
  %4689 = vmatprep.subr.mxu0 0.0
  %4690 = vmatpush1.msra.mxu0 0.0
  %4691 = vmatprep.subr.mxu0 0.0
  %4692 = vmatpush1.msra.mxu0 0.0
  %4693 = vmatprep.subr.mxu0 0.0
  %4694 = vmatpush1.msra.mxu0 0.0
  %4695 = vmatprep.subr.mxu0 0.0
  %4696 = vmatpush1.msra.mxu0 0.0
  %4697 = vmatprep.subr.mxu0 0.0
  %4698 = vmatpush1.msra.mxu0 0.0
  %4699 = vmatprep.subr.mxu0 0.0
  %4700 = vmatpush1.msra.mxu0 0.0
  %4701 = vmatprep.subr.mxu0 0.0
  %4702 = vmatpush1.msra.mxu0 0.0
  %4703 = vmatprep.subr.mxu0 0.0
  %4704 = vmatpush1.msra.mxu0 0.0
  %4705 = vmatprep.subr.mxu0 0.0
  %4706 = vmatpush1.msra.mxu0 0.0
  %4707 = vmatprep.subr.mxu0 0.0
  %4708 = vmatpush1.msra.mxu0 0.0
  %4709 = vmatprep.subr.mxu0 0.0
  %4710 = vmatpush1.msra.mxu0 0.0
  %4711 = vmatprep.subr.mxu0 0.0
  %4712 = vmatpush1.msra.mxu0 0.0
  %4713 = vmatprep.subr.mxu0 0.0
  %4714 = vmatpush1.msra.mxu0 0.0
  %4715 = vmatprep.subr.mxu0 0.0
  %4716 = vmatpush1.msra.mxu0 0.0
  %4717 = vmatprep.subr.mxu0 0.0
  %4718 = vmatpush1.msra.mxu0 0.0
  %4719 = vmatprep.mubr.f32.mxu0 0.0
  %4720 = vmatmul.mubr.f32.gmra.mrb[0].mxu0 %v4653
  %v4721 = vpop.f32.mrb[0].mxu0
  %v4722 = vadd.f32 0.0, %v4721
  %v4723 = vpop.f32.mrb[0].mxu0
  %4724 = vdwg.mxu0
  %v4725 = vadd.f32 %v4647, %v4722
  %v4726 = vld [vmem:[#allocation2 + $0x1e] sm:$0x3]
  %s4727 = scalar_lea.vmem %s4, 240
  %v4728 = vld [vmem:[%s4727] sm:$0xff]
  %v4729 = vld [vmem:[%s4727 + $0x8] sm:$0xff]
  %v4731 = vsel %vm3554, %v4726, 0
  %4733 = vmatprep.subr.mxu0 0.0
  %4734 = vmatpush1.msra.mxu0 %v4728
  %4735 = vmatprep.subr.mxu0 0.0
  %4736 = vmatpush1.msra.mxu0 %v4729
  %4737 = vmatprep.subr.mxu0 0.0
  %4738 = vmatpush1.msra.mxu0 0.0
  %4739 = vmatprep.subr.mxu0 0.0
  %4740 = vmatpush1.msra.mxu0 0.0
  %4741 = vmatprep.subr.mxu0 0.0
  %4742 = vmatpush1.msra.mxu0 0.0
  %4743 = vmatprep.subr.mxu0 0.0
  %4744 = vmatpush1.msra.mxu0 0.0
  %4745 = vmatprep.subr.mxu0 0.0
  %4746 = vmatpush1.msra.mxu0 0.0
  %4747 = vmatprep.subr.mxu0 0.0
  %4748 = vmatpush1.msra.mxu0 0.0
  %4749 = vmatprep.subr.mxu0 0.0
  %4750 = vmatpush1.msra.mxu0 0.0
  %4751 = vmatprep.subr.mxu0 0.0
  %4752 = vmatpush1.msra.mxu0 0.0
  %4753 = vmatprep.subr.mxu0 0.0
  %4754 = vmatpush1.msra.mxu0 0.0
  %4755 = vmatprep.subr.mxu0 0.0
  %4756 = vmatpush1.msra.mxu0 0.0
  %4757 = vmatprep.subr.mxu0 0.0
  %4758 = vmatpush1.msra.mxu0 0.0
  %4759 = vmatprep.subr.mxu0 0.0
  %4760 = vmatpush1.msra.mxu0 0.0
  %4761 = vmatprep.subr.mxu0 0.0
  %4762 = vmatpush1.msra.mxu0 0.0
  %4763 = vmatprep.subr.mxu0 0.0
  %4764 = vmatpush1.msra.mxu0 0.0
  %4765 = vmatprep.subr.mxu0 0.0
  %4766 = vmatpush1.msra.mxu0 0.0
  %4767 = vmatprep.subr.mxu0 0.0
  %4768 = vmatpush1.msra.mxu0 0.0
  %4769 = vmatprep.subr.mxu0 0.0
  %4770 = vmatpush1.msra.mxu0 0.0
  %4771 = vmatprep.subr.mxu0 0.0
  %4772 = vmatpush1.msra.mxu0 0.0
  %4773 = vmatprep.subr.mxu0 0.0
  %4774 = vmatpush1.msra.mxu0 0.0
  %4775 = vmatprep.subr.mxu0 0.0
  %4776 = vmatpush1.msra.mxu0 0.0
  %4777 = vmatprep.subr.mxu0 0.0
  %4778 = vmatpush1.msra.mxu0 0.0
  %4779 = vmatprep.subr.mxu0 0.0
  %4780 = vmatpush1.msra.mxu0 0.0
  %4781 = vmatprep.subr.mxu0 0.0
  %4782 = vmatpush1.msra.mxu0 0.0
  %4783 = vmatprep.subr.mxu0 0.0
  %4784 = vmatpush1.msra.mxu0 0.0
  %4785 = vmatprep.subr.mxu0 0.0
  %4786 = vmatpush1.msra.mxu0 0.0
  %4787 = vmatprep.subr.mxu0 0.0
  %4788 = vmatpush1.msra.mxu0 0.0
  %4789 = vmatprep.subr.mxu0 0.0
  %4790 = vmatpush1.msra.mxu0 0.0
  %4791 = vmatprep.subr.mxu0 0.0
  %4792 = vmatpush1.msra.mxu0 0.0
  %4793 = vmatprep.subr.mxu0 0.0
  %4794 = vmatpush1.msra.mxu0 0.0
  %4795 = vmatprep.subr.mxu0 0.0
  %4796 = vmatpush1.msra.mxu0 0.0
  %4797 = vmatprep.mubr.f32.mxu0 0.0
  %4798 = vmatmul.mubr.f32.gmra.mrb[0].mxu0 %v4731
  %v4799 = vpop.f32.mrb[0].mxu0
  %v4800 = vadd.f32 0.0, %v4799
  %v4801 = vpop.f32.mrb[0].mxu0
  %4802 = vdwg.mxu0
  %v4803 = vadd.f32 %v4725, %v4800
  %v4804 = vld [vmem:[%s5] sm:$0x1]
  %v4806 = vlaneseq
  %v4807 = vshrl.u32 %v4806, 7
  %v4808 = vsub.s32 0, %v4807
  %v4809 = vrot.slane %v4804, %v4808
  %v4811 = vadd.f32 %v4803, %v4809
  %v4812 = vsub.f32 0.0, %v4811
  %v4813 = vmul.f32 %v4812, 1.442695
  %v4814 = vpow.pop %v4813
  %v4815 = vadd.f32 %v4814, 1.0
  %v4816 = vrcp.pop %v4815
  %v4817 = vmul.f32 1.0, %v4816
  %v4818 = vsub.f32 1.0, %v4817
  %v4819 = vmul.f32 %v4811, %v4818
  %v4820 = vadd.f32 %v4819, 1.0
  %v4821 = vmul.f32 %v4817, %v4820
  %v4822 = vld [vmem:[%s6] sm:$0x1]
  %v4824 = vlaneseq
  %v4825 = vshrl.u32 %v4824, 7
  %v4826 = vsub.s32 0, %v4825
  %v4827 = vrot.slane %v4822, %v4826
  %v4829 = vmul.f32 %v4821, %v4827
  %vm4830 = vcmask 254976
  %v4831 = vsel %vm4830, %v4829, 0.0
  %4832 = vadd.xlane.f32.xlu0 %v4831
  %v4833 = vpop.xlane.xlu0 %4832
  %v4834 = vld [vmem:[#allocation3] sm:$0x1]
  %v4836 = vlaneseq
  %v4837 = vshrl.u32 %v4836, 7
  %v4838 = vsub.s32 0, %v4837
  %v4839 = vrot.slane %v4834, %v4838
  %v4841 = vadd.f32 %v4833, %v4839
  %vm4842 = vcmask 1024
  %4843 = vst.msk [vmem:[%s8] sm:$0x3] %vm4842, %v4841
  // Predicated region
  $region34: #{value_cnn_forward.1} parent=0 // pred_check
    _
  $region35: #{value_cnn_forward.1} parent=0 // pred_check_branch
    %4845 = sbr.rel (0) target = $region37
  $region36: #{value_cnn_forward.1} parent=0 // pred_region
    _
  $region37: #{value_cnn_forward.1} parent=0 // pred_fallthru
    _
  // Predicated region
  $region38: #{value_cnn_forward.1} parent=0 // pred_check
    _
  $region39: #{value_cnn_forward.1} parent=0 // pred_check_branch
    %4847 = sbr.rel (0) target = $region41
  $region40: #{value_cnn_forward.1} parent=0 // pred_region
    _
  $region41: #{value_cnn_forward.1} parent=0 // pred_fallthru
    _

</llo_original>
